<compile_context>
chip_gen: v5e
topology: v5e:2x2
jax: 0.10.0
libtpu: 0.0.40
codegen_flags: <defaults>
</compile_context>

<pallas_src>
import functools
import math

import jax
import jax.numpy as jnp
from jax import lax
from jax.experimental import pallas as pl
from jax.experimental.pallas import tpu as pltpu

D = 32
NUM_FEATURES = 5
LN_EPS = 1e-5
PACK = 8                               # logical rows per packed row (PACK * D = 256 lanes)
_INV_SQRT2 = 1.0 / math.sqrt(2.0)
_MXU_PREC = lax.Precision.HIGHEST      # force fp32 MXU contraction (deterministic accuracy)


def _round_up(x, m):
    return ((x + m - 1) // m) * m


def _feature_expansion_kernel(x_ref, w_ref, b_ref, g_ref, beta_ref, avg_ref, o_ref,
                              *, n_chunks):
    # x_ref:    (TILE_M, PACK*F)   packed input rows
    # w_ref:    (PACK*F, PACK*D)   block-diagonal Linear weight
    # b/g/beta: (1, PACK*D)        tiled bias / LayerNorm affine
    # avg_ref:  (PACK*D, PACK*D)   block-diagonal group-average matrix (1/D per group)
    # o_ref:    (TILE_M, PACK*D)
    w = w_ref[...]
    avg = avg_ref[...]
    b = b_ref[...]
    g = g_ref[...]
    beta = beta_ref[...]

    tm = x_ref.shape[0]
    cm = tm // n_chunks                 # static sub-chunk size (multiple of 8)

    # Static sub-chunks: independent work the scheduler can interleave so the
    # next chunk's MXU pushes hide this chunk's erf / LayerNorm VPU epilogue.
    for c in range(n_chunks):
        rows = pl.ds(c * cm, cm)        # static start -> zero-cost ref view
        x = x_ref[rows, :].astype(jnp.float32)

        # Linear: block-diagonal matmul = PACK independent logical rows per lane row.
        y = jnp.dot(x, w, preferred_element_type=jnp.float32, precision=_MXU_PREC) + b

        # Exact GELU (erf form — matches torch.nn.functional.gelu default).
        y = 0.5 * y * (1.0 + lax.erf(y * jnp.float32(_INV_SQRT2)))

        # LayerNorm over each group of D=32 lanes: segmented mean / E[y^2] via
        # two independent MXU matmuls (var = E[y^2] - mean^2, f32 accumulation).
        mean = jnp.dot(y, avg, preferred_element_type=jnp.float32, precision=_MXU_PREC)
        mean_sq = jnp.dot(y * y, avg, preferred_element_type=jnp.float32, precision=_MXU_PREC)
        var = jnp.maximum(mean_sq - mean * mean, 0.0)   # guard tiny negative from cancellation

        normed = (y - mean) * lax.rsqrt(var + jnp.float32(LN_EPS))
        o_ref[rows, :] = (normed * g + beta).astype(o_ref.dtype)


def prepare_params(w, b, gamma, beta, *, pack=PACK):
    """Precompute packed kernel parameters once (hoisted out of the hot path).

    w: (num_features, d)  (transposed PyTorch Linear weight, i.e. fc.weight.T)
    b, gamma, beta: (d,)
    """
    f, d = w.shape
    eye = jnp.eye(pack, dtype=jnp.float32)
    return dict(
        w_blk=jnp.kron(eye, w.astype(jnp.float32)),                        # (pack*F, pack*D)
        b=jnp.tile(b.astype(jnp.float32), pack).reshape(1, pack * d),
        gamma=jnp.tile(gamma.astype(jnp.float32), pack).reshape(1, pack * d),
        beta=jnp.tile(beta.astype(jnp.float32), pack).reshape(1, pack * d),
        avg=jnp.kron(eye, jnp.full((d, d), 1.0 / d, dtype=jnp.float32)),   # (pack*D, pack*D)
        f=f, d=d, pack=pack,
    )


def feature_expansion(x, params, *, tile_m=1024, out_dtype=None):
    """x: (..., num_features) -> (..., d) using pre-packed `params`."""
    f, d, pack = params["f"], params["d"], params["pack"]
    *lead, xf = x.shape
    assert xf == f, f"expected trailing dim {f}, got {xf}"
    n = math.prod(lead) if lead else 1
    out_dtype = x.dtype if out_dtype is None else out_dtype
    # TODO(synk): set out_dtype=jnp.bfloat16 on v6e if downstream accepts bf16
    # (halves the dominant output HBM traffic).

    # --- lane packing: `pack` logical rows per packed row, padded to a multiple of 8 ---
    m_raw = pl.cdiv(n, pack)
    m_pad = _round_up(max(m_raw, 1), 8)      # pad only to the sublane quantum, not to tile_m
    n_pad = m_pad * pack

    x2 = x.reshape(n, f)
    if n_pad != n:
        x2 = jnp.pad(x2, ((0, n_pad - n), (0, 0)))
    xp = x2.reshape(m_pad, pack * f)         # free (row-major) view

    # --- tile selection ---
    tm = max(8, (tile_m // 8) * 8)           # defensively round user tile to a multiple of 8
    if m_pad <= tm:
        # One tile would cover everything; if there is enough work, split in two
        # so the "parallel" grid axis can feed both v7x TensorCores.
        tm = _round_up(pl.cdiv(m_pad, 2), 8) if m_pad >= 128 else m_pad
    grid_m = pl.cdiv(m_pad, tm)              # ragged last block is handled by Pallas

    # In-kernel sub-chunking (MXU/VPU overlap); chunk size must stay a multiple of 8.
    n_chunks = 1
    for c in (4, 2):
        if tm % (8 * c) == 0 and tm // c >= 64:
            n_chunks = c
            break

    pf, pd = pack * f, pack * d
    m_work = grid_m * tm
    cost = pl.CostEstimate(
        flops=2 * m_work * pf * pd + 4 * m_work * pd * pd,
        transcendentals=m_work * pd,                      # erf
        bytes_accessed=(m_pad * pf + m_pad * pd + pf * pd + pd * pd + 3 * pd) * 4,
    )

    kernel = functools.partial(_feature_expansion_kernel, n_chunks=n_chunks)

    out = pl.pallas_call(
        kernel,
        out_shape=jax.ShapeDtypeStruct((m_pad, pd), out_dtype),
        grid_spec=pltpu.PrefetchScalarGridSpec(
            num_scalar_prefetch=0,
            grid=(grid_m,),
            in_specs=[
                pl.BlockSpec((tm, pf), lambda i: (i, 0)),   # packed rows (pipelined)
                pl.BlockSpec((pf, pd), lambda i: (0, 0)),   # block-diag weight (resident)
                pl.BlockSpec((1, pd), lambda i: (0, 0)),    # bias
                pl.BlockSpec((1, pd), lambda i: (0, 0)),    # gamma
                pl.BlockSpec((1, pd), lambda i: (0, 0)),    # beta
                pl.BlockSpec((pd, pd), lambda i: (0, 0)),   # group-average matrix
            ],
            out_specs=pl.BlockSpec((tm, pd), lambda i: (i, 0)),
        ),
        compiler_params=pltpu.CompilerParams(
            dimension_semantics=("parallel",),   # v7x: shard row tiles across 2 TCs
            vmem_limit_bytes=32 * 1024 * 1024,   # safe on v5e/v6e/v7x, ample headroom
        ),
        cost_estimate=cost,
    )(xp, params["w_blk"], params["b"], params["gamma"], params["beta"], params["avg"])

    out = out.reshape(n_pad, d)[:n]
    return out.reshape(*lead, d)


def _reference(x, w, b, gamma, beta):
    # HIGHEST precision so the XLA reference matmul is true f32 (matches the
    # fp32 MXU contraction used inside the kernel).
    y = jnp.einsum("...f,fd->...d", x, w, precision=lax.Precision.HIGHEST) + b
    y = 0.5 * y * (1.0 + lax.erf(y * jnp.float32(_INV_SQRT2)))
    mean = jnp.mean(y, axis=-1, keepdims=True)
    var = jnp.mean((y - mean) ** 2, axis=-1, keepdims=True)
    return (y - mean) / jnp.sqrt(var + LN_EPS) * gamma + beta


if __name__ == "__main__":
    key = jax.random.PRNGKey(0)
    k_x1, k_x2, k_x3, k_w, k_b = jax.random.split(key, 5)

    # Deterministic parameter init (mimics nn.Linear's uniform(-1/sqrt(F), 1/sqrt(F))).
    bound = 1.0 / math.sqrt(NUM_FEATURES)
    w = jax.random.uniform(k_w, (NUM_FEATURES, D), jnp.float32, -bound, bound)
    b = jax.random.uniform(k_b, (D,), jnp.float32, -bound, bound)
    gamma = jnp.ones((D,), jnp.float32)   # nn.LayerNorm default weight
    beta = jnp.zeros((D,), jnp.float32)   # nn.LayerNorm default bias

    # Pack parameters ONCE (kron/tile hoisted out of the per-call path).
    params = prepare_params(w, b, gamma, beta)
    params = jax.tree_util.tree_map(
        lambda v: jax.block_until_ready(v) if isinstance(v, jax.Array) else v, params)

    cases = [
        (k_x1, (2, 8, NUM_FEATURES)),      # module's nominal small shape
        (k_x2, (3, 5, NUM_FEATURES)),      # ragged: N not a multiple of PACK/8
        (k_x3, (4, 1024, NUM_FEATURES)),   # multi-tile grid + in-kernel sub-chunking
    ]
    for k, shape in cases:
        x = jax.random.normal(k, shape, dtype=jnp.float32)
        out = feature_expansion(x, params)
        jax.block_until_ready(out)
        ref = _reference(x, w, b, gamma, beta)
        assert out.shape == shape[:-1] + (D,)
        err = float(jnp.max(jnp.abs(out - ref)))
        assert jnp.allclose(out, ref, atol=3e-5, rtol=3e-5), (
            f"mismatch for shape {shape}: max abs err {err}")

    print("KERNEL_OK")
</pallas_src>

<mosaic_0001>
module attributes {stable_mosaic.version = 11 : i64} {
  func.func @_feature_expansion_kernel(%arg0: i32, %arg1: memref<8x40xf32, #tpu.memory_space<vmem>>, %arg2: memref<40x256xf32, #tpu.memory_space<vmem>>, %arg3: memref<1x256xf32, #tpu.memory_space<vmem>>, %arg4: memref<1x256xf32, #tpu.memory_space<vmem>>, %arg5: memref<1x256xf32, #tpu.memory_space<vmem>>, %arg6: memref<256x256xf32, #tpu.memory_space<vmem>>, %arg7: memref<8x256xf32, #tpu.memory_space<vmem>>) attributes {dimension_semantics = [#tpu.dimension_semantics<parallel>], iteration_bounds = array<i64: 1>, scalar_prefetch = 0 : i64, scratch_operands = 0 : i64, tpu.core_type = #tpu.core_type<tc>, window_params = [{transform_indices = @transform_0, window_bounds = array<i64: 8, 40>}, {pipeline_mode = #tpu.pipeline_mode<synchronous>, transform_indices = @transform_1, window_bounds = array<i64: 40, 256>}, {pipeline_mode = #tpu.pipeline_mode<synchronous>, transform_indices = @transform_2, window_bounds = array<i64: 1, 256>}, {pipeline_mode = #tpu.pipeline_mode<synchronous>, transform_indices = @transform_3, window_bounds = array<i64: 1, 256>}, {pipeline_mode = #tpu.pipeline_mode<synchronous>, transform_indices = @transform_4, window_bounds = array<i64: 1, 256>}, {pipeline_mode = #tpu.pipeline_mode<synchronous>, transform_indices = @transform_5, window_bounds = array<i64: 256, 256>}, {transform_indices = @transform_6, window_bounds = array<i64: 8, 256>}]} {
    %c0 = arith.constant 0 : index
    %c0_0 = arith.constant 0 : index
    %0 = vector.load %arg2[%c0, %c0_0] : memref<40x256xf32, #tpu.memory_space<vmem>>, vector<40x256xf32>
    %c0_1 = arith.constant 0 : index
    %c0_2 = arith.constant 0 : index
    %1 = vector.load %arg6[%c0_1, %c0_2] : memref<256x256xf32, #tpu.memory_space<vmem>>, vector<256x256xf32>
    %c0_3 = arith.constant 0 : index
    %c0_4 = arith.constant 0 : index
    %2 = vector.load %arg3[%c0_3, %c0_4] : memref<1x256xf32, #tpu.memory_space<vmem>>, vector<1x256xf32>
    %c0_5 = arith.constant 0 : index
    %c0_6 = arith.constant 0 : index
    %3 = vector.load %arg4[%c0_5, %c0_6] : memref<1x256xf32, #tpu.memory_space<vmem>>, vector<1x256xf32>
    %c0_7 = arith.constant 0 : index
    %c0_8 = arith.constant 0 : index
    %4 = vector.load %arg5[%c0_7, %c0_8] : memref<1x256xf32, #tpu.memory_space<vmem>>, vector<1x256xf32>
    %c0_9 = arith.constant 0 : index
    %c0_10 = arith.constant 0 : index
    %5 = vector.load %arg1[%c0_9, %c0_10] : memref<8x40xf32, #tpu.memory_space<vmem>>, vector<8x40xf32>
    %cst = arith.constant dense<0.000000e+00> : vector<8x256xf32>
    %6 = tpu.matmul %5, %0, %cst {dimension_numbers = #tpu.dot_dimension_numbers<[1], [0], [0], [1], [0, 0, 1, 1], [], []>, precision = #tpu.contract_precision<fp32>} : vector<8x40xf32>, vector<40x256xf32>, vector<8x256xf32> -> vector<8x256xf32>
    %7 = vector.broadcast %2 : vector<1x256xf32> to vector<8x256xf32>
    %8 = arith.addf %6, %7 : vector<8x256xf32>
    %cst_11 = arith.constant 5.000000e-01 : f32
    %9 = vector.broadcast %cst_11 : f32 to vector<8x256xf32>
    %10 = arith.mulf %9, %8 : vector<8x256xf32>
    %cst_12 = arith.constant 0.707106769 : f32
    %11 = vector.broadcast %cst_12 : f32 to vector<8x256xf32>
    %12 = arith.mulf %8, %11 : vector<8x256xf32>
    %13 = math.erf %12 : vector<8x256xf32>
    %cst_13 = arith.constant 1.000000e+00 : f32
    %14 = vector.broadcast %cst_13 : f32 to vector<8x256xf32>
    %15 = arith.addf %14, %13 : vector<8x256xf32>
    %16 = arith.mulf %10, %15 : vector<8x256xf32>
    %cst_14 = arith.constant dense<0.000000e+00> : vector<8x256xf32>
    %17 = tpu.matmul %16, %1, %cst_14 {dimension_numbers = #tpu.dot_dimension_numbers<[1], [0], [0], [1], [0, 0, 1, 1], [], []>, precision = #tpu.contract_precision<fp32>} : vector<8x256xf32>, vector<256x256xf32>, vector<8x256xf32> -> vector<8x256xf32>
    %18 = arith.mulf %16, %16 : vector<8x256xf32>
    %cst_15 = arith.constant dense<0.000000e+00> : vector<8x256xf32>
    %19 = tpu.matmul %18, %1, %cst_15 {dimension_numbers = #tpu.dot_dimension_numbers<[1], [0], [0], [1], [0, 0, 1, 1], [], []>, precision = #tpu.contract_precision<fp32>} : vector<8x256xf32>, vector<256x256xf32>, vector<8x256xf32> -> vector<8x256xf32>
    %20 = arith.mulf %17, %17 : vector<8x256xf32>
    %21 = arith.subf %19, %20 : vector<8x256xf32>
    %cst_16 = arith.constant 0.000000e+00 : f32
    %22 = vector.broadcast %cst_16 : f32 to vector<8x256xf32>
    %23 = arith.maximumf %21, %22 : vector<8x256xf32>
    %24 = arith.subf %16, %17 : vector<8x256xf32>
    %cst_17 = arith.constant 9.99999974E-6 : f32
    %25 = vector.broadcast %cst_17 : f32 to vector<8x256xf32>
    %26 = arith.addf %23, %25 : vector<8x256xf32>
    %27 = math.rsqrt %26 : vector<8x256xf32>
    %28 = arith.mulf %24, %27 : vector<8x256xf32>
    %29 = vector.broadcast %3 : vector<1x256xf32> to vector<8x256xf32>
    %30 = arith.mulf %28, %29 : vector<8x256xf32>
    %31 = vector.broadcast %4 : vector<1x256xf32> to vector<8x256xf32>
    %32 = arith.addf %30, %31 : vector<8x256xf32>
    %c0_18 = arith.constant 0 : index
    %c0_19 = arith.constant 0 : index
    %33 = vector.load %arg7[%c0_18, %c0_19] : memref<8x256xf32, #tpu.memory_space<vmem>>, vector<8x256xf32>
    tpu.vector_store %arg7[%c0_18, %c0_19], %32 {strides = array<i32>} : memref<8x256xf32, #tpu.memory_space<vmem>>, vector<8x256xf32>,
    return
  }
  func.func @transform_0(%arg0: i32) -> (i32, i32) {
    %c0_i32 = arith.constant 0 : i32
    %c0_i32_0 = arith.constant 0 : i32
    return %arg0, %c0_i32 : i32, i32
  }
  func.func @transform_1(%arg0: i32) -> (i32, i32) {
    %c0_i32 = arith.constant 0 : i32
    %c0_i32_0 = arith.constant 0 : i32
    %c0_i32_1 = arith.constant 0 : i32
    return %c0_i32, %c0_i32_0 : i32, i32
  }
  func.func @transform_2(%arg0: i32) -> (i32, i32) {
    %c0_i32 = arith.constant 0 : i32
    %c0_i32_0 = arith.constant 0 : i32
    %c0_i32_1 = arith.constant 0 : i32
    return %c0_i32, %c0_i32_0 : i32, i32
  }
  func.func @transform_3(%arg0: i32) -> (i32, i32) {
    %c0_i32 = arith.constant 0 : i32
    %c0_i32_0 = arith.constant 0 : i32
    %c0_i32_1 = arith.constant 0 : i32
    return %c0_i32, %c0_i32_0 : i32, i32
  }
  func.func @transform_4(%arg0: i32) -> (i32, i32) {
    %c0_i32 = arith.constant 0 : i32
    %c0_i32_0 = arith.constant 0 : i32
    %c0_i32_1 = arith.constant 0 : i32
    return %c0_i32, %c0_i32_0 : i32, i32
  }
  func.func @transform_5(%arg0: i32) -> (i32, i32) {
    %c0_i32 = arith.constant 0 : i32
    %c0_i32_0 = arith.constant 0 : i32
    %c0_i32_1 = arith.constant 0 : i32
    return %c0_i32, %c0_i32_0 : i32, i32
  }
  func.func @transform_6(%arg0: i32) -> (i32, i32) {
    %c0_i32 = arith.constant 0 : i32
    %c0_i32_0 = arith.constant 0 : i32
    return %arg0, %c0_i32 : i32, i32
  }
}

</mosaic_0001>

<llo_original>
// kernel: tpu_custom_call.1
$region0: #{tpu_custom_call.1}
  #allocation0 [shape = 'u32[]', space=smem, size = 0x4, offset = 0x4, fixed_abs, tag = 'smem constant byte address 0x4 - core index']
  #allocation1 [shape = 'u32[72,128]{1,0:T(1,128)}', space=vmem, size = 0x9000, scoped, tag = 'internal scratch']
  %s0 = inlined_call_operand.hbm [shape: f32[8,40], index: 0, kind: input, shape index: {}]
  %s1 = inlined_call_operand.hbm [shape: f32[40,256], index: 1, kind: input, shape index: {}]
  %s2 = inlined_call_operand.hbm [shape: f32[1,256], index: 2, kind: input, shape index: {}]
  %s3 = inlined_call_operand.vmem [shape: f32[1,256], index: 3, kind: input, shape index: {}]
  %s4 = inlined_call_operand.hbm [shape: f32[1,256], index: 4, kind: input, shape index: {}]
  %s5 = inlined_call_operand.hbm [shape: f32[256,256], index: 5, kind: input, shape index: {}]
  %s6 = inlined_call_operand.hbm [shape: f32[8,256], index: 6, kind: output, shape index: {}]
  %s7 = sld [smem:[#allocation0]]
  $region54: #{tpu_custom_call.1} parent=0
    _
  %s9 = ssub.s32 1, %s7
  %s10 = scalar_select 0, %s9, %s7
  $region1: #{tpu_custom_call.1} parent=0
    #allocation2 [shape = 'u8[4096]{0}', space=vmem, size = 0x1000, scoped, tag = 'input window, operand 0, single buffered']
    #allocation3 [shape = 's32[1]{0}', space=sflag, size = 0x4, scoped, tag = 'scoped memory for tpu_custom_call.1']
    #allocation4 [shape = 's32[1]{0}', space=sflag, size = 0x4, scoped, tag = 'scoped memory for tpu_custom_call.1']
    #allocation5 [shape = 'u8[40960]{0}', space=vmem, size = 0xa000, scoped, tag = 'input window, operand 1, single buffered']
    #allocation6 [shape = 's32[1]{0}', space=sflag, size = 0x4, scoped, tag = 'scoped memory for tpu_custom_call.1']
    #allocation7 [shape = 'u8[1024]{0}', space=vmem, size = 0x400, scoped, tag = 'input window, operand 2, single buffered']
    #allocation8 [shape = 'u8[1024]{0}', space=vmem, size = 0x400, scoped, tag = 'input window, operand 4, single buffered']
    #allocation9 [shape = 's32[1]{0}', space=sflag, size = 0x4, scoped, tag = 'scoped memory for tpu_custom_call.1']
    #allocation10 [shape = 'u8[262144]{0}', space=vmem, size = 0x40000, scoped, tag = 'input window, operand 5, single buffered']
    #allocation11 [shape = 'u8[8192]{0}', space=vmem, size = 0x2000, scoped, tag = 'output window, operand 0, single buffered']
    %11 = vsyncpa [#allocation3], 0
    %12 = vsyncpa [#allocation6], 0
    %13 = vsyncpa [#allocation9], 0
    %14 = vsyncpa [#allocation4], 0
    // Predicated region
    $region2: #{tpu_custom_call.1} parent=1 // pred_check
      _
    $region3: #{tpu_custom_call.1} parent=1 // pred_check_branch
      %16 = sbr.rel (0) target = $region5
    $region4: #{tpu_custom_call.1} parent=1 // pred_region
      %18 = vsyncadd [#allocation3], 0
      %s20 = sshll.u32 %s0, 4
      %s21 = int_to_ptr.hbm [resolvable:$true] %s20
      %s22 = sshll.u32 [#allocation2], 4
      %s23 = int_to_ptr.vmem [resolvable:$true] %s22
      %25 = dma.hbm_to_vmem [thread:$0]  %s21, 128, %s23, [#allocation3]
    $region5: #{tpu_custom_call.1} parent=1 // pred_fallthru
      _
    // Predicated region
    $region6: #{tpu_custom_call.1} parent=1 // pred_check
      _
    $region7: #{tpu_custom_call.1} parent=1 // pred_check_branch
      %27 = sbr.rel (0) target = $region9
    $region8: #{tpu_custom_call.1} parent=1 // pred_region
      %29 = vsyncadd [#allocation6], 0
      %s30 = sshll.u32 %s1, 4
      %s31 = int_to_ptr.hbm [resolvable:$true] %s30
      %s32 = sshll.u32 [#allocation5], 4
      %s33 = int_to_ptr.vmem [resolvable:$true] %s32
      %38 = dma.hbm_to_vmem [thread:$0]  %s31, 1280, %s33, [#allocation6], 256, 256, 16
    $region9: #{tpu_custom_call.1} parent=1 // pred_fallthru
      _
    // Predicated region
    $region10: #{tpu_custom_call.1} parent=1 // pred_check
      _
    $region11: #{tpu_custom_call.1} parent=1 // pred_check_branch
      %40 = sbr.rel (0) target = $region13
    $region12: #{tpu_custom_call.1} parent=1 // pred_region
      %42 = vsyncadd [#allocation6], 0
      %s44 = sshll.u32 %s2, 4
      %s45 = int_to_ptr.hbm [resolvable:$true] %s44
      %s46 = sshll.u32 [#allocation7], 4
      %s47 = int_to_ptr.vmem [resolvable:$true] %s46
      %49 = dma.hbm_to_vmem [thread:$0]  %s45, 32, %s47, [#allocation6]
    $region13: #{tpu_custom_call.1} parent=1 // pred_fallthru
      _
    // Predicated region
    $region14: #{tpu_custom_call.1} parent=1 // pred_check
      _
    $region15: #{tpu_custom_call.1} parent=1 // pred_check_branch
      %51 = sbr.rel (0) target = $region17
    $region16: #{tpu_custom_call.1} parent=1 // pred_region
      _
    $region17: #{tpu_custom_call.1} parent=1 // pred_fallthru
      _
    // Predicated region
    $region18: #{tpu_custom_call.1} parent=1 // pred_check
      _
    $region19: #{tpu_custom_call.1} parent=1 // pred_check_branch
      %53 = sbr.rel (0) target = $region21
    $region20: #{tpu_custom_call.1} parent=1 // pred_region
      %55 = vsyncadd [#allocation9], 0
      %s57 = sshll.u32 %s4, 4
      %s58 = int_to_ptr.hbm [resolvable:$true] %s57
      %s59 = sshll.u32 [#allocation8], 4
      %s60 = int_to_ptr.vmem [resolvable:$true] %s59
      %62 = dma.hbm_to_vmem [thread:$0]  %s58, 32, %s60, [#allocation9]
    $region21: #{tpu_custom_call.1} parent=1 // pred_fallthru
      _
    // Predicated region
    $region22: #{tpu_custom_call.1} parent=1 // pred_check
      _
    $region23: #{tpu_custom_call.1} parent=1 // pred_check_branch
      %64 = sbr.rel (0) target = $region25
    $region24: #{tpu_custom_call.1} parent=1 // pred_region
      %66 = vsyncadd [#allocation9], 0
      %s67 = sshll.u32 %s5, 4
      %s68 = int_to_ptr.hbm [resolvable:$true] %s67
      %s69 = sshll.u32 [#allocation10], 4
      %s70 = int_to_ptr.vmem [resolvable:$true] %s69
      %75 = dma.hbm_to_vmem [thread:$0]  %s68, 8192, %s70, [#allocation9], 256, 256, 16
    $region25: #{tpu_custom_call.1} parent=1 // pred_fallthru
      _
    // Predicated region
    $region26: #{tpu_custom_call.1} parent=1 // pred_check
      _
    $region27: #{tpu_custom_call.1} parent=1 // pred_check_branch
      %77 = sbr.rel (0) target = $region29
    $region28: #{tpu_custom_call.1} parent=1 // pred_region
      %79 = dma.done [#allocation3], 128
    $region29: #{tpu_custom_call.1} parent=1 // pred_fallthru
      _
    // Predicated region
    $region30: #{tpu_custom_call.1} parent=1 // pred_check
      _
    $region31: #{tpu_custom_call.1} parent=1 // pred_check_branch
      %81 = sbr.rel (0) target = $region33
    $region32: #{tpu_custom_call.1} parent=1 // pred_region
      %83 = dma.done [#allocation6], 1280
    $region33: #{tpu_custom_call.1} parent=1 // pred_fallthru
      _
    // Predicated region
    $region34: #{tpu_custom_call.1} parent=1 // pred_check
      _
    $region35: #{tpu_custom_call.1} parent=1 // pred_check_branch
      %85 = sbr.rel (0) target = $region37
    $region36: #{tpu_custom_call.1} parent=1 // pred_region
      %87 = dma.done [#allocation6], 32
    $region37: #{tpu_custom_call.1} parent=1 // pred_fallthru
      _
    // Predicated region
    $region38: #{tpu_custom_call.1} parent=1 // pred_check
      _
    $region39: #{tpu_custom_call.1} parent=1 // pred_check_branch
      %89 = sbr.rel (0) target = $region41
    $region40: #{tpu_custom_call.1} parent=1 // pred_region
      %91 = dma.done [#allocation9], 32
    $region41: #{tpu_custom_call.1} parent=1 // pred_fallthru
      _
    // Predicated region
    $region42: #{tpu_custom_call.1} parent=1 // pred_check
      _
    $region43: #{tpu_custom_call.1} parent=1 // pred_check_branch
      %93 = sbr.rel (0) target = $region45
    $region44: #{tpu_custom_call.1} parent=1 // pred_region
      %95 = dma.done [#allocation9], 8192
    $region45: #{tpu_custom_call.1} parent=1 // pred_fallthru
      _
    %v96 = vld [vmem:[#allocation5] sm:$0xff]
    %v97 = vld [vmem:[#allocation5 + $0x8] sm:$0xff]
    %v98 = vld [vmem:[#allocation5 + $0x10] sm:$0xff]
    %v99 = vld [vmem:[#allocation5 + $0x18] sm:$0xff]
    %v100 = vld [vmem:[#allocation5 + $0x20] sm:$0xff]
    %v101 = vld [vmem:[#allocation5 + $0x28] sm:$0xff]
    %v102 = vld [vmem:[#allocation5 + $0x30] sm:$0xff]
    %v103 = vld [vmem:[#allocation5 + $0x38] sm:$0xff]
    %v104 = vld [vmem:[#allocation5 + $0x40] sm:$0xff]
    %v105 = vld [vmem:[#allocation5 + $0x48] sm:$0xff]
    %v106 = vld [vmem:[#allocation10] sm:$0xff]
    %v107 = vld [vmem:[#allocation10 + $0x8] sm:$0xff]
    %v108 = vld [vmem:[#allocation10 + $0x10] sm:$0xff]
    %v109 = vld [vmem:[#allocation10 + $0x18] sm:$0xff]
    %v110 = vld [vmem:[#allocation10 + $0x20] sm:$0xff]
    %v111 = vld [vmem:[#allocation10 + $0x28] sm:$0xff]
    %v112 = vld [vmem:[#allocation10 + $0x30] sm:$0xff]
    %v113 = vld [vmem:[#allocation10 + $0x38] sm:$0xff]
    %v114 = vld [vmem:[#allocation10 + $0x40] sm:$0xff]
    %v115 = vld [vmem:[#allocation10 + $0x48] sm:$0xff]
    %v116 = vld [vmem:[#allocation10 + $0x50] sm:$0xff]
    %v117 = vld [vmem:[#allocation10 + $0x58] sm:$0xff]
    %v118 = vld [vmem:[#allocation10 + $0x60] sm:$0xff]
    %v119 = vld [vmem:[#allocation10 + $0x68] sm:$0xff]
    %v120 = vld [vmem:[#allocation10 + $0x70] sm:$0xff]
    %v121 = vld [vmem:[#allocation10 + $0x78] sm:$0xff]
    %v122 = vld [vmem:[#allocation10 + $0x80] sm:$0xff]
    %v123 = vld [vmem:[#allocation10 + $0x88] sm:$0xff]
    %v124 = vld [vmem:[#allocation10 + $0x90] sm:$0xff]
    %v125 = vld [vmem:[#allocation10 + $0x98] sm:$0xff]
    %v126 = vld [vmem:[#allocation10 + $0xa0] sm:$0xff]
    %v127 = vld [vmem:[#allocation10 + $0xa8] sm:$0xff]
    %v128 = vld [vmem:[#allocation10 + $0xb0] sm:$0xff]
    %v129 = vld [vmem:[#allocation10 + $0xb8] sm:$0xff]
    %v130 = vld [vmem:[#allocation10 + $0xc0] sm:$0xff]
    %v131 = vld [vmem:[#allocation10 + $0xc8] sm:$0xff]
    %v132 = vld [vmem:[#allocation10 + $0xd0] sm:$0xff]
    %v133 = vld [vmem:[#allocation10 + $0xd8] sm:$0xff]
    %v134 = vld [vmem:[#allocation10 + $0xe0] sm:$0xff]
    %v135 = vld [vmem:[#allocation10 + $0xe8] sm:$0xff]
    %v136 = vld [vmem:[#allocation10 + $0xf0] sm:$0xff]
    %v137 = vld [vmem:[#allocation10 + $0xf8] sm:$0xff]
    %v138 = vld [vmem:[#allocation10 + $0x100] sm:$0xff]
    %v139 = vld [vmem:[#allocation10 + $0x108] sm:$0xff]
    %v140 = vld [vmem:[#allocation10 + $0x110] sm:$0xff]
    %v141 = vld [vmem:[#allocation10 + $0x118] sm:$0xff]
    %v142 = vld [vmem:[#allocation10 + $0x120] sm:$0xff]
    %v143 = vld [vmem:[#allocation10 + $0x128] sm:$0xff]
    %v144 = vld [vmem:[#allocation10 + $0x130] sm:$0xff]
    %v145 = vld [vmem:[#allocation10 + $0x138] sm:$0xff]
    %v146 = vld [vmem:[#allocation10 + $0x140] sm:$0xff]
    %v147 = vld [vmem:[#allocation10 + $0x148] sm:$0xff]
    %v148 = vld [vmem:[#allocation10 + $0x150] sm:$0xff]
    %v149 = vld [vmem:[#allocation10 + $0x158] sm:$0xff]
    %v150 = vld [vmem:[#allocation10 + $0x160] sm:$0xff]
    %v151 = vld [vmem:[#allocation10 + $0x168] sm:$0xff]
    %v152 = vld [vmem:[#allocation10 + $0x170] sm:$0xff]
    %v153 = vld [vmem:[#allocation10 + $0x178] sm:$0xff]
    %v154 = vld [vmem:[#allocation10 + $0x180] sm:$0xff]
    %v155 = vld [vmem:[#allocation10 + $0x188] sm:$0xff]
    %v156 = vld [vmem:[#allocation10 + $0x190] sm:$0xff]
    %v157 = vld [vmem:[#allocation10 + $0x198] sm:$0xff]
    %v158 = vld [vmem:[#allocation10 + $0x1a0] sm:$0xff]
    %v159 = vld [vmem:[#allocation10 + $0x1a8] sm:$0xff]
    %v160 = vld [vmem:[#allocation10 + $0x1b0] sm:$0xff]
    %v161 = vld [vmem:[#allocation10 + $0x1b8] sm:$0xff]
    %v162 = vld [vmem:[#allocation10 + $0x1c0] sm:$0xff]
    %v163 = vld [vmem:[#allocation10 + $0x1c8] sm:$0xff]
    %v164 = vld [vmem:[#allocation10 + $0x1d0] sm:$0xff]
    %v165 = vld [vmem:[#allocation10 + $0x1d8] sm:$0xff]
    %v166 = vld [vmem:[#allocation10 + $0x1e0] sm:$0xff]
    %v167 = vld [vmem:[#allocation10 + $0x1e8] sm:$0xff]
    %v168 = vld [vmem:[#allocation10 + $0x1f0] sm:$0xff]
    %v169 = vld [vmem:[#allocation10 + $0x1f8] sm:$0xff]
    %v170 = vld [vmem:[#allocation7] sm:$0x3]
    %v171 = vld [vmem:[%s3] sm:$0x3]
    %v172 = vld [vmem:[#allocation8] sm:$0x3]
    %v173 = vld [vmem:[#allocation2] sm:$0xff]
    %v175 = vperm.slane %v170, 0
    %v176 = vperm.slane %v170, 1
    %vm179 = vcmask 326656
    %v181 = vsel %vm179, %v173, 0
    %183 = vmatpush.msra.mxu0 0.0
    %184 = vmatpush.msra.mxu0 0.0
    %185 = vmatpush.msra.mxu0 0.0
    %186 = vmatpush.msra.mxu0 0.0
    %187 = vmatpush.msra.mxu0 0.0
    %188 = vmatpush.msra.mxu0 0.0
    %189 = vmatpush.msra.mxu0 0.0
    %190 = vmatpush.msra.mxu0 0.0
    %191 = vmatpush.msra.mxu0 0.0
    %192 = vmatpush.msra.mxu0 0.0
    %193 = vmatpush.msra.mxu0 0.0
    %v194 = vand.u32 %v104, 4294901760
    %195 = vmatpush.msra.mxu0 %v194
    %v196 = vand.u32 %v102, 4294901760
    %197 = vmatpush.msra.mxu0 %v196
    %v198 = vand.u32 %v100, 4294901760
    %199 = vmatpush.msra.mxu0 %v198
    %v200 = vand.u32 %v98, 4294901760
    %201 = vmatpush.msra.mxu0 %v200
    %v202 = vand.u32 %v96, 4294901760
    %203 = vmatpush.msra.mxu0 %v202
    %v204 = vand.u32 %v181, 4294901760
    %v205 = vsub.f32 %v181, %v204
    %v206 = vand.u32 %v205, 4294901760
    %v207 = vsub.f32 %v205, %v206
    %v208 = vand.u32 %v207, 4294901760
    %209 = vmatmul.f32.gmra.mxu0 %v208
    %v210 = vpop.f32.mrf.mxu0
    %v211 = vadd.f32 %v175, %v210
    %212 = vdwg.mxu0
    %213 = vmatpush.msra.mxu0 0.0
    %214 = vmatpush.msra.mxu0 0.0
    %215 = vmatpush.msra.mxu0 0.0
    %216 = vmatpush.msra.mxu0 0.0
    %217 = vmatpush.msra.mxu0 0.0
    %218 = vmatpush.msra.mxu0 0.0
    %219 = vmatpush.msra.mxu0 0.0
    %220 = vmatpush.msra.mxu0 0.0
    %221 = vmatpush.msra.mxu0 0.0
    %222 = vmatpush.msra.mxu0 0.0
    %223 = vmatpush.msra.mxu0 0.0
    %v224 = vand.u32 %v104, 4294901760
    %v225 = vsub.f32 %v104, %v224
    %v226 = vand.u32 %v225, 4294901760
    %v227 = vsub.f32 %v225, %v226
    %v228 = vand.u32 %v227, 4294901760
    %229 = vmatpush.msra.mxu0 %v228
    %v230 = vand.u32 %v102, 4294901760
    %v231 = vsub.f32 %v102, %v230
    %v232 = vand.u32 %v231, 4294901760
    %v233 = vsub.f32 %v231, %v232
    %v234 = vand.u32 %v233, 4294901760
    %235 = vmatpush.msra.mxu0 %v234
    %v236 = vand.u32 %v100, 4294901760
    %v237 = vsub.f32 %v100, %v236
    %v238 = vand.u32 %v237, 4294901760
    %v239 = vsub.f32 %v237, %v238
    %v240 = vand.u32 %v239, 4294901760
    %241 = vmatpush.msra.mxu0 %v240
    %v242 = vand.u32 %v98, 4294901760
    %v243 = vsub.f32 %v98, %v242
    %v244 = vand.u32 %v243, 4294901760
    %v245 = vsub.f32 %v243, %v244
    %v246 = vand.u32 %v245, 4294901760
    %247 = vmatpush.msra.mxu0 %v246
    %v248 = vand.u32 %v96, 4294901760
    %v249 = vsub.f32 %v96, %v248
    %v250 = vand.u32 %v249, 4294901760
    %v251 = vsub.f32 %v249, %v250
    %v252 = vand.u32 %v251, 4294901760
    %253 = vmatpush.msra.mxu0 %v252
    %v254 = vand.u32 %v181, 4294901760
    %255 = vmatmul.f32.gmra.mxu0 %v254
    %v256 = vpop.f32.mrf.mxu0
    %v257 = vadd.f32 %v211, %v256
    %258 = vdwg.mxu0
    %259 = vmatpush.msra.mxu0 0.0
    %260 = vmatpush.msra.mxu0 0.0
    %261 = vmatpush.msra.mxu0 0.0
    %262 = vmatpush.msra.mxu0 0.0
    %263 = vmatpush.msra.mxu0 0.0
    %264 = vmatpush.msra.mxu0 0.0
    %265 = vmatpush.msra.mxu0 0.0
    %266 = vmatpush.msra.mxu0 0.0
    %267 = vmatpush.msra.mxu0 0.0
    %268 = vmatpush.msra.mxu0 0.0
    %269 = vmatpush.msra.mxu0 0.0
    %v270 = vand.u32 %v104, 4294901760
    %v271 = vsub.f32 %v104, %v270
    %272 = vmatpush.msra.mxu0 %v271
    %v273 = vand.u32 %v102, 4294901760
    %v274 = vsub.f32 %v102, %v273
    %275 = vmatpush.msra.mxu0 %v274
    %v276 = vand.u32 %v100, 4294901760
    %v277 = vsub.f32 %v100, %v276
    %278 = vmatpush.msra.mxu0 %v277
    %v279 = vand.u32 %v98, 4294901760
    %v280 = vsub.f32 %v98, %v279
    %281 = vmatpush.msra.mxu0 %v280
    %v282 = vand.u32 %v96, 4294901760
    %v283 = vsub.f32 %v96, %v282
    %284 = vmatpush.msra.mxu0 %v283
    %v285 = vand.u32 %v181, 4294901760
    %v286 = vsub.f32 %v181, %v285
    %287 = vmatmul.f32.gmra.mxu0 %v286
    %v288 = vpop.f32.mrf.mxu0
    %v289 = vadd.f32 %v257, %v288
    %290 = vdwg.mxu0
    %291 = vmatpush.msra.mxu0 0.0
    %292 = vmatpush.msra.mxu0 0.0
    %293 = vmatpush.msra.mxu0 0.0
    %294 = vmatpush.msra.mxu0 0.0
    %295 = vmatpush.msra.mxu0 0.0
    %296 = vmatpush.msra.mxu0 0.0
    %297 = vmatpush.msra.mxu0 0.0
    %298 = vmatpush.msra.mxu0 0.0
    %299 = vmatpush.msra.mxu0 0.0
    %300 = vmatpush.msra.mxu0 0.0
    %301 = vmatpush.msra.mxu0 0.0
    %v302 = vand.u32 %v104, 4294901760
    %303 = vmatpush.msra.mxu0 %v302
    %v304 = vand.u32 %v102, 4294901760
    %305 = vmatpush.msra.mxu0 %v304
    %v306 = vand.u32 %v100, 4294901760
    %307 = vmatpush.msra.mxu0 %v306
    %v308 = vand.u32 %v98, 4294901760
    %309 = vmatpush.msra.mxu0 %v308
    %v310 = vand.u32 %v96, 4294901760
    %311 = vmatpush.msra.mxu0 %v310
    %v312 = vand.u32 %v181, 4294901760
    %v313 = vsub.f32 %v181, %v312
    %v314 = vand.u32 %v313, 4294901760
    %315 = vmatmul.f32.gmra.mxu0 %v314
    %v316 = vpop.f32.mrf.mxu0
    %v317 = vadd.f32 %v289, %v316
    %318 = vdwg.mxu0
    %319 = vmatpush.msra.mxu0 0.0
    %320 = vmatpush.msra.mxu0 0.0
    %321 = vmatpush.msra.mxu0 0.0
    %322 = vmatpush.msra.mxu0 0.0
    %323 = vmatpush.msra.mxu0 0.0
    %324 = vmatpush.msra.mxu0 0.0
    %325 = vmatpush.msra.mxu0 0.0
    %326 = vmatpush.msra.mxu0 0.0
    %327 = vmatpush.msra.mxu0 0.0
    %328 = vmatpush.msra.mxu0 0.0
    %329 = vmatpush.msra.mxu0 0.0
    %v330 = vand.u32 %v104, 4294901760
    %v331 = vsub.f32 %v104, %v330
    %v332 = vand.u32 %v331, 4294901760
    %333 = vmatpush.msra.mxu0 %v332
    %v334 = vand.u32 %v102, 4294901760
    %v335 = vsub.f32 %v102, %v334
    %v336 = vand.u32 %v335, 4294901760
    %337 = vmatpush.msra.mxu0 %v336
    %v338 = vand.u32 %v100, 4294901760
    %v339 = vsub.f32 %v100, %v338
    %v340 = vand.u32 %v339, 4294901760
    %341 = vmatpush.msra.mxu0 %v340
    %v342 = vand.u32 %v98, 4294901760
    %v343 = vsub.f32 %v98, %v342
    %v344 = vand.u32 %v343, 4294901760
    %345 = vmatpush.msra.mxu0 %v344
    %v346 = vand.u32 %v96, 4294901760
    %v347 = vsub.f32 %v96, %v346
    %v348 = vand.u32 %v347, 4294901760
    %349 = vmatpush.msra.mxu0 %v348
    %v350 = vand.u32 %v181, 4294901760
    %351 = vmatmul.f32.gmra.mxu0 %v350
    %v352 = vpop.f32.mrf.mxu0
    %v353 = vadd.f32 %v317, %v352
    %354 = vdwg.mxu0
    %355 = vmatpush.msra.mxu0 0.0
    %356 = vmatpush.msra.mxu0 0.0
    %357 = vmatpush.msra.mxu0 0.0
    %358 = vmatpush.msra.mxu0 0.0
    %359 = vmatpush.msra.mxu0 0.0
    %360 = vmatpush.msra.mxu0 0.0
    %361 = vmatpush.msra.mxu0 0.0
    %362 = vmatpush.msra.mxu0 0.0
    %363 = vmatpush.msra.mxu0 0.0
    %364 = vmatpush.msra.mxu0 0.0
    %365 = vmatpush.msra.mxu0 0.0
    %v366 = vand.u32 %v104, 4294901760
    %367 = vmatpush.msra.mxu0 %v366
    %v368 = vand.u32 %v102, 4294901760
    %369 = vmatpush.msra.mxu0 %v368
    %v370 = vand.u32 %v100, 4294901760
    %371 = vmatpush.msra.mxu0 %v370
    %v372 = vand.u32 %v98, 4294901760
    %373 = vmatpush.msra.mxu0 %v372
    %v374 = vand.u32 %v96, 4294901760
    %375 = vmatpush.msra.mxu0 %v374
    %v376 = vand.u32 %v181, 4294901760
    %377 = vmatmul.f32.gmra.mxu0 %v376
    %v378 = vpop.f32.mrf.mxu0
    %v379 = vadd.f32 %v353, %v378
    %380 = vdwg.mxu0
    %381 = vmatpush.msra.mxu0 0.0
    %382 = vmatpush.msra.mxu0 0.0
    %383 = vmatpush.msra.mxu0 0.0
    %384 = vmatpush.msra.mxu0 0.0
    %385 = vmatpush.msra.mxu0 0.0
    %386 = vmatpush.msra.mxu0 0.0
    %387 = vmatpush.msra.mxu0 0.0
    %388 = vmatpush.msra.mxu0 0.0
    %389 = vmatpush.msra.mxu0 0.0
    %390 = vmatpush.msra.mxu0 0.0
    %391 = vmatpush.msra.mxu0 0.0
    %v392 = vand.u32 %v105, 4294901760
    %393 = vmatpush.msra.mxu0 %v392
    %v394 = vand.u32 %v103, 4294901760
    %395 = vmatpush.msra.mxu0 %v394
    %v396 = vand.u32 %v101, 4294901760
    %397 = vmatpush.msra.mxu0 %v396
    %v398 = vand.u32 %v99, 4294901760
    %399 = vmatpush.msra.mxu0 %v398
    %v400 = vand.u32 %v97, 4294901760
    %401 = vmatpush.msra.mxu0 %v400
    %v402 = vand.u32 %v181, 4294901760
    %v403 = vsub.f32 %v181, %v402
    %v404 = vand.u32 %v403, 4294901760
    %v405 = vsub.f32 %v403, %v404
    %v406 = vand.u32 %v405, 4294901760
    %407 = vmatmul.f32.gmra.mxu0 %v406
    %v408 = vpop.f32.mrf.mxu0
    %v409 = vadd.f32 %v176, %v408
    %410 = vdwg.mxu0
    %411 = vmatpush.msra.mxu0 0.0
    %412 = vmatpush.msra.mxu0 0.0
    %413 = vmatpush.msra.mxu0 0.0
    %414 = vmatpush.msra.mxu0 0.0
    %415 = vmatpush.msra.mxu0 0.0
    %416 = vmatpush.msra.mxu0 0.0
    %417 = vmatpush.msra.mxu0 0.0
    %418 = vmatpush.msra.mxu0 0.0
    %419 = vmatpush.msra.mxu0 0.0
    %420 = vmatpush.msra.mxu0 0.0
    %421 = vmatpush.msra.mxu0 0.0
    %v422 = vand.u32 %v105, 4294901760
    %v423 = vsub.f32 %v105, %v422
    %v424 = vand.u32 %v423, 4294901760
    %v425 = vsub.f32 %v423, %v424
    %v426 = vand.u32 %v425, 4294901760
    %427 = vmatpush.msra.mxu0 %v426
    %v428 = vand.u32 %v103, 4294901760
    %v429 = vsub.f32 %v103, %v428
    %v430 = vand.u32 %v429, 4294901760
    %v431 = vsub.f32 %v429, %v430
    %v432 = vand.u32 %v431, 4294901760
    %433 = vmatpush.msra.mxu0 %v432
    %v434 = vand.u32 %v101, 4294901760
    %v435 = vsub.f32 %v101, %v434
    %v436 = vand.u32 %v435, 4294901760
    %v437 = vsub.f32 %v435, %v436
    %v438 = vand.u32 %v437, 4294901760
    %439 = vmatpush.msra.mxu0 %v438
    %v440 = vand.u32 %v99, 4294901760
    %v441 = vsub.f32 %v99, %v440
    %v442 = vand.u32 %v441, 4294901760
    %v443 = vsub.f32 %v441, %v442
    %v444 = vand.u32 %v443, 4294901760
    %445 = vmatpush.msra.mxu0 %v444
    %v446 = vand.u32 %v97, 4294901760
    %v447 = vsub.f32 %v97, %v446
    %v448 = vand.u32 %v447, 4294901760
    %v449 = vsub.f32 %v447, %v448
    %v450 = vand.u32 %v449, 4294901760
    %451 = vmatpush.msra.mxu0 %v450
    %v452 = vand.u32 %v181, 4294901760
    %453 = vmatmul.f32.gmra.mxu0 %v452
    %v454 = vpop.f32.mrf.mxu0
    %v455 = vadd.f32 %v409, %v454
    %456 = vdwg.mxu0
    %457 = vmatpush.msra.mxu0 0.0
    %458 = vmatpush.msra.mxu0 0.0
    %459 = vmatpush.msra.mxu0 0.0
    %460 = vmatpush.msra.mxu0 0.0
    %461 = vmatpush.msra.mxu0 0.0
    %462 = vmatpush.msra.mxu0 0.0
    %463 = vmatpush.msra.mxu0 0.0
    %464 = vmatpush.msra.mxu0 0.0
    %465 = vmatpush.msra.mxu0 0.0
    %466 = vmatpush.msra.mxu0 0.0
    %467 = vmatpush.msra.mxu0 0.0
    %v468 = vand.u32 %v105, 4294901760
    %v469 = vsub.f32 %v105, %v468
    %470 = vmatpush.msra.mxu0 %v469
    %v471 = vand.u32 %v103, 4294901760
    %v472 = vsub.f32 %v103, %v471
    %473 = vmatpush.msra.mxu0 %v472
    %v474 = vand.u32 %v101, 4294901760
    %v475 = vsub.f32 %v101, %v474
    %476 = vmatpush.msra.mxu0 %v475
    %v477 = vand.u32 %v99, 4294901760
    %v478 = vsub.f32 %v99, %v477
    %479 = vmatpush.msra.mxu0 %v478
    %v480 = vand.u32 %v97, 4294901760
    %v481 = vsub.f32 %v97, %v480
    %482 = vmatpush.msra.mxu0 %v481
    %v483 = vand.u32 %v181, 4294901760
    %v484 = vsub.f32 %v181, %v483
    %485 = vmatmul.f32.gmra.mxu0 %v484
    %v486 = vpop.f32.mrf.mxu0
    %v487 = vadd.f32 %v455, %v486
    %488 = vdwg.mxu0
    %489 = vmatpush.msra.mxu0 0.0
    %490 = vmatpush.msra.mxu0 0.0
    %491 = vmatpush.msra.mxu0 0.0
    %492 = vmatpush.msra.mxu0 0.0
    %493 = vmatpush.msra.mxu0 0.0
    %494 = vmatpush.msra.mxu0 0.0
    %495 = vmatpush.msra.mxu0 0.0
    %496 = vmatpush.msra.mxu0 0.0
    %497 = vmatpush.msra.mxu0 0.0
    %498 = vmatpush.msra.mxu0 0.0
    %499 = vmatpush.msra.mxu0 0.0
    %v500 = vand.u32 %v105, 4294901760
    %501 = vmatpush.msra.mxu0 %v500
    %v502 = vand.u32 %v103, 4294901760
    %503 = vmatpush.msra.mxu0 %v502
    %v504 = vand.u32 %v101, 4294901760
    %505 = vmatpush.msra.mxu0 %v504
    %v506 = vand.u32 %v99, 4294901760
    %507 = vmatpush.msra.mxu0 %v506
    %v508 = vand.u32 %v97, 4294901760
    %509 = vmatpush.msra.mxu0 %v508
    %v510 = vand.u32 %v181, 4294901760
    %v511 = vsub.f32 %v181, %v510
    %v512 = vand.u32 %v511, 4294901760
    %513 = vmatmul.f32.gmra.mxu0 %v512
    %v514 = vpop.f32.mrf.mxu0
    %v515 = vadd.f32 %v487, %v514
    %516 = vdwg.mxu0
    %517 = vmatpush.msra.mxu0 0.0
    %518 = vmatpush.msra.mxu0 0.0
    %519 = vmatpush.msra.mxu0 0.0
    %520 = vmatpush.msra.mxu0 0.0
    %521 = vmatpush.msra.mxu0 0.0
    %522 = vmatpush.msra.mxu0 0.0
    %523 = vmatpush.msra.mxu0 0.0
    %524 = vmatpush.msra.mxu0 0.0
    %525 = vmatpush.msra.mxu0 0.0
    %526 = vmatpush.msra.mxu0 0.0
    %527 = vmatpush.msra.mxu0 0.0
    %v528 = vand.u32 %v105, 4294901760
    %v529 = vsub.f32 %v105, %v528
    %v530 = vand.u32 %v529, 4294901760
    %531 = vmatpush.msra.mxu0 %v530
    %v532 = vand.u32 %v103, 4294901760
    %v533 = vsub.f32 %v103, %v532
    %v534 = vand.u32 %v533, 4294901760
    %535 = vmatpush.msra.mxu0 %v534
    %v536 = vand.u32 %v101, 4294901760
    %v537 = vsub.f32 %v101, %v536
    %v538 = vand.u32 %v537, 4294901760
    %539 = vmatpush.msra.mxu0 %v538
    %v540 = vand.u32 %v99, 4294901760
    %v541 = vsub.f32 %v99, %v540
    %v542 = vand.u32 %v541, 4294901760
    %543 = vmatpush.msra.mxu0 %v542
    %v544 = vand.u32 %v97, 4294901760
    %v545 = vsub.f32 %v97, %v544
    %v546 = vand.u32 %v545, 4294901760
    %547 = vmatpush.msra.mxu0 %v546
    %v548 = vand.u32 %v181, 4294901760
    %549 = vmatmul.f32.gmra.mxu0 %v548
    %v550 = vpop.f32.mrf.mxu0
    %v551 = vadd.f32 %v515, %v550
    %552 = vdwg.mxu0
    %553 = vmatpush.msra.mxu0 0.0
    %554 = vmatpush.msra.mxu0 0.0
    %555 = vmatpush.msra.mxu0 0.0
    %556 = vmatpush.msra.mxu0 0.0
    %557 = vmatpush.msra.mxu0 0.0
    %558 = vmatpush.msra.mxu0 0.0
    %559 = vmatpush.msra.mxu0 0.0
    %560 = vmatpush.msra.mxu0 0.0
    %561 = vmatpush.msra.mxu0 0.0
    %562 = vmatpush.msra.mxu0 0.0
    %563 = vmatpush.msra.mxu0 0.0
    %v564 = vand.u32 %v105, 4294901760
    %565 = vmatpush.msra.mxu0 %v564
    %v566 = vand.u32 %v103, 4294901760
    %567 = vmatpush.msra.mxu0 %v566
    %v568 = vand.u32 %v101, 4294901760
    %569 = vmatpush.msra.mxu0 %v568
    %v570 = vand.u32 %v99, 4294901760
    %571 = vmatpush.msra.mxu0 %v570
    %v572 = vand.u32 %v97, 4294901760
    %573 = vmatpush.msra.mxu0 %v572
    %v574 = vand.u32 %v181, 4294901760
    %575 = vmatmul.f32.gmra.mxu0 %v574
    %v576 = vpop.f32.mrf.mxu0
    %v577 = vadd.f32 %v551, %v576
    %578 = vdwg.mxu0
    %v579 = vmul.f32 %v379, 0.5
    %v580 = vmul.f32 %v577, 0.5
    %v581 = vmul.f32 %v379, 0.70710677
    %v582 = vmul.f32 %v577, 0.70710677
    %v583 = vmul.f32 %v581, %v581
    %v584 = vmin.f32 16.0, %v583
    %v585 = vmul.f32 %v584, 2.1237322e-06
    %v586 = vadd.f32 %v585, 0.00028619796
    %v587 = vmul.f32 %v584, %v586
    %v588 = vadd.f32 %v587, 0.0036580483
    %v589 = vmul.f32 %v584, %v588
    %v590 = vadd.f32 %v589, 0.05243302
    %v591 = vmul.f32 %v584, %v590
    %v592 = vadd.f32 %v591, 0.18741608
    %v593 = vmul.f32 %v584, %v592
    %v594 = vadd.f32 %v593, 1.1283791
    %v595 = vmul.f32 %v581, %v594
    %v596 = vmul.f32 %v584, 3.8918573e-05
    %v597 = vadd.f32 %v596, 0.001143296
    %v598 = vmul.f32 %v584, %v597
    %v599 = vadd.f32 %v598, 0.014752088
    %v600 = vmul.f32 %v584, %v599
    %v601 = vadd.f32 %v600, 0.112945676
    %v602 = vmul.f32 %v584, %v601
    %v603 = vadd.f32 %v602, 0.4994258
    %v604 = vmul.f32 %v584, %v603
    %v605 = vadd.f32 %v604, 1.0
    %v606 = vrcp.pop %v605
    %v607 = vmul.f32 %v605, %v606
    %v608 = vsub.f32 1.0, %v607
    %v609 = vmul.f32 %v606, %v608
    %v610 = vadd.f32 %v606, %v609
    %vm611 = vweird.f32 %v605
    %vm612 = vweird.f32 %v606
    %vm613 = vmor %vm611, %vm612
    %v614 = vsel %vm613, %v606, %v610
    %v615 = vand.u32 2147483647, %v605
    %vm616 = vcmp.eq.f32.partialorder %v615, 8.507059e+37
    %v617 = vand.u32 %v605, 2147483648
    %v618 = vor.u32 1.1754944e-38, %v617
    %v619 = vsel %vm616, %v618, %v614
    %v620 = vmul.f32 %v595, %v619
    %v621 = vmin.f32 %v620, 1.0
    %v622 = vmax.f32 %v621, -1.0
    %v623 = vmul.f32 %v582, %v582
    %v624 = vmin.f32 16.0, %v623
    %v625 = vmul.f32 %v624, 2.1237322e-06
    %v626 = vadd.f32 %v625, 0.00028619796
    %v627 = vmul.f32 %v624, %v626
    %v628 = vadd.f32 %v627, 0.0036580483
    %v629 = vmul.f32 %v624, %v628
    %v630 = vadd.f32 %v629, 0.05243302
    %v631 = vmul.f32 %v624, %v630
    %v632 = vadd.f32 %v631, 0.18741608
    %v633 = vmul.f32 %v624, %v632
    %v634 = vadd.f32 %v633, 1.1283791
    %v635 = vmul.f32 %v582, %v634
    %v636 = vmul.f32 %v624, 3.8918573e-05
    %v637 = vadd.f32 %v636, 0.001143296
    %v638 = vmul.f32 %v624, %v637
    %v639 = vadd.f32 %v638, 0.014752088
    %v640 = vmul.f32 %v624, %v639
    %v641 = vadd.f32 %v640, 0.112945676
    %v642 = vmul.f32 %v624, %v641
    %v643 = vadd.f32 %v642, 0.4994258
    %v644 = vmul.f32 %v624, %v643
    %v645 = vadd.f32 %v644, 1.0
    %v646 = vrcp.pop %v645
    %v647 = vmul.f32 %v645, %v646
    %v648 = vsub.f32 1.0, %v647
    %v649 = vmul.f32 %v646, %v648
    %v650 = vadd.f32 %v646, %v649
    %vm651 = vweird.f32 %v645
    %vm652 = vweird.f32 %v646
    %vm653 = vmor %vm651, %vm652
    %v654 = vsel %vm653, %v646, %v650
    %v655 = vand.u32 2147483647, %v645
    %vm656 = vcmp.eq.f32.partialorder %v655, 8.507059e+37
    %v657 = vand.u32 %v645, 2147483648
    %v658 = vor.u32 1.1754944e-38, %v657
    %v659 = vsel %vm656, %v658, %v654
    %v660 = vmul.f32 %v635, %v659
    %v661 = vmin.f32 %v660, 1.0
    %v662 = vmax.f32 %v661, -1.0
    %v663 = vadd.f32 %v622, 1.0
    %v664 = vadd.f32 %v662, 1.0
    %v665 = vmul.f32 %v579, %v663
    %v666 = vmul.f32 %v580, %v664
    %v667 = vand.u32 %v136, 4294901760
    %668 = vmatpush.msra.mxu0 %v667
    %v669 = vand.u32 %v134, 4294901760
    %670 = vmatpush.msra.mxu0 %v669
    %v671 = vand.u32 %v132, 4294901760
    %672 = vmatpush.msra.mxu0 %v671
    %v673 = vand.u32 %v130, 4294901760
    %674 = vmatpush.msra.mxu0 %v673
    %v675 = vand.u32 %v128, 4294901760
    %676 = vmatpush.msra.mxu0 %v675
    %v677 = vand.u32 %v126, 4294901760
    %678 = vmatpush.msra.mxu0 %v677
    %v679 = vand.u32 %v124, 4294901760
    %680 = vmatpush.msra.mxu0 %v679
    %v681 = vand.u32 %v122, 4294901760
    %682 = vmatpush.msra.mxu0 %v681
    %v683 = vand.u32 %v120, 4294901760
    %684 = vmatpush.msra.mxu0 %v683
    %v685 = vand.u32 %v118, 4294901760
    %686 = vmatpush.msra.mxu0 %v685
    %v687 = vand.u32 %v116, 4294901760
    %688 = vmatpush.msra.mxu0 %v687
    %v689 = vand.u32 %v114, 4294901760
    %690 = vmatpush.msra.mxu0 %v689
    %v691 = vand.u32 %v112, 4294901760
    %692 = vmatpush.msra.mxu0 %v691
    %v693 = vand.u32 %v110, 4294901760
    %694 = vmatpush.msra.mxu0 %v693
    %v695 = vand.u32 %v108, 4294901760
    %696 = vmatpush.msra.mxu0 %v695
    %v697 = vand.u32 %v106, 4294901760
    %698 = vmatpush.msra.mxu0 %v697
    %v699 = vand.u32 %v665, 4294901760
    %v700 = vsub.f32 %v665, %v699
    %v701 = vand.u32 %v700, 4294901760
    %v702 = vsub.f32 %v700, %v701
    %v703 = vand.u32 %v702, 4294901760
    %704 = vmatmul.f32.gmra.mxu0 %v703
    %v705 = vpop.f32.mrf.mxu0
    %v706 = vadd.f32 0.0, %v705
    %707 = vdwg.mxu0
    %v708 = vand.u32 %v136, 4294901760
    %v709 = vsub.f32 %v136, %v708
    %v710 = vand.u32 %v709, 4294901760
    %v711 = vsub.f32 %v709, %v710
    %v712 = vand.u32 %v711, 4294901760
    %713 = vmatpush.msra.mxu0 %v712
    %v714 = vand.u32 %v134, 4294901760
    %v715 = vsub.f32 %v134, %v714
    %v716 = vand.u32 %v715, 4294901760
    %v717 = vsub.f32 %v715, %v716
    %v718 = vand.u32 %v717, 4294901760
    %719 = vmatpush.msra.mxu0 %v718
    %v720 = vand.u32 %v132, 4294901760
    %v721 = vsub.f32 %v132, %v720
    %v722 = vand.u32 %v721, 4294901760
    %v723 = vsub.f32 %v721, %v722
    %v724 = vand.u32 %v723, 4294901760
    %725 = vmatpush.msra.mxu0 %v724
    %v726 = vand.u32 %v130, 4294901760
    %v727 = vsub.f32 %v130, %v726
    %v728 = vand.u32 %v727, 4294901760
    %v729 = vsub.f32 %v727, %v728
    %v730 = vand.u32 %v729, 4294901760
    %731 = vmatpush.msra.mxu0 %v730
    %v732 = vand.u32 %v128, 4294901760
    %v733 = vsub.f32 %v128, %v732
    %v734 = vand.u32 %v733, 4294901760
    %v735 = vsub.f32 %v733, %v734
    %v736 = vand.u32 %v735, 4294901760
    %737 = vmatpush.msra.mxu0 %v736
    %v738 = vand.u32 %v126, 4294901760
    %v739 = vsub.f32 %v126, %v738
    %v740 = vand.u32 %v739, 4294901760
    %v741 = vsub.f32 %v739, %v740
    %v742 = vand.u32 %v741, 4294901760
    %743 = vmatpush.msra.mxu0 %v742
    %v744 = vand.u32 %v124, 4294901760
    %v745 = vsub.f32 %v124, %v744
    %v746 = vand.u32 %v745, 4294901760
    %v747 = vsub.f32 %v745, %v746
    %v748 = vand.u32 %v747, 4294901760
    %749 = vmatpush.msra.mxu0 %v748
    %v750 = vand.u32 %v122, 4294901760
    %v751 = vsub.f32 %v122, %v750
    %v752 = vand.u32 %v751, 4294901760
    %v753 = vsub.f32 %v751, %v752
    %v754 = vand.u32 %v753, 4294901760
    %755 = vmatpush.msra.mxu0 %v754
    %v756 = vand.u32 %v120, 4294901760
    %v757 = vsub.f32 %v120, %v756
    %v758 = vand.u32 %v757, 4294901760
    %v759 = vsub.f32 %v757, %v758
    %v760 = vand.u32 %v759, 4294901760
    %761 = vmatpush.msra.mxu0 %v760
    %v762 = vand.u32 %v118, 4294901760
    %v763 = vsub.f32 %v118, %v762
    %v764 = vand.u32 %v763, 4294901760
    %v765 = vsub.f32 %v763, %v764
    %v766 = vand.u32 %v765, 4294901760
    %767 = vmatpush.msra.mxu0 %v766
    %v768 = vand.u32 %v116, 4294901760
    %v769 = vsub.f32 %v116, %v768
    %v770 = vand.u32 %v769, 4294901760
    %v771 = vsub.f32 %v769, %v770
    %v772 = vand.u32 %v771, 4294901760
    %773 = vmatpush.msra.mxu0 %v772
    %v774 = vand.u32 %v114, 4294901760
    %v775 = vsub.f32 %v114, %v774
    %v776 = vand.u32 %v775, 4294901760
    %v777 = vsub.f32 %v775, %v776
    %v778 = vand.u32 %v777, 4294901760
    %779 = vmatpush.msra.mxu0 %v778
    %v780 = vand.u32 %v112, 4294901760
    %v781 = vsub.f32 %v112, %v780
    %v782 = vand.u32 %v781, 4294901760
    %v783 = vsub.f32 %v781, %v782
    %v784 = vand.u32 %v783, 4294901760
    %785 = vmatpush.msra.mxu0 %v784
    %v786 = vand.u32 %v110, 4294901760
    %v787 = vsub.f32 %v110, %v786
    %v788 = vand.u32 %v787, 4294901760
    %v789 = vsub.f32 %v787, %v788
    %v790 = vand.u32 %v789, 4294901760
    %791 = vmatpush.msra.mxu0 %v790
    %v792 = vand.u32 %v108, 4294901760
    %v793 = vsub.f32 %v108, %v792
    %v794 = vand.u32 %v793, 4294901760
    %v795 = vsub.f32 %v793, %v794
    %v796 = vand.u32 %v795, 4294901760
    %797 = vmatpush.msra.mxu0 %v796
    %v798 = vand.u32 %v106, 4294901760
    %v799 = vsub.f32 %v106, %v798
    %v800 = vand.u32 %v799, 4294901760
    %v801 = vsub.f32 %v799, %v800
    %v802 = vand.u32 %v801, 4294901760
    %803 = vmatpush.msra.mxu0 %v802
    %v804 = vand.u32 %v665, 4294901760
    %805 = vmatmul.f32.gmra.mxu0 %v804
    %v806 = vpop.f32.mrf.mxu0
    %v807 = vadd.f32 %v706, %v806
    %808 = vdwg.mxu0
    %v809 = vand.u32 %v136, 4294901760
    %v810 = vsub.f32 %v136, %v809
    %811 = vmatpush.msra.mxu0 %v810
    %v812 = vand.u32 %v134, 4294901760
    %v813 = vsub.f32 %v134, %v812
    %814 = vmatpush.msra.mxu0 %v813
    %v815 = vand.u32 %v132, 4294901760
    %v816 = vsub.f32 %v132, %v815
    %817 = vmatpush.msra.mxu0 %v816
    %v818 = vand.u32 %v130, 4294901760
    %v819 = vsub.f32 %v130, %v818
    %820 = vmatpush.msra.mxu0 %v819
    %v821 = vand.u32 %v128, 4294901760
    %v822 = vsub.f32 %v128, %v821
    %823 = vmatpush.msra.mxu0 %v822
    %v824 = vand.u32 %v126, 4294901760
    %v825 = vsub.f32 %v126, %v824
    %826 = vmatpush.msra.mxu0 %v825
    %v827 = vand.u32 %v124, 4294901760
    %v828 = vsub.f32 %v124, %v827
    %829 = vmatpush.msra.mxu0 %v828
    %v830 = vand.u32 %v122, 4294901760
    %v831 = vsub.f32 %v122, %v830
    %832 = vmatpush.msra.mxu0 %v831
    %v833 = vand.u32 %v120, 4294901760
    %v834 = vsub.f32 %v120, %v833
    %835 = vmatpush.msra.mxu0 %v834
    %v836 = vand.u32 %v118, 4294901760
    %v837 = vsub.f32 %v118, %v836
    %838 = vmatpush.msra.mxu0 %v837
    %v839 = vand.u32 %v116, 4294901760
    %v840 = vsub.f32 %v116, %v839
    %841 = vmatpush.msra.mxu0 %v840
    %v842 = vand.u32 %v114, 4294901760
    %v843 = vsub.f32 %v114, %v842
    %844 = vmatpush.msra.mxu0 %v843
    %v845 = vand.u32 %v112, 4294901760
    %v846 = vsub.f32 %v112, %v845
    %847 = vmatpush.msra.mxu0 %v846
    %v848 = vand.u32 %v110, 4294901760
    %v849 = vsub.f32 %v110, %v848
    %850 = vmatpush.msra.mxu0 %v849
    %v851 = vand.u32 %v108, 4294901760
    %v852 = vsub.f32 %v108, %v851
    %853 = vmatpush.msra.mxu0 %v852
    %v854 = vand.u32 %v106, 4294901760
    %v855 = vsub.f32 %v106, %v854
    %856 = vmatpush.msra.mxu0 %v855
    %v857 = vand.u32 %v665, 4294901760
    %v858 = vsub.f32 %v665, %v857
    %859 = vmatmul.f32.gmra.mxu0 %v858
    %v860 = vpop.f32.mrf.mxu0
    %v861 = vadd.f32 %v807, %v860
    %862 = vdwg.mxu0
    %v863 = vand.u32 %v136, 4294901760
    %864 = vmatpush.msra.mxu0 %v863
    %v865 = vand.u32 %v134, 4294901760
    %866 = vmatpush.msra.mxu0 %v865
    %v867 = vand.u32 %v132, 4294901760
    %868 = vmatpush.msra.mxu0 %v867
    %v869 = vand.u32 %v130, 4294901760
    %870 = vmatpush.msra.mxu0 %v869
    %v871 = vand.u32 %v128, 4294901760
    %872 = vmatpush.msra.mxu0 %v871
    %v873 = vand.u32 %v126, 4294901760
    %874 = vmatpush.msra.mxu0 %v873
    %v875 = vand.u32 %v124, 4294901760
    %876 = vmatpush.msra.mxu0 %v875
    %v877 = vand.u32 %v122, 4294901760
    %878 = vmatpush.msra.mxu0 %v877
    %v879 = vand.u32 %v120, 4294901760
    %880 = vmatpush.msra.mxu0 %v879
    %v881 = vand.u32 %v118, 4294901760
    %882 = vmatpush.msra.mxu0 %v881
    %v883 = vand.u32 %v116, 4294901760
    %884 = vmatpush.msra.mxu0 %v883
    %v885 = vand.u32 %v114, 4294901760
    %886 = vmatpush.msra.mxu0 %v885
    %v887 = vand.u32 %v112, 4294901760
    %888 = vmatpush.msra.mxu0 %v887
    %v889 = vand.u32 %v110, 4294901760
    %890 = vmatpush.msra.mxu0 %v889
    %v891 = vand.u32 %v108, 4294901760
    %892 = vmatpush.msra.mxu0 %v891
    %v893 = vand.u32 %v106, 4294901760
    %894 = vmatpush.msra.mxu0 %v893
    %v895 = vand.u32 %v665, 4294901760
    %v896 = vsub.f32 %v665, %v895
    %v897 = vand.u32 %v896, 4294901760
    %898 = vmatmul.f32.gmra.mxu0 %v897
    %v899 = vpop.f32.mrf.mxu0
    %v900 = vadd.f32 %v861, %v899
    %901 = vdwg.mxu0
    %v902 = vand.u32 %v136, 4294901760
    %v903 = vsub.f32 %v136, %v902
    %v904 = vand.u32 %v903, 4294901760
    %905 = vmatpush.msra.mxu0 %v904
    %v906 = vand.u32 %v134, 4294901760
    %v907 = vsub.f32 %v134, %v906
    %v908 = vand.u32 %v907, 4294901760
    %909 = vmatpush.msra.mxu0 %v908
    %v910 = vand.u32 %v132, 4294901760
    %v911 = vsub.f32 %v132, %v910
    %v912 = vand.u32 %v911, 4294901760
    %913 = vmatpush.msra.mxu0 %v912
    %v914 = vand.u32 %v130, 4294901760
    %v915 = vsub.f32 %v130, %v914
    %v916 = vand.u32 %v915, 4294901760
    %917 = vmatpush.msra.mxu0 %v916
    %v918 = vand.u32 %v128, 4294901760
    %v919 = vsub.f32 %v128, %v918
    %v920 = vand.u32 %v919, 4294901760
    %921 = vmatpush.msra.mxu0 %v920
    %v922 = vand.u32 %v126, 4294901760
    %v923 = vsub.f32 %v126, %v922
    %v924 = vand.u32 %v923, 4294901760
    %925 = vmatpush.msra.mxu0 %v924
    %v926 = vand.u32 %v124, 4294901760
    %v927 = vsub.f32 %v124, %v926
    %v928 = vand.u32 %v927, 4294901760
    %929 = vmatpush.msra.mxu0 %v928
    %v930 = vand.u32 %v122, 4294901760
    %v931 = vsub.f32 %v122, %v930
    %v932 = vand.u32 %v931, 4294901760
    %933 = vmatpush.msra.mxu0 %v932
    %v934 = vand.u32 %v120, 4294901760
    %v935 = vsub.f32 %v120, %v934
    %v936 = vand.u32 %v935, 4294901760
    %937 = vmatpush.msra.mxu0 %v936
    %v938 = vand.u32 %v118, 4294901760
    %v939 = vsub.f32 %v118, %v938
    %v940 = vand.u32 %v939, 4294901760
    %941 = vmatpush.msra.mxu0 %v940
    %v942 = vand.u32 %v116, 4294901760
    %v943 = vsub.f32 %v116, %v942
    %v944 = vand.u32 %v943, 4294901760
    %945 = vmatpush.msra.mxu0 %v944
    %v946 = vand.u32 %v114, 4294901760
    %v947 = vsub.f32 %v114, %v946
    %v948 = vand.u32 %v947, 4294901760
    %949 = vmatpush.msra.mxu0 %v948
    %v950 = vand.u32 %v112, 4294901760
    %v951 = vsub.f32 %v112, %v950
    %v952 = vand.u32 %v951, 4294901760
    %953 = vmatpush.msra.mxu0 %v952
    %v954 = vand.u32 %v110, 4294901760
    %v955 = vsub.f32 %v110, %v954
    %v956 = vand.u32 %v955, 4294901760
    %957 = vmatpush.msra.mxu0 %v956
    %v958 = vand.u32 %v108, 4294901760
    %v959 = vsub.f32 %v108, %v958
    %v960 = vand.u32 %v959, 4294901760
    %961 = vmatpush.msra.mxu0 %v960
    %v962 = vand.u32 %v106, 4294901760
    %v963 = vsub.f32 %v106, %v962
    %v964 = vand.u32 %v963, 4294901760
    %965 = vmatpush.msra.mxu0 %v964
    %v966 = vand.u32 %v665, 4294901760
    %967 = vmatmul.f32.gmra.mxu0 %v966
    %v968 = vpop.f32.mrf.mxu0
    %v969 = vadd.f32 %v900, %v968
    %970 = vdwg.mxu0
    %v971 = vand.u32 %v136, 4294901760
    %972 = vmatpush.msra.mxu0 %v971
    %v973 = vand.u32 %v134, 4294901760
    %974 = vmatpush.msra.mxu0 %v973
    %v975 = vand.u32 %v132, 4294901760
    %976 = vmatpush.msra.mxu0 %v975
    %v977 = vand.u32 %v130, 4294901760
    %978 = vmatpush.msra.mxu0 %v977
    %v979 = vand.u32 %v128, 4294901760
    %980 = vmatpush.msra.mxu0 %v979
    %v981 = vand.u32 %v126, 4294901760
    %982 = vmatpush.msra.mxu0 %v981
    %v983 = vand.u32 %v124, 4294901760
    %984 = vmatpush.msra.mxu0 %v983
    %v985 = vand.u32 %v122, 4294901760
    %986 = vmatpush.msra.mxu0 %v985
    %v987 = vand.u32 %v120, 4294901760
    %988 = vmatpush.msra.mxu0 %v987
    %v989 = vand.u32 %v118, 4294901760
    %990 = vmatpush.msra.mxu0 %v989
    %v991 = vand.u32 %v116, 4294901760
    %992 = vmatpush.msra.mxu0 %v991
    %v993 = vand.u32 %v114, 4294901760
    %994 = vmatpush.msra.mxu0 %v993
    %v995 = vand.u32 %v112, 4294901760
    %996 = vmatpush.msra.mxu0 %v995
    %v997 = vand.u32 %v110, 4294901760
    %998 = vmatpush.msra.mxu0 %v997
    %v999 = vand.u32 %v108, 4294901760
    %1000 = vmatpush.msra.mxu0 %v999
    %v1001 = vand.u32 %v106, 4294901760
    %1002 = vmatpush.msra.mxu0 %v1001
    %v1003 = vand.u32 %v665, 4294901760
    %1004 = vmatmul.f32.gmra.mxu0 %v1003
    %v1005 = vpop.f32.mrf.mxu0
    %v1006 = vadd.f32 %v969, %v1005
    %1007 = vdwg.mxu0
    %v1008 = vand.u32 %v168, 4294901760
    %1009 = vmatpush.msra.mxu0 %v1008
    %v1010 = vand.u32 %v166, 4294901760
    %1011 = vmatpush.msra.mxu0 %v1010
    %v1012 = vand.u32 %v164, 4294901760
    %1013 = vmatpush.msra.mxu0 %v1012
    %v1014 = vand.u32 %v162, 4294901760
    %1015 = vmatpush.msra.mxu0 %v1014
    %v1016 = vand.u32 %v160, 4294901760
    %1017 = vmatpush.msra.mxu0 %v1016
    %v1018 = vand.u32 %v158, 4294901760
    %1019 = vmatpush.msra.mxu0 %v1018
    %v1020 = vand.u32 %v156, 4294901760
    %1021 = vmatpush.msra.mxu0 %v1020
    %v1022 = vand.u32 %v154, 4294901760
    %1023 = vmatpush.msra.mxu0 %v1022
    %v1024 = vand.u32 %v152, 4294901760
    %1025 = vmatpush.msra.mxu0 %v1024
    %v1026 = vand.u32 %v150, 4294901760
    %1027 = vmatpush.msra.mxu0 %v1026
    %v1028 = vand.u32 %v148, 4294901760
    %1029 = vmatpush.msra.mxu0 %v1028
    %v1030 = vand.u32 %v146, 4294901760
    %1031 = vmatpush.msra.mxu0 %v1030
    %v1032 = vand.u32 %v144, 4294901760
    %1033 = vmatpush.msra.mxu0 %v1032
    %v1034 = vand.u32 %v142, 4294901760
    %1035 = vmatpush.msra.mxu0 %v1034
    %v1036 = vand.u32 %v140, 4294901760
    %1037 = vmatpush.msra.mxu0 %v1036
    %v1038 = vand.u32 %v138, 4294901760
    %1039 = vmatpush.msra.mxu0 %v1038
    %v1040 = vand.u32 %v666, 4294901760
    %v1041 = vsub.f32 %v666, %v1040
    %v1042 = vand.u32 %v1041, 4294901760
    %v1043 = vsub.f32 %v1041, %v1042
    %v1044 = vand.u32 %v1043, 4294901760
    %1045 = vmatmul.f32.gmra.mxu0 %v1044
    %v1046 = vpop.f32.mrf.mxu0
    %v1047 = vadd.f32 %v1006, %v1046
    %1048 = vdwg.mxu0
    %v1049 = vand.u32 %v168, 4294901760
    %v1050 = vsub.f32 %v168, %v1049
    %v1051 = vand.u32 %v1050, 4294901760
    %v1052 = vsub.f32 %v1050, %v1051
    %v1053 = vand.u32 %v1052, 4294901760
    %1054 = vmatpush.msra.mxu0 %v1053
    %v1055 = vand.u32 %v166, 4294901760
    %v1056 = vsub.f32 %v166, %v1055
    %v1057 = vand.u32 %v1056, 4294901760
    %v1058 = vsub.f32 %v1056, %v1057
    %v1059 = vand.u32 %v1058, 4294901760
    %1060 = vmatpush.msra.mxu0 %v1059
    %v1061 = vand.u32 %v164, 4294901760
    %v1062 = vsub.f32 %v164, %v1061
    %v1063 = vand.u32 %v1062, 4294901760
    %v1064 = vsub.f32 %v1062, %v1063
    %v1065 = vand.u32 %v1064, 4294901760
    %1066 = vmatpush.msra.mxu0 %v1065
    %v1067 = vand.u32 %v162, 4294901760
    %v1068 = vsub.f32 %v162, %v1067
    %v1069 = vand.u32 %v1068, 4294901760
    %v1070 = vsub.f32 %v1068, %v1069
    %v1071 = vand.u32 %v1070, 4294901760
    %1072 = vmatpush.msra.mxu0 %v1071
    %v1073 = vand.u32 %v160, 4294901760
    %v1074 = vsub.f32 %v160, %v1073
    %v1075 = vand.u32 %v1074, 4294901760
    %v1076 = vsub.f32 %v1074, %v1075
    %v1077 = vand.u32 %v1076, 4294901760
    %1078 = vmatpush.msra.mxu0 %v1077
    %v1079 = vand.u32 %v158, 4294901760
    %v1080 = vsub.f32 %v158, %v1079
    %v1081 = vand.u32 %v1080, 4294901760
    %v1082 = vsub.f32 %v1080, %v1081
    %v1083 = vand.u32 %v1082, 4294901760
    %1084 = vmatpush.msra.mxu0 %v1083
    %v1085 = vand.u32 %v156, 4294901760
    %v1086 = vsub.f32 %v156, %v1085
    %v1087 = vand.u32 %v1086, 4294901760
    %v1088 = vsub.f32 %v1086, %v1087
    %v1089 = vand.u32 %v1088, 4294901760
    %1090 = vmatpush.msra.mxu0 %v1089
    %v1091 = vand.u32 %v154, 4294901760
    %v1092 = vsub.f32 %v154, %v1091
    %v1093 = vand.u32 %v1092, 4294901760
    %v1094 = vsub.f32 %v1092, %v1093
    %v1095 = vand.u32 %v1094, 4294901760
    %1096 = vmatpush.msra.mxu0 %v1095
    %v1097 = vand.u32 %v152, 4294901760
    %v1098 = vsub.f32 %v152, %v1097
    %v1099 = vand.u32 %v1098, 4294901760
    %v1100 = vsub.f32 %v1098, %v1099
    %v1101 = vand.u32 %v1100, 4294901760
    %1102 = vmatpush.msra.mxu0 %v1101
    %v1103 = vand.u32 %v150, 4294901760
    %v1104 = vsub.f32 %v150, %v1103
    %v1105 = vand.u32 %v1104, 4294901760
    %v1106 = vsub.f32 %v1104, %v1105
    %v1107 = vand.u32 %v1106, 4294901760
    %1108 = vmatpush.msra.mxu0 %v1107
    %v1109 = vand.u32 %v148, 4294901760
    %v1110 = vsub.f32 %v148, %v1109
    %v1111 = vand.u32 %v1110, 4294901760
    %v1112 = vsub.f32 %v1110, %v1111
    %v1113 = vand.u32 %v1112, 4294901760
    %1114 = vmatpush.msra.mxu0 %v1113
    %v1115 = vand.u32 %v146, 4294901760
    %v1116 = vsub.f32 %v146, %v1115
    %v1117 = vand.u32 %v1116, 4294901760
    %v1118 = vsub.f32 %v1116, %v1117
    %v1119 = vand.u32 %v1118, 4294901760
    %1120 = vmatpush.msra.mxu0 %v1119
    %v1121 = vand.u32 %v144, 4294901760
    %v1122 = vsub.f32 %v144, %v1121
    %v1123 = vand.u32 %v1122, 4294901760
    %v1124 = vsub.f32 %v1122, %v1123
    %v1125 = vand.u32 %v1124, 4294901760
    %1126 = vmatpush.msra.mxu0 %v1125
    %v1127 = vand.u32 %v142, 4294901760
    %v1128 = vsub.f32 %v142, %v1127
    %v1129 = vand.u32 %v1128, 4294901760
    %v1130 = vsub.f32 %v1128, %v1129
    %v1131 = vand.u32 %v1130, 4294901760
    %1132 = vmatpush.msra.mxu0 %v1131
    %v1133 = vand.u32 %v140, 4294901760
    %v1134 = vsub.f32 %v140, %v1133
    %v1135 = vand.u32 %v1134, 4294901760
    %v1136 = vsub.f32 %v1134, %v1135
    %v1137 = vand.u32 %v1136, 4294901760
    %1138 = vmatpush.msra.mxu0 %v1137
    %v1139 = vand.u32 %v138, 4294901760
    %v1140 = vsub.f32 %v138, %v1139
    %v1141 = vand.u32 %v1140, 4294901760
    %v1142 = vsub.f32 %v1140, %v1141
    %v1143 = vand.u32 %v1142, 4294901760
    %1144 = vmatpush.msra.mxu0 %v1143
    %v1145 = vand.u32 %v666, 4294901760
    %1146 = vmatmul.f32.gmra.mxu0 %v1145
    %v1147 = vpop.f32.mrf.mxu0
    %v1148 = vadd.f32 %v1047, %v1147
    %1149 = vdwg.mxu0
    %v1150 = vand.u32 %v168, 4294901760
    %v1151 = vsub.f32 %v168, %v1150
    %1152 = vmatpush.msra.mxu0 %v1151
    %v1153 = vand.u32 %v166, 4294901760
    %v1154 = vsub.f32 %v166, %v1153
    %1155 = vmatpush.msra.mxu0 %v1154
    %v1156 = vand.u32 %v164, 4294901760
    %v1157 = vsub.f32 %v164, %v1156
    %1158 = vmatpush.msra.mxu0 %v1157
    %v1159 = vand.u32 %v162, 4294901760
    %v1160 = vsub.f32 %v162, %v1159
    %1161 = vmatpush.msra.mxu0 %v1160
    %v1162 = vand.u32 %v160, 4294901760
    %v1163 = vsub.f32 %v160, %v1162
    %1164 = vmatpush.msra.mxu0 %v1163
    %v1165 = vand.u32 %v158, 4294901760
    %v1166 = vsub.f32 %v158, %v1165
    %1167 = vmatpush.msra.mxu0 %v1166
    %v1168 = vand.u32 %v156, 4294901760
    %v1169 = vsub.f32 %v156, %v1168
    %1170 = vmatpush.msra.mxu0 %v1169
    %v1171 = vand.u32 %v154, 4294901760
    %v1172 = vsub.f32 %v154, %v1171
    %1173 = vmatpush.msra.mxu0 %v1172
    %v1174 = vand.u32 %v152, 4294901760
    %v1175 = vsub.f32 %v152, %v1174
    %1176 = vmatpush.msra.mxu0 %v1175
    %v1177 = vand.u32 %v150, 4294901760
    %v1178 = vsub.f32 %v150, %v1177
    %1179 = vmatpush.msra.mxu0 %v1178
    %v1180 = vand.u32 %v148, 4294901760
    %v1181 = vsub.f32 %v148, %v1180
    %1182 = vmatpush.msra.mxu0 %v1181
    %v1183 = vand.u32 %v146, 4294901760
    %v1184 = vsub.f32 %v146, %v1183
    %1185 = vmatpush.msra.mxu0 %v1184
    %v1186 = vand.u32 %v144, 4294901760
    %v1187 = vsub.f32 %v144, %v1186
    %1188 = vmatpush.msra.mxu0 %v1187
    %v1189 = vand.u32 %v142, 4294901760
    %v1190 = vsub.f32 %v142, %v1189
    %1191 = vmatpush.msra.mxu0 %v1190
    %v1192 = vand.u32 %v140, 4294901760
    %v1193 = vsub.f32 %v140, %v1192
    %1194 = vmatpush.msra.mxu0 %v1193
    %v1195 = vand.u32 %v138, 4294901760
    %v1196 = vsub.f32 %v138, %v1195
    %1197 = vmatpush.msra.mxu0 %v1196
    %v1198 = vand.u32 %v666, 4294901760
    %v1199 = vsub.f32 %v666, %v1198
    %1200 = vmatmul.f32.gmra.mxu0 %v1199
    %v1201 = vpop.f32.mrf.mxu0
    %v1202 = vadd.f32 %v1148, %v1201
    %1203 = vdwg.mxu0
    %v1204 = vand.u32 %v168, 4294901760
    %1205 = vmatpush.msra.mxu0 %v1204
    %v1206 = vand.u32 %v166, 4294901760
    %1207 = vmatpush.msra.mxu0 %v1206
    %v1208 = vand.u32 %v164, 4294901760
    %1209 = vmatpush.msra.mxu0 %v1208
    %v1210 = vand.u32 %v162, 4294901760
    %1211 = vmatpush.msra.mxu0 %v1210
    %v1212 = vand.u32 %v160, 4294901760
    %1213 = vmatpush.msra.mxu0 %v1212
    %v1214 = vand.u32 %v158, 4294901760
    %1215 = vmatpush.msra.mxu0 %v1214
    %v1216 = vand.u32 %v156, 4294901760
    %1217 = vmatpush.msra.mxu0 %v1216
    %v1218 = vand.u32 %v154, 4294901760
    %1219 = vmatpush.msra.mxu0 %v1218
    %v1220 = vand.u32 %v152, 4294901760
    %1221 = vmatpush.msra.mxu0 %v1220
    %v1222 = vand.u32 %v150, 4294901760
    %1223 = vmatpush.msra.mxu0 %v1222
    %v1224 = vand.u32 %v148, 4294901760
    %1225 = vmatpush.msra.mxu0 %v1224
    %v1226 = vand.u32 %v146, 4294901760
    %1227 = vmatpush.msra.mxu0 %v1226
    %v1228 = vand.u32 %v144, 4294901760
    %1229 = vmatpush.msra.mxu0 %v1228
    %v1230 = vand.u32 %v142, 4294901760
    %1231 = vmatpush.msra.mxu0 %v1230
    %v1232 = vand.u32 %v140, 4294901760
    %1233 = vmatpush.msra.mxu0 %v1232
    %v1234 = vand.u32 %v138, 4294901760
    %1235 = vmatpush.msra.mxu0 %v1234
    %v1236 = vand.u32 %v666, 4294901760
    %v1237 = vsub.f32 %v666, %v1236
    %v1238 = vand.u32 %v1237, 4294901760
    %1239 = vmatmul.f32.gmra.mxu0 %v1238
    %v1240 = vpop.f32.mrf.mxu0
    %v1241 = vadd.f32 %v1202, %v1240
    %1242 = vdwg.mxu0
    %v1243 = vand.u32 %v168, 4294901760
    %v1244 = vsub.f32 %v168, %v1243
    %v1245 = vand.u32 %v1244, 4294901760
    %1246 = vmatpush.msra.mxu0 %v1245
    %v1247 = vand.u32 %v166, 4294901760
    %v1248 = vsub.f32 %v166, %v1247
    %v1249 = vand.u32 %v1248, 4294901760
    %1250 = vmatpush.msra.mxu0 %v1249
    %v1251 = vand.u32 %v164, 4294901760
    %v1252 = vsub.f32 %v164, %v1251
    %v1253 = vand.u32 %v1252, 4294901760
    %1254 = vmatpush.msra.mxu0 %v1253
    %v1255 = vand.u32 %v162, 4294901760
    %v1256 = vsub.f32 %v162, %v1255
    %v1257 = vand.u32 %v1256, 4294901760
    %1258 = vmatpush.msra.mxu0 %v1257
    %v1259 = vand.u32 %v160, 4294901760
    %v1260 = vsub.f32 %v160, %v1259
    %v1261 = vand.u32 %v1260, 4294901760
    %1262 = vmatpush.msra.mxu0 %v1261
    %v1263 = vand.u32 %v158, 4294901760
    %v1264 = vsub.f32 %v158, %v1263
    %v1265 = vand.u32 %v1264, 4294901760
    %1266 = vmatpush.msra.mxu0 %v1265
    %v1267 = vand.u32 %v156, 4294901760
    %v1268 = vsub.f32 %v156, %v1267
    %v1269 = vand.u32 %v1268, 4294901760
    %1270 = vmatpush.msra.mxu0 %v1269
    %v1271 = vand.u32 %v154, 4294901760
    %v1272 = vsub.f32 %v154, %v1271
    %v1273 = vand.u32 %v1272, 4294901760
    %1274 = vmatpush.msra.mxu0 %v1273
    %v1275 = vand.u32 %v152, 4294901760
    %v1276 = vsub.f32 %v152, %v1275
    %v1277 = vand.u32 %v1276, 4294901760
    %1278 = vmatpush.msra.mxu0 %v1277
    %v1279 = vand.u32 %v150, 4294901760
    %v1280 = vsub.f32 %v150, %v1279
    %v1281 = vand.u32 %v1280, 4294901760
    %1282 = vmatpush.msra.mxu0 %v1281
    %v1283 = vand.u32 %v148, 4294901760
    %v1284 = vsub.f32 %v148, %v1283
    %v1285 = vand.u32 %v1284, 4294901760
    %1286 = vmatpush.msra.mxu0 %v1285
    %v1287 = vand.u32 %v146, 4294901760
    %v1288 = vsub.f32 %v146, %v1287
    %v1289 = vand.u32 %v1288, 4294901760
    %1290 = vmatpush.msra.mxu0 %v1289
    %v1291 = vand.u32 %v144, 4294901760
    %v1292 = vsub.f32 %v144, %v1291
    %v1293 = vand.u32 %v1292, 4294901760
    %1294 = vmatpush.msra.mxu0 %v1293
    %v1295 = vand.u32 %v142, 4294901760
    %v1296 = vsub.f32 %v142, %v1295
    %v1297 = vand.u32 %v1296, 4294901760
    %1298 = vmatpush.msra.mxu0 %v1297
    %v1299 = vand.u32 %v140, 4294901760
    %v1300 = vsub.f32 %v140, %v1299
    %v1301 = vand.u32 %v1300, 4294901760
    %1302 = vmatpush.msra.mxu0 %v1301
    %v1303 = vand.u32 %v138, 4294901760
    %v1304 = vsub.f32 %v138, %v1303
    %v1305 = vand.u32 %v1304, 4294901760
    %1306 = vmatpush.msra.mxu0 %v1305
    %v1307 = vand.u32 %v666, 4294901760
    %1308 = vmatmul.f32.gmra.mxu0 %v1307
    %v1309 = vpop.f32.mrf.mxu0
    %v1310 = vadd.f32 %v1241, %v1309
    %1311 = vdwg.mxu0
    %v1312 = vand.u32 %v168, 4294901760
    %1313 = vmatpush.msra.mxu0 %v1312
    %v1314 = vand.u32 %v166, 4294901760
    %1315 = vmatpush.msra.mxu0 %v1314
    %v1316 = vand.u32 %v164, 4294901760
    %1317 = vmatpush.msra.mxu0 %v1316
    %v1318 = vand.u32 %v162, 4294901760
    %1319 = vmatpush.msra.mxu0 %v1318
    %v1320 = vand.u32 %v160, 4294901760
    %1321 = vmatpush.msra.mxu0 %v1320
    %v1322 = vand.u32 %v158, 4294901760
    %1323 = vmatpush.msra.mxu0 %v1322
    %v1324 = vand.u32 %v156, 4294901760
    %1325 = vmatpush.msra.mxu0 %v1324
    %v1326 = vand.u32 %v154, 4294901760
    %1327 = vmatpush.msra.mxu0 %v1326
    %v1328 = vand.u32 %v152, 4294901760
    %1329 = vmatpush.msra.mxu0 %v1328
    %v1330 = vand.u32 %v150, 4294901760
    %1331 = vmatpush.msra.mxu0 %v1330
    %v1332 = vand.u32 %v148, 4294901760
    %1333 = vmatpush.msra.mxu0 %v1332
    %v1334 = vand.u32 %v146, 4294901760
    %1335 = vmatpush.msra.mxu0 %v1334
    %v1336 = vand.u32 %v144, 4294901760
    %1337 = vmatpush.msra.mxu0 %v1336
    %v1338 = vand.u32 %v142, 4294901760
    %1339 = vmatpush.msra.mxu0 %v1338
    %v1340 = vand.u32 %v140, 4294901760
    %1341 = vmatpush.msra.mxu0 %v1340
    %v1342 = vand.u32 %v138, 4294901760
    %1343 = vmatpush.msra.mxu0 %v1342
    %v1344 = vand.u32 %v666, 4294901760
    %1345 = vmatmul.f32.gmra.mxu0 %v1344
    %v1346 = vpop.f32.mrf.mxu0
    %v1347 = vadd.f32 %v1310, %v1346
    %1348 = vdwg.mxu0
    %v1349 = vand.u32 %v137, 4294901760
    %1350 = vmatpush.msra.mxu0 %v1349
    %v1351 = vand.u32 %v135, 4294901760
    %1352 = vmatpush.msra.mxu0 %v1351
    %v1353 = vand.u32 %v133, 4294901760
    %1354 = vmatpush.msra.mxu0 %v1353
    %v1355 = vand.u32 %v131, 4294901760
    %1356 = vmatpush.msra.mxu0 %v1355
    %v1357 = vand.u32 %v129, 4294901760
    %1358 = vmatpush.msra.mxu0 %v1357
    %v1359 = vand.u32 %v127, 4294901760
    %1360 = vmatpush.msra.mxu0 %v1359
    %v1361 = vand.u32 %v125, 4294901760
    %1362 = vmatpush.msra.mxu0 %v1361
    %v1363 = vand.u32 %v123, 4294901760
    %1364 = vmatpush.msra.mxu0 %v1363
    %v1365 = vand.u32 %v121, 4294901760
    %1366 = vmatpush.msra.mxu0 %v1365
    %v1367 = vand.u32 %v119, 4294901760
    %1368 = vmatpush.msra.mxu0 %v1367
    %v1369 = vand.u32 %v117, 4294901760
    %1370 = vmatpush.msra.mxu0 %v1369
    %v1371 = vand.u32 %v115, 4294901760
    %1372 = vmatpush.msra.mxu0 %v1371
    %v1373 = vand.u32 %v113, 4294901760
    %1374 = vmatpush.msra.mxu0 %v1373
    %v1375 = vand.u32 %v111, 4294901760
    %1376 = vmatpush.msra.mxu0 %v1375
    %v1377 = vand.u32 %v109, 4294901760
    %1378 = vmatpush.msra.mxu0 %v1377
    %v1379 = vand.u32 %v107, 4294901760
    %1380 = vmatpush.msra.mxu0 %v1379
    %v1381 = vand.u32 %v665, 4294901760
    %v1382 = vsub.f32 %v665, %v1381
    %v1383 = vand.u32 %v1382, 4294901760
    %v1384 = vsub.f32 %v1382, %v1383
    %v1385 = vand.u32 %v1384, 4294901760
    %1386 = vmatmul.f32.gmra.mxu0 %v1385
    %v1387 = vpop.f32.mrf.mxu0
    %v1388 = vadd.f32 0.0, %v1387
    %1389 = vdwg.mxu0
    %v1390 = vand.u32 %v137, 4294901760
    %v1391 = vsub.f32 %v137, %v1390
    %v1392 = vand.u32 %v1391, 4294901760
    %v1393 = vsub.f32 %v1391, %v1392
    %v1394 = vand.u32 %v1393, 4294901760
    %1395 = vmatpush.msra.mxu0 %v1394
    %v1396 = vand.u32 %v135, 4294901760
    %v1397 = vsub.f32 %v135, %v1396
    %v1398 = vand.u32 %v1397, 4294901760
    %v1399 = vsub.f32 %v1397, %v1398
    %v1400 = vand.u32 %v1399, 4294901760
    %1401 = vmatpush.msra.mxu0 %v1400
    %v1402 = vand.u32 %v133, 4294901760
    %v1403 = vsub.f32 %v133, %v1402
    %v1404 = vand.u32 %v1403, 4294901760
    %v1405 = vsub.f32 %v1403, %v1404
    %v1406 = vand.u32 %v1405, 4294901760
    %1407 = vmatpush.msra.mxu0 %v1406
    %v1408 = vand.u32 %v131, 4294901760
    %v1409 = vsub.f32 %v131, %v1408
    %v1410 = vand.u32 %v1409, 4294901760
    %v1411 = vsub.f32 %v1409, %v1410
    %v1412 = vand.u32 %v1411, 4294901760
    %1413 = vmatpush.msra.mxu0 %v1412
    %v1414 = vand.u32 %v129, 4294901760
    %v1415 = vsub.f32 %v129, %v1414
    %v1416 = vand.u32 %v1415, 4294901760
    %v1417 = vsub.f32 %v1415, %v1416
    %v1418 = vand.u32 %v1417, 4294901760
    %1419 = vmatpush.msra.mxu0 %v1418
    %v1420 = vand.u32 %v127, 4294901760
    %v1421 = vsub.f32 %v127, %v1420
    %v1422 = vand.u32 %v1421, 4294901760
    %v1423 = vsub.f32 %v1421, %v1422
    %v1424 = vand.u32 %v1423, 4294901760
    %1425 = vmatpush.msra.mxu0 %v1424
    %v1426 = vand.u32 %v125, 4294901760
    %v1427 = vsub.f32 %v125, %v1426
    %v1428 = vand.u32 %v1427, 4294901760
    %v1429 = vsub.f32 %v1427, %v1428
    %v1430 = vand.u32 %v1429, 4294901760
    %1431 = vmatpush.msra.mxu0 %v1430
    %v1432 = vand.u32 %v123, 4294901760
    %v1433 = vsub.f32 %v123, %v1432
    %v1434 = vand.u32 %v1433, 4294901760
    %v1435 = vsub.f32 %v1433, %v1434
    %v1436 = vand.u32 %v1435, 4294901760
    %1437 = vmatpush.msra.mxu0 %v1436
    %v1438 = vand.u32 %v121, 4294901760
    %v1439 = vsub.f32 %v121, %v1438
    %v1440 = vand.u32 %v1439, 4294901760
    %v1441 = vsub.f32 %v1439, %v1440
    %v1442 = vand.u32 %v1441, 4294901760
    %1443 = vmatpush.msra.mxu0 %v1442
    %v1444 = vand.u32 %v119, 4294901760
    %v1445 = vsub.f32 %v119, %v1444
    %v1446 = vand.u32 %v1445, 4294901760
    %v1447 = vsub.f32 %v1445, %v1446
    %v1448 = vand.u32 %v1447, 4294901760
    %1449 = vmatpush.msra.mxu0 %v1448
    %v1450 = vand.u32 %v117, 4294901760
    %v1451 = vsub.f32 %v117, %v1450
    %v1452 = vand.u32 %v1451, 4294901760
    %v1453 = vsub.f32 %v1451, %v1452
    %v1454 = vand.u32 %v1453, 4294901760
    %1455 = vmatpush.msra.mxu0 %v1454
    %v1456 = vand.u32 %v115, 4294901760
    %v1457 = vsub.f32 %v115, %v1456
    %v1458 = vand.u32 %v1457, 4294901760
    %v1459 = vsub.f32 %v1457, %v1458
    %v1460 = vand.u32 %v1459, 4294901760
    %1461 = vmatpush.msra.mxu0 %v1460
    %v1462 = vand.u32 %v113, 4294901760
    %v1463 = vsub.f32 %v113, %v1462
    %v1464 = vand.u32 %v1463, 4294901760
    %v1465 = vsub.f32 %v1463, %v1464
    %v1466 = vand.u32 %v1465, 4294901760
    %1467 = vmatpush.msra.mxu0 %v1466
    %v1468 = vand.u32 %v111, 4294901760
    %v1469 = vsub.f32 %v111, %v1468
    %v1470 = vand.u32 %v1469, 4294901760
    %v1471 = vsub.f32 %v1469, %v1470
    %v1472 = vand.u32 %v1471, 4294901760
    %1473 = vmatpush.msra.mxu0 %v1472
    %v1474 = vand.u32 %v109, 4294901760
    %v1475 = vsub.f32 %v109, %v1474
    %v1476 = vand.u32 %v1475, 4294901760
    %v1477 = vsub.f32 %v1475, %v1476
    %v1478 = vand.u32 %v1477, 4294901760
    %1479 = vmatpush.msra.mxu0 %v1478
    %v1480 = vand.u32 %v107, 4294901760
    %v1481 = vsub.f32 %v107, %v1480
    %v1482 = vand.u32 %v1481, 4294901760
    %v1483 = vsub.f32 %v1481, %v1482
    %v1484 = vand.u32 %v1483, 4294901760
    %1485 = vmatpush.msra.mxu0 %v1484
    %v1486 = vand.u32 %v665, 4294901760
    %1487 = vmatmul.f32.gmra.mxu0 %v1486
    %v1488 = vpop.f32.mrf.mxu0
    %v1489 = vadd.f32 %v1388, %v1488
    %1490 = vdwg.mxu0
    %v1491 = vand.u32 %v137, 4294901760
    %v1492 = vsub.f32 %v137, %v1491
    %1493 = vmatpush.msra.mxu0 %v1492
    %v1494 = vand.u32 %v135, 4294901760
    %v1495 = vsub.f32 %v135, %v1494
    %1496 = vmatpush.msra.mxu0 %v1495
    %v1497 = vand.u32 %v133, 4294901760
    %v1498 = vsub.f32 %v133, %v1497
    %1499 = vmatpush.msra.mxu0 %v1498
    %v1500 = vand.u32 %v131, 4294901760
    %v1501 = vsub.f32 %v131, %v1500
    %1502 = vmatpush.msra.mxu0 %v1501
    %v1503 = vand.u32 %v129, 4294901760
    %v1504 = vsub.f32 %v129, %v1503
    %1505 = vmatpush.msra.mxu0 %v1504
    %v1506 = vand.u32 %v127, 4294901760
    %v1507 = vsub.f32 %v127, %v1506
    %1508 = vmatpush.msra.mxu0 %v1507
    %v1509 = vand.u32 %v125, 4294901760
    %v1510 = vsub.f32 %v125, %v1509
    %1511 = vmatpush.msra.mxu0 %v1510
    %v1512 = vand.u32 %v123, 4294901760
    %v1513 = vsub.f32 %v123, %v1512
    %1514 = vmatpush.msra.mxu0 %v1513
    %v1515 = vand.u32 %v121, 4294901760
    %v1516 = vsub.f32 %v121, %v1515
    %1517 = vmatpush.msra.mxu0 %v1516
    %v1518 = vand.u32 %v119, 4294901760
    %v1519 = vsub.f32 %v119, %v1518
    %1520 = vmatpush.msra.mxu0 %v1519
    %v1521 = vand.u32 %v117, 4294901760
    %v1522 = vsub.f32 %v117, %v1521
    %1523 = vmatpush.msra.mxu0 %v1522
    %v1524 = vand.u32 %v115, 4294901760
    %v1525 = vsub.f32 %v115, %v1524
    %1526 = vmatpush.msra.mxu0 %v1525
    %v1527 = vand.u32 %v113, 4294901760
    %v1528 = vsub.f32 %v113, %v1527
    %1529 = vmatpush.msra.mxu0 %v1528
    %v1530 = vand.u32 %v111, 4294901760
    %v1531 = vsub.f32 %v111, %v1530
    %1532 = vmatpush.msra.mxu0 %v1531
    %v1533 = vand.u32 %v109, 4294901760
    %v1534 = vsub.f32 %v109, %v1533
    %1535 = vmatpush.msra.mxu0 %v1534
    %v1536 = vand.u32 %v107, 4294901760
    %v1537 = vsub.f32 %v107, %v1536
    %1538 = vmatpush.msra.mxu0 %v1537
    %v1539 = vand.u32 %v665, 4294901760
    %v1540 = vsub.f32 %v665, %v1539
    %1541 = vmatmul.f32.gmra.mxu0 %v1540
    %v1542 = vpop.f32.mrf.mxu0
    %v1543 = vadd.f32 %v1489, %v1542
    %1544 = vdwg.mxu0
    %v1545 = vand.u32 %v137, 4294901760
    %1546 = vmatpush.msra.mxu0 %v1545
    %v1547 = vand.u32 %v135, 4294901760
    %1548 = vmatpush.msra.mxu0 %v1547
    %v1549 = vand.u32 %v133, 4294901760
    %1550 = vmatpush.msra.mxu0 %v1549
    %v1551 = vand.u32 %v131, 4294901760
    %1552 = vmatpush.msra.mxu0 %v1551
    %v1553 = vand.u32 %v129, 4294901760
    %1554 = vmatpush.msra.mxu0 %v1553
    %v1555 = vand.u32 %v127, 4294901760
    %1556 = vmatpush.msra.mxu0 %v1555
    %v1557 = vand.u32 %v125, 4294901760
    %1558 = vmatpush.msra.mxu0 %v1557
    %v1559 = vand.u32 %v123, 4294901760
    %1560 = vmatpush.msra.mxu0 %v1559
    %v1561 = vand.u32 %v121, 4294901760
    %1562 = vmatpush.msra.mxu0 %v1561
    %v1563 = vand.u32 %v119, 4294901760
    %1564 = vmatpush.msra.mxu0 %v1563
    %v1565 = vand.u32 %v117, 4294901760
    %1566 = vmatpush.msra.mxu0 %v1565
    %v1567 = vand.u32 %v115, 4294901760
    %1568 = vmatpush.msra.mxu0 %v1567
    %v1569 = vand.u32 %v113, 4294901760
    %1570 = vmatpush.msra.mxu0 %v1569
    %v1571 = vand.u32 %v111, 4294901760
    %1572 = vmatpush.msra.mxu0 %v1571
    %v1573 = vand.u32 %v109, 4294901760
    %1574 = vmatpush.msra.mxu0 %v1573
    %v1575 = vand.u32 %v107, 4294901760
    %1576 = vmatpush.msra.mxu0 %v1575
    %v1577 = vand.u32 %v665, 4294901760
    %v1578 = vsub.f32 %v665, %v1577
    %v1579 = vand.u32 %v1578, 4294901760
    %1580 = vmatmul.f32.gmra.mxu0 %v1579
    %v1581 = vpop.f32.mrf.mxu0
    %v1582 = vadd.f32 %v1543, %v1581
    %1583 = vdwg.mxu0
    %v1584 = vand.u32 %v137, 4294901760
    %v1585 = vsub.f32 %v137, %v1584
    %v1586 = vand.u32 %v1585, 4294901760
    %1587 = vmatpush.msra.mxu0 %v1586
    %v1588 = vand.u32 %v135, 4294901760
    %v1589 = vsub.f32 %v135, %v1588
    %v1590 = vand.u32 %v1589, 4294901760
    %1591 = vmatpush.msra.mxu0 %v1590
    %v1592 = vand.u32 %v133, 4294901760
    %v1593 = vsub.f32 %v133, %v1592
    %v1594 = vand.u32 %v1593, 4294901760
    %1595 = vmatpush.msra.mxu0 %v1594
    %v1596 = vand.u32 %v131, 4294901760
    %v1597 = vsub.f32 %v131, %v1596
    %v1598 = vand.u32 %v1597, 4294901760
    %1599 = vmatpush.msra.mxu0 %v1598
    %v1600 = vand.u32 %v129, 4294901760
    %v1601 = vsub.f32 %v129, %v1600
    %v1602 = vand.u32 %v1601, 4294901760
    %1603 = vmatpush.msra.mxu0 %v1602
    %v1604 = vand.u32 %v127, 4294901760
    %v1605 = vsub.f32 %v127, %v1604
    %v1606 = vand.u32 %v1605, 4294901760
    %1607 = vmatpush.msra.mxu0 %v1606
    %v1608 = vand.u32 %v125, 4294901760
    %v1609 = vsub.f32 %v125, %v1608
    %v1610 = vand.u32 %v1609, 4294901760
    %1611 = vmatpush.msra.mxu0 %v1610
    %v1612 = vand.u32 %v123, 4294901760
    %v1613 = vsub.f32 %v123, %v1612
    %v1614 = vand.u32 %v1613, 4294901760
    %1615 = vmatpush.msra.mxu0 %v1614
    %v1616 = vand.u32 %v121, 4294901760
    %v1617 = vsub.f32 %v121, %v1616
    %v1618 = vand.u32 %v1617, 4294901760
    %1619 = vmatpush.msra.mxu0 %v1618
    %v1620 = vand.u32 %v119, 4294901760
    %v1621 = vsub.f32 %v119, %v1620
    %v1622 = vand.u32 %v1621, 4294901760
    %1623 = vmatpush.msra.mxu0 %v1622
    %v1624 = vand.u32 %v117, 4294901760
    %v1625 = vsub.f32 %v117, %v1624
    %v1626 = vand.u32 %v1625, 4294901760
    %1627 = vmatpush.msra.mxu0 %v1626
    %v1628 = vand.u32 %v115, 4294901760
    %v1629 = vsub.f32 %v115, %v1628
    %v1630 = vand.u32 %v1629, 4294901760
    %1631 = vmatpush.msra.mxu0 %v1630
    %v1632 = vand.u32 %v113, 4294901760
    %v1633 = vsub.f32 %v113, %v1632
    %v1634 = vand.u32 %v1633, 4294901760
    %1635 = vmatpush.msra.mxu0 %v1634
    %v1636 = vand.u32 %v111, 4294901760
    %v1637 = vsub.f32 %v111, %v1636
    %v1638 = vand.u32 %v1637, 4294901760
    %1639 = vmatpush.msra.mxu0 %v1638
    %v1640 = vand.u32 %v109, 4294901760
    %v1641 = vsub.f32 %v109, %v1640
    %v1642 = vand.u32 %v1641, 4294901760
    %1643 = vmatpush.msra.mxu0 %v1642
    %v1644 = vand.u32 %v107, 4294901760
    %v1645 = vsub.f32 %v107, %v1644
    %v1646 = vand.u32 %v1645, 4294901760
    %1647 = vmatpush.msra.mxu0 %v1646
    %v1648 = vand.u32 %v665, 4294901760
    %1649 = vmatmul.f32.gmra.mxu0 %v1648
    %v1650 = vpop.f32.mrf.mxu0
    %v1651 = vadd.f32 %v1582, %v1650
    %1652 = vdwg.mxu0
    %v1653 = vand.u32 %v137, 4294901760
    %1654 = vmatpush.msra.mxu0 %v1653
    %v1655 = vand.u32 %v135, 4294901760
    %1656 = vmatpush.msra.mxu0 %v1655
    %v1657 = vand.u32 %v133, 4294901760
    %1658 = vmatpush.msra.mxu0 %v1657
    %v1659 = vand.u32 %v131, 4294901760
    %1660 = vmatpush.msra.mxu0 %v1659
    %v1661 = vand.u32 %v129, 4294901760
    %1662 = vmatpush.msra.mxu0 %v1661
    %v1663 = vand.u32 %v127, 4294901760
    %1664 = vmatpush.msra.mxu0 %v1663
    %v1665 = vand.u32 %v125, 4294901760
    %1666 = vmatpush.msra.mxu0 %v1665
    %v1667 = vand.u32 %v123, 4294901760
    %1668 = vmatpush.msra.mxu0 %v1667
    %v1669 = vand.u32 %v121, 4294901760
    %1670 = vmatpush.msra.mxu0 %v1669
    %v1671 = vand.u32 %v119, 4294901760
    %1672 = vmatpush.msra.mxu0 %v1671
    %v1673 = vand.u32 %v117, 4294901760
    %1674 = vmatpush.msra.mxu0 %v1673
    %v1675 = vand.u32 %v115, 4294901760
    %1676 = vmatpush.msra.mxu0 %v1675
    %v1677 = vand.u32 %v113, 4294901760
    %1678 = vmatpush.msra.mxu0 %v1677
    %v1679 = vand.u32 %v111, 4294901760
    %1680 = vmatpush.msra.mxu0 %v1679
    %v1681 = vand.u32 %v109, 4294901760
    %1682 = vmatpush.msra.mxu0 %v1681
    %v1683 = vand.u32 %v107, 4294901760
    %1684 = vmatpush.msra.mxu0 %v1683
    %v1685 = vand.u32 %v665, 4294901760
    %1686 = vmatmul.f32.gmra.mxu0 %v1685
    %v1687 = vpop.f32.mrf.mxu0
    %v1688 = vadd.f32 %v1651, %v1687
    %1689 = vdwg.mxu0
    %v1690 = vand.u32 %v169, 4294901760
    %1691 = vmatpush.msra.mxu0 %v1690
    %v1692 = vand.u32 %v167, 4294901760
    %1693 = vmatpush.msra.mxu0 %v1692
    %v1694 = vand.u32 %v165, 4294901760
    %1695 = vmatpush.msra.mxu0 %v1694
    %v1696 = vand.u32 %v163, 4294901760
    %1697 = vmatpush.msra.mxu0 %v1696
    %v1698 = vand.u32 %v161, 4294901760
    %1699 = vmatpush.msra.mxu0 %v1698
    %v1700 = vand.u32 %v159, 4294901760
    %1701 = vmatpush.msra.mxu0 %v1700
    %v1702 = vand.u32 %v157, 4294901760
    %1703 = vmatpush.msra.mxu0 %v1702
    %v1704 = vand.u32 %v155, 4294901760
    %1705 = vmatpush.msra.mxu0 %v1704
    %v1706 = vand.u32 %v153, 4294901760
    %1707 = vmatpush.msra.mxu0 %v1706
    %v1708 = vand.u32 %v151, 4294901760
    %1709 = vmatpush.msra.mxu0 %v1708
    %v1710 = vand.u32 %v149, 4294901760
    %1711 = vmatpush.msra.mxu0 %v1710
    %v1712 = vand.u32 %v147, 4294901760
    %1713 = vmatpush.msra.mxu0 %v1712
    %v1714 = vand.u32 %v145, 4294901760
    %1715 = vmatpush.msra.mxu0 %v1714
    %v1716 = vand.u32 %v143, 4294901760
    %1717 = vmatpush.msra.mxu0 %v1716
    %v1718 = vand.u32 %v141, 4294901760
    %1719 = vmatpush.msra.mxu0 %v1718
    %v1720 = vand.u32 %v139, 4294901760
    %1721 = vmatpush.msra.mxu0 %v1720
    %v1722 = vand.u32 %v666, 4294901760
    %v1723 = vsub.f32 %v666, %v1722
    %v1724 = vand.u32 %v1723, 4294901760
    %v1725 = vsub.f32 %v1723, %v1724
    %v1726 = vand.u32 %v1725, 4294901760
    %1727 = vmatmul.f32.gmra.mxu0 %v1726
    %v1728 = vpop.f32.mrf.mxu0
    %v1729 = vadd.f32 %v1688, %v1728
    %1730 = vdwg.mxu0
    %v1731 = vand.u32 %v169, 4294901760
    %v1732 = vsub.f32 %v169, %v1731
    %v1733 = vand.u32 %v1732, 4294901760
    %v1734 = vsub.f32 %v1732, %v1733
    %v1735 = vand.u32 %v1734, 4294901760
    %1736 = vmatpush.msra.mxu0 %v1735
    %v1737 = vand.u32 %v167, 4294901760
    %v1738 = vsub.f32 %v167, %v1737
    %v1739 = vand.u32 %v1738, 4294901760
    %v1740 = vsub.f32 %v1738, %v1739
    %v1741 = vand.u32 %v1740, 4294901760
    %1742 = vmatpush.msra.mxu0 %v1741
    %v1743 = vand.u32 %v165, 4294901760
    %v1744 = vsub.f32 %v165, %v1743
    %v1745 = vand.u32 %v1744, 4294901760
    %v1746 = vsub.f32 %v1744, %v1745
    %v1747 = vand.u32 %v1746, 4294901760
    %1748 = vmatpush.msra.mxu0 %v1747
    %v1749 = vand.u32 %v163, 4294901760
    %v1750 = vsub.f32 %v163, %v1749
    %v1751 = vand.u32 %v1750, 4294901760
    %v1752 = vsub.f32 %v1750, %v1751
    %v1753 = vand.u32 %v1752, 4294901760
    %1754 = vmatpush.msra.mxu0 %v1753
    %v1755 = vand.u32 %v161, 4294901760
    %v1756 = vsub.f32 %v161, %v1755
    %v1757 = vand.u32 %v1756, 4294901760
    %v1758 = vsub.f32 %v1756, %v1757
    %v1759 = vand.u32 %v1758, 4294901760
    %1760 = vmatpush.msra.mxu0 %v1759
    %v1761 = vand.u32 %v159, 4294901760
    %v1762 = vsub.f32 %v159, %v1761
    %v1763 = vand.u32 %v1762, 4294901760
    %v1764 = vsub.f32 %v1762, %v1763
    %v1765 = vand.u32 %v1764, 4294901760
    %1766 = vmatpush.msra.mxu0 %v1765
    %v1767 = vand.u32 %v157, 4294901760
    %v1768 = vsub.f32 %v157, %v1767
    %v1769 = vand.u32 %v1768, 4294901760
    %v1770 = vsub.f32 %v1768, %v1769
    %v1771 = vand.u32 %v1770, 4294901760
    %1772 = vmatpush.msra.mxu0 %v1771
    %v1773 = vand.u32 %v155, 4294901760
    %v1774 = vsub.f32 %v155, %v1773
    %v1775 = vand.u32 %v1774, 4294901760
    %v1776 = vsub.f32 %v1774, %v1775
    %v1777 = vand.u32 %v1776, 4294901760
    %1778 = vmatpush.msra.mxu0 %v1777
    %v1779 = vand.u32 %v153, 4294901760
    %v1780 = vsub.f32 %v153, %v1779
    %v1781 = vand.u32 %v1780, 4294901760
    %v1782 = vsub.f32 %v1780, %v1781
    %v1783 = vand.u32 %v1782, 4294901760
    %1784 = vmatpush.msra.mxu0 %v1783
    %v1785 = vand.u32 %v151, 4294901760
    %v1786 = vsub.f32 %v151, %v1785
    %v1787 = vand.u32 %v1786, 4294901760
    %v1788 = vsub.f32 %v1786, %v1787
    %v1789 = vand.u32 %v1788, 4294901760
    %1790 = vmatpush.msra.mxu0 %v1789
    %v1791 = vand.u32 %v149, 4294901760
    %v1792 = vsub.f32 %v149, %v1791
    %v1793 = vand.u32 %v1792, 4294901760
    %v1794 = vsub.f32 %v1792, %v1793
    %v1795 = vand.u32 %v1794, 4294901760
    %1796 = vmatpush.msra.mxu0 %v1795
    %v1797 = vand.u32 %v147, 4294901760
    %v1798 = vsub.f32 %v147, %v1797
    %v1799 = vand.u32 %v1798, 4294901760
    %v1800 = vsub.f32 %v1798, %v1799
    %v1801 = vand.u32 %v1800, 4294901760
    %1802 = vmatpush.msra.mxu0 %v1801
    %v1803 = vand.u32 %v145, 4294901760
    %v1804 = vsub.f32 %v145, %v1803
    %v1805 = vand.u32 %v1804, 4294901760
    %v1806 = vsub.f32 %v1804, %v1805
    %v1807 = vand.u32 %v1806, 4294901760
    %1808 = vmatpush.msra.mxu0 %v1807
    %v1809 = vand.u32 %v143, 4294901760
    %v1810 = vsub.f32 %v143, %v1809
    %v1811 = vand.u32 %v1810, 4294901760
    %v1812 = vsub.f32 %v1810, %v1811
    %v1813 = vand.u32 %v1812, 4294901760
    %1814 = vmatpush.msra.mxu0 %v1813
    %v1815 = vand.u32 %v141, 4294901760
    %v1816 = vsub.f32 %v141, %v1815
    %v1817 = vand.u32 %v1816, 4294901760
    %v1818 = vsub.f32 %v1816, %v1817
    %v1819 = vand.u32 %v1818, 4294901760
    %1820 = vmatpush.msra.mxu0 %v1819
    %v1821 = vand.u32 %v139, 4294901760
    %v1822 = vsub.f32 %v139, %v1821
    %v1823 = vand.u32 %v1822, 4294901760
    %v1824 = vsub.f32 %v1822, %v1823
    %v1825 = vand.u32 %v1824, 4294901760
    %1826 = vmatpush.msra.mxu0 %v1825
    %v1827 = vand.u32 %v666, 4294901760
    %1828 = vmatmul.f32.gmra.mxu0 %v1827
    %v1829 = vpop.f32.mrf.mxu0
    %v1830 = vadd.f32 %v1729, %v1829
    %1831 = vdwg.mxu0
    %v1832 = vand.u32 %v169, 4294901760
    %v1833 = vsub.f32 %v169, %v1832
    %1834 = vmatpush.msra.mxu0 %v1833
    %v1835 = vand.u32 %v167, 4294901760
    %v1836 = vsub.f32 %v167, %v1835
    %1837 = vmatpush.msra.mxu0 %v1836
    %v1838 = vand.u32 %v165, 4294901760
    %v1839 = vsub.f32 %v165, %v1838
    %1840 = vmatpush.msra.mxu0 %v1839
    %v1841 = vand.u32 %v163, 4294901760
    %v1842 = vsub.f32 %v163, %v1841
    %1843 = vmatpush.msra.mxu0 %v1842
    %v1844 = vand.u32 %v161, 4294901760
    %v1845 = vsub.f32 %v161, %v1844
    %1846 = vmatpush.msra.mxu0 %v1845
    %v1847 = vand.u32 %v159, 4294901760
    %v1848 = vsub.f32 %v159, %v1847
    %1849 = vmatpush.msra.mxu0 %v1848
    %v1850 = vand.u32 %v157, 4294901760
    %v1851 = vsub.f32 %v157, %v1850
    %1852 = vmatpush.msra.mxu0 %v1851
    %v1853 = vand.u32 %v155, 4294901760
    %v1854 = vsub.f32 %v155, %v1853
    %1855 = vmatpush.msra.mxu0 %v1854
    %v1856 = vand.u32 %v153, 4294901760
    %v1857 = vsub.f32 %v153, %v1856
    %1858 = vmatpush.msra.mxu0 %v1857
    %v1859 = vand.u32 %v151, 4294901760
    %v1860 = vsub.f32 %v151, %v1859
    %1861 = vmatpush.msra.mxu0 %v1860
    %v1862 = vand.u32 %v149, 4294901760
    %v1863 = vsub.f32 %v149, %v1862
    %1864 = vmatpush.msra.mxu0 %v1863
    %v1865 = vand.u32 %v147, 4294901760
    %v1866 = vsub.f32 %v147, %v1865
    %1867 = vmatpush.msra.mxu0 %v1866
    %v1868 = vand.u32 %v145, 4294901760
    %v1869 = vsub.f32 %v145, %v1868
    %1870 = vmatpush.msra.mxu0 %v1869
    %v1871 = vand.u32 %v143, 4294901760
    %v1872 = vsub.f32 %v143, %v1871
    %1873 = vmatpush.msra.mxu0 %v1872
    %v1874 = vand.u32 %v141, 4294901760
    %v1875 = vsub.f32 %v141, %v1874
    %1876 = vmatpush.msra.mxu0 %v1875
    %v1877 = vand.u32 %v139, 4294901760
    %v1878 = vsub.f32 %v139, %v1877
    %1879 = vmatpush.msra.mxu0 %v1878
    %v1880 = vand.u32 %v666, 4294901760
    %v1881 = vsub.f32 %v666, %v1880
    %1882 = vmatmul.f32.gmra.mxu0 %v1881
    %v1883 = vpop.f32.mrf.mxu0
    %v1884 = vadd.f32 %v1830, %v1883
    %1885 = vdwg.mxu0
    %v1886 = vand.u32 %v169, 4294901760
    %1887 = vmatpush.msra.mxu0 %v1886
    %v1888 = vand.u32 %v167, 4294901760
    %1889 = vmatpush.msra.mxu0 %v1888
    %v1890 = vand.u32 %v165, 4294901760
    %1891 = vmatpush.msra.mxu0 %v1890
    %v1892 = vand.u32 %v163, 4294901760
    %1893 = vmatpush.msra.mxu0 %v1892
    %v1894 = vand.u32 %v161, 4294901760
    %1895 = vmatpush.msra.mxu0 %v1894
    %v1896 = vand.u32 %v159, 4294901760
    %1897 = vmatpush.msra.mxu0 %v1896
    %v1898 = vand.u32 %v157, 4294901760
    %1899 = vmatpush.msra.mxu0 %v1898
    %v1900 = vand.u32 %v155, 4294901760
    %1901 = vmatpush.msra.mxu0 %v1900
    %v1902 = vand.u32 %v153, 4294901760
    %1903 = vmatpush.msra.mxu0 %v1902
    %v1904 = vand.u32 %v151, 4294901760
    %1905 = vmatpush.msra.mxu0 %v1904
    %v1906 = vand.u32 %v149, 4294901760
    %1907 = vmatpush.msra.mxu0 %v1906
    %v1908 = vand.u32 %v147, 4294901760
    %1909 = vmatpush.msra.mxu0 %v1908
    %v1910 = vand.u32 %v145, 4294901760
    %1911 = vmatpush.msra.mxu0 %v1910
    %v1912 = vand.u32 %v143, 4294901760
    %1913 = vmatpush.msra.mxu0 %v1912
    %v1914 = vand.u32 %v141, 4294901760
    %1915 = vmatpush.msra.mxu0 %v1914
    %v1916 = vand.u32 %v139, 4294901760
    %1917 = vmatpush.msra.mxu0 %v1916
    %v1918 = vand.u32 %v666, 4294901760
    %v1919 = vsub.f32 %v666, %v1918
    %v1920 = vand.u32 %v1919, 4294901760
    %1921 = vmatmul.f32.gmra.mxu0 %v1920
    %v1922 = vpop.f32.mrf.mxu0
    %v1923 = vadd.f32 %v1884, %v1922
    %1924 = vdwg.mxu0
    %v1925 = vand.u32 %v169, 4294901760
    %v1926 = vsub.f32 %v169, %v1925
    %v1927 = vand.u32 %v1926, 4294901760
    %1928 = vmatpush.msra.mxu0 %v1927
    %v1929 = vand.u32 %v167, 4294901760
    %v1930 = vsub.f32 %v167, %v1929
    %v1931 = vand.u32 %v1930, 4294901760
    %1932 = vmatpush.msra.mxu0 %v1931
    %v1933 = vand.u32 %v165, 4294901760
    %v1934 = vsub.f32 %v165, %v1933
    %v1935 = vand.u32 %v1934, 4294901760
    %1936 = vmatpush.msra.mxu0 %v1935
    %v1937 = vand.u32 %v163, 4294901760
    %v1938 = vsub.f32 %v163, %v1937
    %v1939 = vand.u32 %v1938, 4294901760
    %1940 = vmatpush.msra.mxu0 %v1939
    %v1941 = vand.u32 %v161, 4294901760
    %v1942 = vsub.f32 %v161, %v1941
    %v1943 = vand.u32 %v1942, 4294901760
    %1944 = vmatpush.msra.mxu0 %v1943
    %v1945 = vand.u32 %v159, 4294901760
    %v1946 = vsub.f32 %v159, %v1945
    %v1947 = vand.u32 %v1946, 4294901760
    %1948 = vmatpush.msra.mxu0 %v1947
    %v1949 = vand.u32 %v157, 4294901760
    %v1950 = vsub.f32 %v157, %v1949
    %v1951 = vand.u32 %v1950, 4294901760
    %1952 = vmatpush.msra.mxu0 %v1951
    %v1953 = vand.u32 %v155, 4294901760
    %v1954 = vsub.f32 %v155, %v1953
    %v1955 = vand.u32 %v1954, 4294901760
    %1956 = vmatpush.msra.mxu0 %v1955
    %v1957 = vand.u32 %v153, 4294901760
    %v1958 = vsub.f32 %v153, %v1957
    %v1959 = vand.u32 %v1958, 4294901760
    %1960 = vmatpush.msra.mxu0 %v1959
    %v1961 = vand.u32 %v151, 4294901760
    %v1962 = vsub.f32 %v151, %v1961
    %v1963 = vand.u32 %v1962, 4294901760
    %1964 = vmatpush.msra.mxu0 %v1963
    %v1965 = vand.u32 %v149, 4294901760
    %v1966 = vsub.f32 %v149, %v1965
    %v1967 = vand.u32 %v1966, 4294901760
    %1968 = vmatpush.msra.mxu0 %v1967
    %v1969 = vand.u32 %v147, 4294901760
    %v1970 = vsub.f32 %v147, %v1969
    %v1971 = vand.u32 %v1970, 4294901760
    %1972 = vmatpush.msra.mxu0 %v1971
    %v1973 = vand.u32 %v145, 4294901760
    %v1974 = vsub.f32 %v145, %v1973
    %v1975 = vand.u32 %v1974, 4294901760
    %1976 = vmatpush.msra.mxu0 %v1975
    %v1977 = vand.u32 %v143, 4294901760
    %v1978 = vsub.f32 %v143, %v1977
    %v1979 = vand.u32 %v1978, 4294901760
    %1980 = vmatpush.msra.mxu0 %v1979
    %v1981 = vand.u32 %v141, 4294901760
    %v1982 = vsub.f32 %v141, %v1981
    %v1983 = vand.u32 %v1982, 4294901760
    %1984 = vmatpush.msra.mxu0 %v1983
    %v1985 = vand.u32 %v139, 4294901760
    %v1986 = vsub.f32 %v139, %v1985
    %v1987 = vand.u32 %v1986, 4294901760
    %1988 = vmatpush.msra.mxu0 %v1987
    %v1989 = vand.u32 %v666, 4294901760
    %1990 = vmatmul.f32.gmra.mxu0 %v1989
    %v1991 = vpop.f32.mrf.mxu0
    %v1992 = vadd.f32 %v1923, %v1991
    %1993 = vdwg.mxu0
    %v1994 = vand.u32 %v169, 4294901760
    %1995 = vmatpush.msra.mxu0 %v1994
    %v1996 = vand.u32 %v167, 4294901760
    %1997 = vmatpush.msra.mxu0 %v1996
    %v1998 = vand.u32 %v165, 4294901760
    %1999 = vmatpush.msra.mxu0 %v1998
    %v2000 = vand.u32 %v163, 4294901760
    %2001 = vmatpush.msra.mxu0 %v2000
    %v2002 = vand.u32 %v161, 4294901760
    %2003 = vmatpush.msra.mxu0 %v2002
    %v2004 = vand.u32 %v159, 4294901760
    %2005 = vmatpush.msra.mxu0 %v2004
    %v2006 = vand.u32 %v157, 4294901760
    %2007 = vmatpush.msra.mxu0 %v2006
    %v2008 = vand.u32 %v155, 4294901760
    %2009 = vmatpush.msra.mxu0 %v2008
    %v2010 = vand.u32 %v153, 4294901760
    %2011 = vmatpush.msra.mxu0 %v2010
    %v2012 = vand.u32 %v151, 4294901760
    %2013 = vmatpush.msra.mxu0 %v2012
    %v2014 = vand.u32 %v149, 4294901760
    %2015 = vmatpush.msra.mxu0 %v2014
    %v2016 = vand.u32 %v147, 4294901760
    %2017 = vmatpush.msra.mxu0 %v2016
    %v2018 = vand.u32 %v145, 4294901760
    %2019 = vmatpush.msra.mxu0 %v2018
    %v2020 = vand.u32 %v143, 4294901760
    %2021 = vmatpush.msra.mxu0 %v2020
    %v2022 = vand.u32 %v141, 4294901760
    %2023 = vmatpush.msra.mxu0 %v2022
    %v2024 = vand.u32 %v139, 4294901760
    %2025 = vmatpush.msra.mxu0 %v2024
    %v2026 = vand.u32 %v666, 4294901760
    %2027 = vmatmul.f32.gmra.mxu0 %v2026
    %v2028 = vpop.f32.mrf.mxu0
    %v2029 = vadd.f32 %v1992, %v2028
    %2030 = vdwg.mxu0
    %v2031 = vmul.f32 %v665, %v665
    %v2032 = vmul.f32 %v666, %v666
    %v2033 = vand.u32 %v136, 4294901760
    %2034 = vmatpush.msra.mxu0 %v2033
    %v2035 = vand.u32 %v134, 4294901760
    %2036 = vmatpush.msra.mxu0 %v2035
    %v2037 = vand.u32 %v132, 4294901760
    %2038 = vmatpush.msra.mxu0 %v2037
    %v2039 = vand.u32 %v130, 4294901760
    %2040 = vmatpush.msra.mxu0 %v2039
    %v2041 = vand.u32 %v128, 4294901760
    %2042 = vmatpush.msra.mxu0 %v2041
    %v2043 = vand.u32 %v126, 4294901760
    %2044 = vmatpush.msra.mxu0 %v2043
    %v2045 = vand.u32 %v124, 4294901760
    %2046 = vmatpush.msra.mxu0 %v2045
    %v2047 = vand.u32 %v122, 4294901760
    %2048 = vmatpush.msra.mxu0 %v2047
    %v2049 = vand.u32 %v120, 4294901760
    %2050 = vmatpush.msra.mxu0 %v2049
    %v2051 = vand.u32 %v118, 4294901760
    %2052 = vmatpush.msra.mxu0 %v2051
    %v2053 = vand.u32 %v116, 4294901760
    %2054 = vmatpush.msra.mxu0 %v2053
    %v2055 = vand.u32 %v114, 4294901760
    %2056 = vmatpush.msra.mxu0 %v2055
    %v2057 = vand.u32 %v112, 4294901760
    %2058 = vmatpush.msra.mxu0 %v2057
    %v2059 = vand.u32 %v110, 4294901760
    %2060 = vmatpush.msra.mxu0 %v2059
    %v2061 = vand.u32 %v108, 4294901760
    %2062 = vmatpush.msra.mxu0 %v2061
    %v2063 = vand.u32 %v106, 4294901760
    %2064 = vmatpush.msra.mxu0 %v2063
    %v2065 = vand.u32 %v2031, 4294901760
    %v2066 = vsub.f32 %v2031, %v2065
    %v2067 = vand.u32 %v2066, 4294901760
    %v2068 = vsub.f32 %v2066, %v2067
    %v2069 = vand.u32 %v2068, 4294901760
    %2070 = vmatmul.f32.gmra.mxu0 %v2069
    %v2071 = vpop.f32.mrf.mxu0
    %v2072 = vadd.f32 0.0, %v2071
    %2073 = vdwg.mxu0
    %v2074 = vand.u32 %v136, 4294901760
    %v2075 = vsub.f32 %v136, %v2074
    %v2076 = vand.u32 %v2075, 4294901760
    %v2077 = vsub.f32 %v2075, %v2076
    %v2078 = vand.u32 %v2077, 4294901760
    %2079 = vmatpush.msra.mxu0 %v2078
    %v2080 = vand.u32 %v134, 4294901760
    %v2081 = vsub.f32 %v134, %v2080
    %v2082 = vand.u32 %v2081, 4294901760
    %v2083 = vsub.f32 %v2081, %v2082
    %v2084 = vand.u32 %v2083, 4294901760
    %2085 = vmatpush.msra.mxu0 %v2084
    %v2086 = vand.u32 %v132, 4294901760
    %v2087 = vsub.f32 %v132, %v2086
    %v2088 = vand.u32 %v2087, 4294901760
    %v2089 = vsub.f32 %v2087, %v2088
    %v2090 = vand.u32 %v2089, 4294901760
    %2091 = vmatpush.msra.mxu0 %v2090
    %v2092 = vand.u32 %v130, 4294901760
    %v2093 = vsub.f32 %v130, %v2092
    %v2094 = vand.u32 %v2093, 4294901760
    %v2095 = vsub.f32 %v2093, %v2094
    %v2096 = vand.u32 %v2095, 4294901760
    %2097 = vmatpush.msra.mxu0 %v2096
    %v2098 = vand.u32 %v128, 4294901760
    %v2099 = vsub.f32 %v128, %v2098
    %v2100 = vand.u32 %v2099, 4294901760
    %v2101 = vsub.f32 %v2099, %v2100
    %v2102 = vand.u32 %v2101, 4294901760
    %2103 = vmatpush.msra.mxu0 %v2102
    %v2104 = vand.u32 %v126, 4294901760
    %v2105 = vsub.f32 %v126, %v2104
    %v2106 = vand.u32 %v2105, 4294901760
    %v2107 = vsub.f32 %v2105, %v2106
    %v2108 = vand.u32 %v2107, 4294901760
    %2109 = vmatpush.msra.mxu0 %v2108
    %v2110 = vand.u32 %v124, 4294901760
    %v2111 = vsub.f32 %v124, %v2110
    %v2112 = vand.u32 %v2111, 4294901760
    %v2113 = vsub.f32 %v2111, %v2112
    %v2114 = vand.u32 %v2113, 4294901760
    %2115 = vmatpush.msra.mxu0 %v2114
    %v2116 = vand.u32 %v122, 4294901760
    %v2117 = vsub.f32 %v122, %v2116
    %v2118 = vand.u32 %v2117, 4294901760
    %v2119 = vsub.f32 %v2117, %v2118
    %v2120 = vand.u32 %v2119, 4294901760
    %2121 = vmatpush.msra.mxu0 %v2120
    %v2122 = vand.u32 %v120, 4294901760
    %v2123 = vsub.f32 %v120, %v2122
    %v2124 = vand.u32 %v2123, 4294901760
    %v2125 = vsub.f32 %v2123, %v2124
    %v2126 = vand.u32 %v2125, 4294901760
    %2127 = vmatpush.msra.mxu0 %v2126
    %v2128 = vand.u32 %v118, 4294901760
    %v2129 = vsub.f32 %v118, %v2128
    %v2130 = vand.u32 %v2129, 4294901760
    %v2131 = vsub.f32 %v2129, %v2130
    %v2132 = vand.u32 %v2131, 4294901760
    %2133 = vmatpush.msra.mxu0 %v2132
    %v2134 = vand.u32 %v116, 4294901760
    %v2135 = vsub.f32 %v116, %v2134
    %v2136 = vand.u32 %v2135, 4294901760
    %v2137 = vsub.f32 %v2135, %v2136
    %v2138 = vand.u32 %v2137, 4294901760
    %2139 = vmatpush.msra.mxu0 %v2138
    %v2140 = vand.u32 %v114, 4294901760
    %v2141 = vsub.f32 %v114, %v2140
    %v2142 = vand.u32 %v2141, 4294901760
    %v2143 = vsub.f32 %v2141, %v2142
    %v2144 = vand.u32 %v2143, 4294901760
    %2145 = vmatpush.msra.mxu0 %v2144
    %v2146 = vand.u32 %v112, 4294901760
    %v2147 = vsub.f32 %v112, %v2146
    %v2148 = vand.u32 %v2147, 4294901760
    %v2149 = vsub.f32 %v2147, %v2148
    %v2150 = vand.u32 %v2149, 4294901760
    %2151 = vmatpush.msra.mxu0 %v2150
    %v2152 = vand.u32 %v110, 4294901760
    %v2153 = vsub.f32 %v110, %v2152
    %v2154 = vand.u32 %v2153, 4294901760
    %v2155 = vsub.f32 %v2153, %v2154
    %v2156 = vand.u32 %v2155, 4294901760
    %2157 = vmatpush.msra.mxu0 %v2156
    %v2158 = vand.u32 %v108, 4294901760
    %v2159 = vsub.f32 %v108, %v2158
    %v2160 = vand.u32 %v2159, 4294901760
    %v2161 = vsub.f32 %v2159, %v2160
    %v2162 = vand.u32 %v2161, 4294901760
    %2163 = vmatpush.msra.mxu0 %v2162
    %v2164 = vand.u32 %v106, 4294901760
    %v2165 = vsub.f32 %v106, %v2164
    %v2166 = vand.u32 %v2165, 4294901760
    %v2167 = vsub.f32 %v2165, %v2166
    %v2168 = vand.u32 %v2167, 4294901760
    %2169 = vmatpush.msra.mxu0 %v2168
    %v2170 = vand.u32 %v2031, 4294901760
    %2171 = vmatmul.f32.gmra.mxu0 %v2170
    %v2172 = vpop.f32.mrf.mxu0
    %v2173 = vadd.f32 %v2072, %v2172
    %2174 = vdwg.mxu0
    %v2175 = vand.u32 %v136, 4294901760
    %v2176 = vsub.f32 %v136, %v2175
    %2177 = vmatpush.msra.mxu0 %v2176
    %v2178 = vand.u32 %v134, 4294901760
    %v2179 = vsub.f32 %v134, %v2178
    %2180 = vmatpush.msra.mxu0 %v2179
    %v2181 = vand.u32 %v132, 4294901760
    %v2182 = vsub.f32 %v132, %v2181
    %2183 = vmatpush.msra.mxu0 %v2182
    %v2184 = vand.u32 %v130, 4294901760
    %v2185 = vsub.f32 %v130, %v2184
    %2186 = vmatpush.msra.mxu0 %v2185
    %v2187 = vand.u32 %v128, 4294901760
    %v2188 = vsub.f32 %v128, %v2187
    %2189 = vmatpush.msra.mxu0 %v2188
    %v2190 = vand.u32 %v126, 4294901760
    %v2191 = vsub.f32 %v126, %v2190
    %2192 = vmatpush.msra.mxu0 %v2191
    %v2193 = vand.u32 %v124, 4294901760
    %v2194 = vsub.f32 %v124, %v2193
    %2195 = vmatpush.msra.mxu0 %v2194
    %v2196 = vand.u32 %v122, 4294901760
    %v2197 = vsub.f32 %v122, %v2196
    %2198 = vmatpush.msra.mxu0 %v2197
    %v2199 = vand.u32 %v120, 4294901760
    %v2200 = vsub.f32 %v120, %v2199
    %2201 = vmatpush.msra.mxu0 %v2200
    %v2202 = vand.u32 %v118, 4294901760
    %v2203 = vsub.f32 %v118, %v2202
    %2204 = vmatpush.msra.mxu0 %v2203
    %v2205 = vand.u32 %v116, 4294901760
    %v2206 = vsub.f32 %v116, %v2205
    %2207 = vmatpush.msra.mxu0 %v2206
    %v2208 = vand.u32 %v114, 4294901760
    %v2209 = vsub.f32 %v114, %v2208
    %2210 = vmatpush.msra.mxu0 %v2209
    %v2211 = vand.u32 %v112, 4294901760
    %v2212 = vsub.f32 %v112, %v2211
    %2213 = vmatpush.msra.mxu0 %v2212
    %v2214 = vand.u32 %v110, 4294901760
    %v2215 = vsub.f32 %v110, %v2214
    %2216 = vmatpush.msra.mxu0 %v2215
    %v2217 = vand.u32 %v108, 4294901760
    %v2218 = vsub.f32 %v108, %v2217
    %2219 = vmatpush.msra.mxu0 %v2218
    %v2220 = vand.u32 %v106, 4294901760
    %v2221 = vsub.f32 %v106, %v2220
    %2222 = vmatpush.msra.mxu0 %v2221
    %v2223 = vand.u32 %v2031, 4294901760
    %v2224 = vsub.f32 %v2031, %v2223
    %2225 = vmatmul.f32.gmra.mxu0 %v2224
    %v2226 = vpop.f32.mrf.mxu0
    %v2227 = vadd.f32 %v2173, %v2226
    %2228 = vdwg.mxu0
    %v2229 = vand.u32 %v136, 4294901760
    %2230 = vmatpush.msra.mxu0 %v2229
    %v2231 = vand.u32 %v134, 4294901760
    %2232 = vmatpush.msra.mxu0 %v2231
    %v2233 = vand.u32 %v132, 4294901760
    %2234 = vmatpush.msra.mxu0 %v2233
    %v2235 = vand.u32 %v130, 4294901760
    %2236 = vmatpush.msra.mxu0 %v2235
    %v2237 = vand.u32 %v128, 4294901760
    %2238 = vmatpush.msra.mxu0 %v2237
    %v2239 = vand.u32 %v126, 4294901760
    %2240 = vmatpush.msra.mxu0 %v2239
    %v2241 = vand.u32 %v124, 4294901760
    %2242 = vmatpush.msra.mxu0 %v2241
    %v2243 = vand.u32 %v122, 4294901760
    %2244 = vmatpush.msra.mxu0 %v2243
    %v2245 = vand.u32 %v120, 4294901760
    %2246 = vmatpush.msra.mxu0 %v2245
    %v2247 = vand.u32 %v118, 4294901760
    %2248 = vmatpush.msra.mxu0 %v2247
    %v2249 = vand.u32 %v116, 4294901760
    %2250 = vmatpush.msra.mxu0 %v2249
    %v2251 = vand.u32 %v114, 4294901760
    %2252 = vmatpush.msra.mxu0 %v2251
    %v2253 = vand.u32 %v112, 4294901760
    %2254 = vmatpush.msra.mxu0 %v2253
    %v2255 = vand.u32 %v110, 4294901760
    %2256 = vmatpush.msra.mxu0 %v2255
    %v2257 = vand.u32 %v108, 4294901760
    %2258 = vmatpush.msra.mxu0 %v2257
    %v2259 = vand.u32 %v106, 4294901760
    %2260 = vmatpush.msra.mxu0 %v2259
    %v2261 = vand.u32 %v2031, 4294901760
    %v2262 = vsub.f32 %v2031, %v2261
    %v2263 = vand.u32 %v2262, 4294901760
    %2264 = vmatmul.f32.gmra.mxu0 %v2263
    %v2265 = vpop.f32.mrf.mxu0
    %v2266 = vadd.f32 %v2227, %v2265
    %2267 = vdwg.mxu0
    %v2268 = vand.u32 %v136, 4294901760
    %v2269 = vsub.f32 %v136, %v2268
    %v2270 = vand.u32 %v2269, 4294901760
    %2271 = vmatpush.msra.mxu0 %v2270
    %v2272 = vand.u32 %v134, 4294901760
    %v2273 = vsub.f32 %v134, %v2272
    %v2274 = vand.u32 %v2273, 4294901760
    %2275 = vmatpush.msra.mxu0 %v2274
    %v2276 = vand.u32 %v132, 4294901760
    %v2277 = vsub.f32 %v132, %v2276
    %v2278 = vand.u32 %v2277, 4294901760
    %2279 = vmatpush.msra.mxu0 %v2278
    %v2280 = vand.u32 %v130, 4294901760
    %v2281 = vsub.f32 %v130, %v2280
    %v2282 = vand.u32 %v2281, 4294901760
    %2283 = vmatpush.msra.mxu0 %v2282
    %v2284 = vand.u32 %v128, 4294901760
    %v2285 = vsub.f32 %v128, %v2284
    %v2286 = vand.u32 %v2285, 4294901760
    %2287 = vmatpush.msra.mxu0 %v2286
    %v2288 = vand.u32 %v126, 4294901760
    %v2289 = vsub.f32 %v126, %v2288
    %v2290 = vand.u32 %v2289, 4294901760
    %2291 = vmatpush.msra.mxu0 %v2290
    %v2292 = vand.u32 %v124, 4294901760
    %v2293 = vsub.f32 %v124, %v2292
    %v2294 = vand.u32 %v2293, 4294901760
    %2295 = vmatpush.msra.mxu0 %v2294
    %v2296 = vand.u32 %v122, 4294901760
    %v2297 = vsub.f32 %v122, %v2296
    %v2298 = vand.u32 %v2297, 4294901760
    %2299 = vmatpush.msra.mxu0 %v2298
    %v2300 = vand.u32 %v120, 4294901760
    %v2301 = vsub.f32 %v120, %v2300
    %v2302 = vand.u32 %v2301, 4294901760
    %2303 = vmatpush.msra.mxu0 %v2302
    %v2304 = vand.u32 %v118, 4294901760
    %v2305 = vsub.f32 %v118, %v2304
    %v2306 = vand.u32 %v2305, 4294901760
    %2307 = vmatpush.msra.mxu0 %v2306
    %v2308 = vand.u32 %v116, 4294901760
    %v2309 = vsub.f32 %v116, %v2308
    %v2310 = vand.u32 %v2309, 4294901760
    %2311 = vmatpush.msra.mxu0 %v2310
    %v2312 = vand.u32 %v114, 4294901760
    %v2313 = vsub.f32 %v114, %v2312
    %v2314 = vand.u32 %v2313, 4294901760
    %2315 = vmatpush.msra.mxu0 %v2314
    %v2316 = vand.u32 %v112, 4294901760
    %v2317 = vsub.f32 %v112, %v2316
    %v2318 = vand.u32 %v2317, 4294901760
    %2319 = vmatpush.msra.mxu0 %v2318
    %v2320 = vand.u32 %v110, 4294901760
    %v2321 = vsub.f32 %v110, %v2320
    %v2322 = vand.u32 %v2321, 4294901760
    %2323 = vmatpush.msra.mxu0 %v2322
    %v2324 = vand.u32 %v108, 4294901760
    %v2325 = vsub.f32 %v108, %v2324
    %v2326 = vand.u32 %v2325, 4294901760
    %2327 = vmatpush.msra.mxu0 %v2326
    %v2328 = vand.u32 %v106, 4294901760
    %v2329 = vsub.f32 %v106, %v2328
    %v2330 = vand.u32 %v2329, 4294901760
    %2331 = vmatpush.msra.mxu0 %v2330
    %v2332 = vand.u32 %v2031, 4294901760
    %2333 = vmatmul.f32.gmra.mxu0 %v2332
    %v2334 = vpop.f32.mrf.mxu0
    %v2335 = vadd.f32 %v2266, %v2334
    %2336 = vdwg.mxu0
    %v2337 = vand.u32 %v136, 4294901760
    %2338 = vmatpush.msra.mxu0 %v2337
    %v2339 = vand.u32 %v134, 4294901760
    %2340 = vmatpush.msra.mxu0 %v2339
    %v2341 = vand.u32 %v132, 4294901760
    %2342 = vmatpush.msra.mxu0 %v2341
    %v2343 = vand.u32 %v130, 4294901760
    %2344 = vmatpush.msra.mxu0 %v2343
    %v2345 = vand.u32 %v128, 4294901760
    %2346 = vmatpush.msra.mxu0 %v2345
    %v2347 = vand.u32 %v126, 4294901760
    %2348 = vmatpush.msra.mxu0 %v2347
    %v2349 = vand.u32 %v124, 4294901760
    %2350 = vmatpush.msra.mxu0 %v2349
    %v2351 = vand.u32 %v122, 4294901760
    %2352 = vmatpush.msra.mxu0 %v2351
    %v2353 = vand.u32 %v120, 4294901760
    %2354 = vmatpush.msra.mxu0 %v2353
    %v2355 = vand.u32 %v118, 4294901760
    %2356 = vmatpush.msra.mxu0 %v2355
    %v2357 = vand.u32 %v116, 4294901760
    %2358 = vmatpush.msra.mxu0 %v2357
    %v2359 = vand.u32 %v114, 4294901760
    %2360 = vmatpush.msra.mxu0 %v2359
    %v2361 = vand.u32 %v112, 4294901760
    %2362 = vmatpush.msra.mxu0 %v2361
    %v2363 = vand.u32 %v110, 4294901760
    %2364 = vmatpush.msra.mxu0 %v2363
    %v2365 = vand.u32 %v108, 4294901760
    %2366 = vmatpush.msra.mxu0 %v2365
    %v2367 = vand.u32 %v106, 4294901760
    %2368 = vmatpush.msra.mxu0 %v2367
    %v2369 = vand.u32 %v2031, 4294901760
    %2370 = vmatmul.f32.gmra.mxu0 %v2369
    %v2371 = vpop.f32.mrf.mxu0
    %v2372 = vadd.f32 %v2335, %v2371
    %2373 = vdwg.mxu0
    %v2374 = vand.u32 %v168, 4294901760
    %2375 = vmatpush.msra.mxu0 %v2374
    %v2376 = vand.u32 %v166, 4294901760
    %2377 = vmatpush.msra.mxu0 %v2376
    %v2378 = vand.u32 %v164, 4294901760
    %2379 = vmatpush.msra.mxu0 %v2378
    %v2380 = vand.u32 %v162, 4294901760
    %2381 = vmatpush.msra.mxu0 %v2380
    %v2382 = vand.u32 %v160, 4294901760
    %2383 = vmatpush.msra.mxu0 %v2382
    %v2384 = vand.u32 %v158, 4294901760
    %2385 = vmatpush.msra.mxu0 %v2384
    %v2386 = vand.u32 %v156, 4294901760
    %2387 = vmatpush.msra.mxu0 %v2386
    %v2388 = vand.u32 %v154, 4294901760
    %2389 = vmatpush.msra.mxu0 %v2388
    %v2390 = vand.u32 %v152, 4294901760
    %2391 = vmatpush.msra.mxu0 %v2390
    %v2392 = vand.u32 %v150, 4294901760
    %2393 = vmatpush.msra.mxu0 %v2392
    %v2394 = vand.u32 %v148, 4294901760
    %2395 = vmatpush.msra.mxu0 %v2394
    %v2396 = vand.u32 %v146, 4294901760
    %2397 = vmatpush.msra.mxu0 %v2396
    %v2398 = vand.u32 %v144, 4294901760
    %2399 = vmatpush.msra.mxu0 %v2398
    %v2400 = vand.u32 %v142, 4294901760
    %2401 = vmatpush.msra.mxu0 %v2400
    %v2402 = vand.u32 %v140, 4294901760
    %2403 = vmatpush.msra.mxu0 %v2402
    %v2404 = vand.u32 %v138, 4294901760
    %2405 = vmatpush.msra.mxu0 %v2404
    %v2406 = vand.u32 %v2032, 4294901760
    %v2407 = vsub.f32 %v2032, %v2406
    %v2408 = vand.u32 %v2407, 4294901760
    %v2409 = vsub.f32 %v2407, %v2408
    %v2410 = vand.u32 %v2409, 4294901760
    %2411 = vmatmul.f32.gmra.mxu0 %v2410
    %v2412 = vpop.f32.mrf.mxu0
    %v2413 = vadd.f32 %v2372, %v2412
    %2414 = vdwg.mxu0
    %v2415 = vand.u32 %v168, 4294901760
    %v2416 = vsub.f32 %v168, %v2415
    %v2417 = vand.u32 %v2416, 4294901760
    %v2418 = vsub.f32 %v2416, %v2417
    %v2419 = vand.u32 %v2418, 4294901760
    %2420 = vmatpush.msra.mxu0 %v2419
    %v2421 = vand.u32 %v166, 4294901760
    %v2422 = vsub.f32 %v166, %v2421
    %v2423 = vand.u32 %v2422, 4294901760
    %v2424 = vsub.f32 %v2422, %v2423
    %v2425 = vand.u32 %v2424, 4294901760
    %2426 = vmatpush.msra.mxu0 %v2425
    %v2427 = vand.u32 %v164, 4294901760
    %v2428 = vsub.f32 %v164, %v2427
    %v2429 = vand.u32 %v2428, 4294901760
    %v2430 = vsub.f32 %v2428, %v2429
    %v2431 = vand.u32 %v2430, 4294901760
    %2432 = vmatpush.msra.mxu0 %v2431
    %v2433 = vand.u32 %v162, 4294901760
    %v2434 = vsub.f32 %v162, %v2433
    %v2435 = vand.u32 %v2434, 4294901760
    %v2436 = vsub.f32 %v2434, %v2435
    %v2437 = vand.u32 %v2436, 4294901760
    %2438 = vmatpush.msra.mxu0 %v2437
    %v2439 = vand.u32 %v160, 4294901760
    %v2440 = vsub.f32 %v160, %v2439
    %v2441 = vand.u32 %v2440, 4294901760
    %v2442 = vsub.f32 %v2440, %v2441
    %v2443 = vand.u32 %v2442, 4294901760
    %2444 = vmatpush.msra.mxu0 %v2443
    %v2445 = vand.u32 %v158, 4294901760
    %v2446 = vsub.f32 %v158, %v2445
    %v2447 = vand.u32 %v2446, 4294901760
    %v2448 = vsub.f32 %v2446, %v2447
    %v2449 = vand.u32 %v2448, 4294901760
    %2450 = vmatpush.msra.mxu0 %v2449
    %v2451 = vand.u32 %v156, 4294901760
    %v2452 = vsub.f32 %v156, %v2451
    %v2453 = vand.u32 %v2452, 4294901760
    %v2454 = vsub.f32 %v2452, %v2453
    %v2455 = vand.u32 %v2454, 4294901760
    %2456 = vmatpush.msra.mxu0 %v2455
    %v2457 = vand.u32 %v154, 4294901760
    %v2458 = vsub.f32 %v154, %v2457
    %v2459 = vand.u32 %v2458, 4294901760
    %v2460 = vsub.f32 %v2458, %v2459
    %v2461 = vand.u32 %v2460, 4294901760
    %2462 = vmatpush.msra.mxu0 %v2461
    %v2463 = vand.u32 %v152, 4294901760
    %v2464 = vsub.f32 %v152, %v2463
    %v2465 = vand.u32 %v2464, 4294901760
    %v2466 = vsub.f32 %v2464, %v2465
    %v2467 = vand.u32 %v2466, 4294901760
    %2468 = vmatpush.msra.mxu0 %v2467
    %v2469 = vand.u32 %v150, 4294901760
    %v2470 = vsub.f32 %v150, %v2469
    %v2471 = vand.u32 %v2470, 4294901760
    %v2472 = vsub.f32 %v2470, %v2471
    %v2473 = vand.u32 %v2472, 4294901760
    %2474 = vmatpush.msra.mxu0 %v2473
    %v2475 = vand.u32 %v148, 4294901760
    %v2476 = vsub.f32 %v148, %v2475
    %v2477 = vand.u32 %v2476, 4294901760
    %v2478 = vsub.f32 %v2476, %v2477
    %v2479 = vand.u32 %v2478, 4294901760
    %2480 = vmatpush.msra.mxu0 %v2479
    %v2481 = vand.u32 %v146, 4294901760
    %v2482 = vsub.f32 %v146, %v2481
    %v2483 = vand.u32 %v2482, 4294901760
    %v2484 = vsub.f32 %v2482, %v2483
    %v2485 = vand.u32 %v2484, 4294901760
    %2486 = vmatpush.msra.mxu0 %v2485
    %v2487 = vand.u32 %v144, 4294901760
    %v2488 = vsub.f32 %v144, %v2487
    %v2489 = vand.u32 %v2488, 4294901760
    %v2490 = vsub.f32 %v2488, %v2489
    %v2491 = vand.u32 %v2490, 4294901760
    %2492 = vmatpush.msra.mxu0 %v2491
    %v2493 = vand.u32 %v142, 4294901760
    %v2494 = vsub.f32 %v142, %v2493
    %v2495 = vand.u32 %v2494, 4294901760
    %v2496 = vsub.f32 %v2494, %v2495
    %v2497 = vand.u32 %v2496, 4294901760
    %2498 = vmatpush.msra.mxu0 %v2497
    %v2499 = vand.u32 %v140, 4294901760
    %v2500 = vsub.f32 %v140, %v2499
    %v2501 = vand.u32 %v2500, 4294901760
    %v2502 = vsub.f32 %v2500, %v2501
    %v2503 = vand.u32 %v2502, 4294901760
    %2504 = vmatpush.msra.mxu0 %v2503
    %v2505 = vand.u32 %v138, 4294901760
    %v2506 = vsub.f32 %v138, %v2505
    %v2507 = vand.u32 %v2506, 4294901760
    %v2508 = vsub.f32 %v2506, %v2507
    %v2509 = vand.u32 %v2508, 4294901760
    %2510 = vmatpush.msra.mxu0 %v2509
    %v2511 = vand.u32 %v2032, 4294901760
    %2512 = vmatmul.f32.gmra.mxu0 %v2511
    %v2513 = vpop.f32.mrf.mxu0
    %v2514 = vadd.f32 %v2413, %v2513
    %2515 = vdwg.mxu0
    %v2516 = vand.u32 %v168, 4294901760
    %v2517 = vsub.f32 %v168, %v2516
    %2518 = vmatpush.msra.mxu0 %v2517
    %v2519 = vand.u32 %v166, 4294901760
    %v2520 = vsub.f32 %v166, %v2519
    %2521 = vmatpush.msra.mxu0 %v2520
    %v2522 = vand.u32 %v164, 4294901760
    %v2523 = vsub.f32 %v164, %v2522
    %2524 = vmatpush.msra.mxu0 %v2523
    %v2525 = vand.u32 %v162, 4294901760
    %v2526 = vsub.f32 %v162, %v2525
    %2527 = vmatpush.msra.mxu0 %v2526
    %v2528 = vand.u32 %v160, 4294901760
    %v2529 = vsub.f32 %v160, %v2528
    %2530 = vmatpush.msra.mxu0 %v2529
    %v2531 = vand.u32 %v158, 4294901760
    %v2532 = vsub.f32 %v158, %v2531
    %2533 = vmatpush.msra.mxu0 %v2532
    %v2534 = vand.u32 %v156, 4294901760
    %v2535 = vsub.f32 %v156, %v2534
    %2536 = vmatpush.msra.mxu0 %v2535
    %v2537 = vand.u32 %v154, 4294901760
    %v2538 = vsub.f32 %v154, %v2537
    %2539 = vmatpush.msra.mxu0 %v2538
    %v2540 = vand.u32 %v152, 4294901760
    %v2541 = vsub.f32 %v152, %v2540
    %2542 = vmatpush.msra.mxu0 %v2541
    %v2543 = vand.u32 %v150, 4294901760
    %v2544 = vsub.f32 %v150, %v2543
    %2545 = vmatpush.msra.mxu0 %v2544
    %v2546 = vand.u32 %v148, 4294901760
    %v2547 = vsub.f32 %v148, %v2546
    %2548 = vmatpush.msra.mxu0 %v2547
    %v2549 = vand.u32 %v146, 4294901760
    %v2550 = vsub.f32 %v146, %v2549
    %2551 = vmatpush.msra.mxu0 %v2550
    %v2552 = vand.u32 %v144, 4294901760
    %v2553 = vsub.f32 %v144, %v2552
    %2554 = vmatpush.msra.mxu0 %v2553
    %v2555 = vand.u32 %v142, 4294901760
    %v2556 = vsub.f32 %v142, %v2555
    %2557 = vmatpush.msra.mxu0 %v2556
    %v2558 = vand.u32 %v140, 4294901760
    %v2559 = vsub.f32 %v140, %v2558
    %2560 = vmatpush.msra.mxu0 %v2559
    %v2561 = vand.u32 %v138, 4294901760
    %v2562 = vsub.f32 %v138, %v2561
    %2563 = vmatpush.msra.mxu0 %v2562
    %v2564 = vand.u32 %v2032, 4294901760
    %v2565 = vsub.f32 %v2032, %v2564
    %2566 = vmatmul.f32.gmra.mxu0 %v2565
    %v2567 = vpop.f32.mrf.mxu0
    %v2568 = vadd.f32 %v2514, %v2567
    %2569 = vdwg.mxu0
    %v2570 = vand.u32 %v168, 4294901760
    %2571 = vmatpush.msra.mxu0 %v2570
    %v2572 = vand.u32 %v166, 4294901760
    %2573 = vmatpush.msra.mxu0 %v2572
    %v2574 = vand.u32 %v164, 4294901760
    %2575 = vmatpush.msra.mxu0 %v2574
    %v2576 = vand.u32 %v162, 4294901760
    %2577 = vmatpush.msra.mxu0 %v2576
    %v2578 = vand.u32 %v160, 4294901760
    %2579 = vmatpush.msra.mxu0 %v2578
    %v2580 = vand.u32 %v158, 4294901760
    %2581 = vmatpush.msra.mxu0 %v2580
    %v2582 = vand.u32 %v156, 4294901760
    %2583 = vmatpush.msra.mxu0 %v2582
    %v2584 = vand.u32 %v154, 4294901760
    %2585 = vmatpush.msra.mxu0 %v2584
    %v2586 = vand.u32 %v152, 4294901760
    %2587 = vmatpush.msra.mxu0 %v2586
    %v2588 = vand.u32 %v150, 4294901760
    %2589 = vmatpush.msra.mxu0 %v2588
    %v2590 = vand.u32 %v148, 4294901760
    %2591 = vmatpush.msra.mxu0 %v2590
    %v2592 = vand.u32 %v146, 4294901760
    %2593 = vmatpush.msra.mxu0 %v2592
    %v2594 = vand.u32 %v144, 4294901760
    %2595 = vmatpush.msra.mxu0 %v2594
    %v2596 = vand.u32 %v142, 4294901760
    %2597 = vmatpush.msra.mxu0 %v2596
    %v2598 = vand.u32 %v140, 4294901760
    %2599 = vmatpush.msra.mxu0 %v2598
    %v2600 = vand.u32 %v138, 4294901760
    %2601 = vmatpush.msra.mxu0 %v2600
    %v2602 = vand.u32 %v2032, 4294901760
    %v2603 = vsub.f32 %v2032, %v2602
    %v2604 = vand.u32 %v2603, 4294901760
    %2605 = vmatmul.f32.gmra.mxu0 %v2604
    %v2606 = vpop.f32.mrf.mxu0
    %v2607 = vadd.f32 %v2568, %v2606
    %2608 = vdwg.mxu0
    %v2609 = vand.u32 %v168, 4294901760
    %v2610 = vsub.f32 %v168, %v2609
    %v2611 = vand.u32 %v2610, 4294901760
    %2612 = vmatpush.msra.mxu0 %v2611
    %v2613 = vand.u32 %v166, 4294901760
    %v2614 = vsub.f32 %v166, %v2613
    %v2615 = vand.u32 %v2614, 4294901760
    %2616 = vmatpush.msra.mxu0 %v2615
    %v2617 = vand.u32 %v164, 4294901760
    %v2618 = vsub.f32 %v164, %v2617
    %v2619 = vand.u32 %v2618, 4294901760
    %2620 = vmatpush.msra.mxu0 %v2619
    %v2621 = vand.u32 %v162, 4294901760
    %v2622 = vsub.f32 %v162, %v2621
    %v2623 = vand.u32 %v2622, 4294901760
    %2624 = vmatpush.msra.mxu0 %v2623
    %v2625 = vand.u32 %v160, 4294901760
    %v2626 = vsub.f32 %v160, %v2625
    %v2627 = vand.u32 %v2626, 4294901760
    %2628 = vmatpush.msra.mxu0 %v2627
    %v2629 = vand.u32 %v158, 4294901760
    %v2630 = vsub.f32 %v158, %v2629
    %v2631 = vand.u32 %v2630, 4294901760
    %2632 = vmatpush.msra.mxu0 %v2631
    %v2633 = vand.u32 %v156, 4294901760
    %v2634 = vsub.f32 %v156, %v2633
    %v2635 = vand.u32 %v2634, 4294901760
    %2636 = vmatpush.msra.mxu0 %v2635
    %v2637 = vand.u32 %v154, 4294901760
    %v2638 = vsub.f32 %v154, %v2637
    %v2639 = vand.u32 %v2638, 4294901760
    %2640 = vmatpush.msra.mxu0 %v2639
    %v2641 = vand.u32 %v152, 4294901760
    %v2642 = vsub.f32 %v152, %v2641
    %v2643 = vand.u32 %v2642, 4294901760
    %2644 = vmatpush.msra.mxu0 %v2643
    %v2645 = vand.u32 %v150, 4294901760
    %v2646 = vsub.f32 %v150, %v2645
    %v2647 = vand.u32 %v2646, 4294901760
    %2648 = vmatpush.msra.mxu0 %v2647
    %v2649 = vand.u32 %v148, 4294901760
    %v2650 = vsub.f32 %v148, %v2649
    %v2651 = vand.u32 %v2650, 4294901760
    %2652 = vmatpush.msra.mxu0 %v2651
    %v2653 = vand.u32 %v146, 4294901760
    %v2654 = vsub.f32 %v146, %v2653
    %v2655 = vand.u32 %v2654, 4294901760
    %2656 = vmatpush.msra.mxu0 %v2655
    %v2657 = vand.u32 %v144, 4294901760
    %v2658 = vsub.f32 %v144, %v2657
    %v2659 = vand.u32 %v2658, 4294901760
    %2660 = vmatpush.msra.mxu0 %v2659
    %v2661 = vand.u32 %v142, 4294901760
    %v2662 = vsub.f32 %v142, %v2661
    %v2663 = vand.u32 %v2662, 4294901760
    %2664 = vmatpush.msra.mxu0 %v2663
    %v2665 = vand.u32 %v140, 4294901760
    %v2666 = vsub.f32 %v140, %v2665
    %v2667 = vand.u32 %v2666, 4294901760
    %2668 = vmatpush.msra.mxu0 %v2667
    %v2669 = vand.u32 %v138, 4294901760
    %v2670 = vsub.f32 %v138, %v2669
    %v2671 = vand.u32 %v2670, 4294901760
    %2672 = vmatpush.msra.mxu0 %v2671
    %v2673 = vand.u32 %v2032, 4294901760
    %2674 = vmatmul.f32.gmra.mxu0 %v2673
    %v2675 = vpop.f32.mrf.mxu0
    %v2676 = vadd.f32 %v2607, %v2675
    %2677 = vdwg.mxu0
    %v2678 = vand.u32 %v168, 4294901760
    %2679 = vmatpush.msra.mxu0 %v2678
    %v2680 = vand.u32 %v166, 4294901760
    %2681 = vmatpush.msra.mxu0 %v2680
    %v2682 = vand.u32 %v164, 4294901760
    %2683 = vmatpush.msra.mxu0 %v2682
    %v2684 = vand.u32 %v162, 4294901760
    %2685 = vmatpush.msra.mxu0 %v2684
    %v2686 = vand.u32 %v160, 4294901760
    %2687 = vmatpush.msra.mxu0 %v2686
    %v2688 = vand.u32 %v158, 4294901760
    %2689 = vmatpush.msra.mxu0 %v2688
    %v2690 = vand.u32 %v156, 4294901760
    %2691 = vmatpush.msra.mxu0 %v2690
    %v2692 = vand.u32 %v154, 4294901760
    %2693 = vmatpush.msra.mxu0 %v2692
    %v2694 = vand.u32 %v152, 4294901760
    %2695 = vmatpush.msra.mxu0 %v2694
    %v2696 = vand.u32 %v150, 4294901760
    %2697 = vmatpush.msra.mxu0 %v2696
    %v2698 = vand.u32 %v148, 4294901760
    %2699 = vmatpush.msra.mxu0 %v2698
    %v2700 = vand.u32 %v146, 4294901760
    %2701 = vmatpush.msra.mxu0 %v2700
    %v2702 = vand.u32 %v144, 4294901760
    %2703 = vmatpush.msra.mxu0 %v2702
    %v2704 = vand.u32 %v142, 4294901760
    %2705 = vmatpush.msra.mxu0 %v2704
    %v2706 = vand.u32 %v140, 4294901760
    %2707 = vmatpush.msra.mxu0 %v2706
    %v2708 = vand.u32 %v138, 4294901760
    %2709 = vmatpush.msra.mxu0 %v2708
    %v2710 = vand.u32 %v2032, 4294901760
    %2711 = vmatmul.f32.gmra.mxu0 %v2710
    %v2712 = vpop.f32.mrf.mxu0
    %v2713 = vadd.f32 %v2676, %v2712
    %2714 = vdwg.mxu0
    %v2715 = vand.u32 %v137, 4294901760
    %2716 = vmatpush.msra.mxu0 %v2715
    %v2717 = vand.u32 %v135, 4294901760
    %2718 = vmatpush.msra.mxu0 %v2717
    %v2719 = vand.u32 %v133, 4294901760
    %2720 = vmatpush.msra.mxu0 %v2719
    %v2721 = vand.u32 %v131, 4294901760
    %2722 = vmatpush.msra.mxu0 %v2721
    %v2723 = vand.u32 %v129, 4294901760
    %2724 = vmatpush.msra.mxu0 %v2723
    %v2725 = vand.u32 %v127, 4294901760
    %2726 = vmatpush.msra.mxu0 %v2725
    %v2727 = vand.u32 %v125, 4294901760
    %2728 = vmatpush.msra.mxu0 %v2727
    %v2729 = vand.u32 %v123, 4294901760
    %2730 = vmatpush.msra.mxu0 %v2729
    %v2731 = vand.u32 %v121, 4294901760
    %2732 = vmatpush.msra.mxu0 %v2731
    %v2733 = vand.u32 %v119, 4294901760
    %2734 = vmatpush.msra.mxu0 %v2733
    %v2735 = vand.u32 %v117, 4294901760
    %2736 = vmatpush.msra.mxu0 %v2735
    %v2737 = vand.u32 %v115, 4294901760
    %2738 = vmatpush.msra.mxu0 %v2737
    %v2739 = vand.u32 %v113, 4294901760
    %2740 = vmatpush.msra.mxu0 %v2739
    %v2741 = vand.u32 %v111, 4294901760
    %2742 = vmatpush.msra.mxu0 %v2741
    %v2743 = vand.u32 %v109, 4294901760
    %2744 = vmatpush.msra.mxu0 %v2743
    %v2745 = vand.u32 %v107, 4294901760
    %2746 = vmatpush.msra.mxu0 %v2745
    %v2747 = vand.u32 %v2031, 4294901760
    %v2748 = vsub.f32 %v2031, %v2747
    %v2749 = vand.u32 %v2748, 4294901760
    %v2750 = vsub.f32 %v2748, %v2749
    %v2751 = vand.u32 %v2750, 4294901760
    %2752 = vmatmul.f32.gmra.mxu0 %v2751
    %v2753 = vpop.f32.mrf.mxu0
    %v2754 = vadd.f32 0.0, %v2753
    %2755 = vdwg.mxu0
    %v2756 = vand.u32 %v137, 4294901760
    %v2757 = vsub.f32 %v137, %v2756
    %v2758 = vand.u32 %v2757, 4294901760
    %v2759 = vsub.f32 %v2757, %v2758
    %v2760 = vand.u32 %v2759, 4294901760
    %2761 = vmatpush.msra.mxu0 %v2760
    %v2762 = vand.u32 %v135, 4294901760
    %v2763 = vsub.f32 %v135, %v2762
    %v2764 = vand.u32 %v2763, 4294901760
    %v2765 = vsub.f32 %v2763, %v2764
    %v2766 = vand.u32 %v2765, 4294901760
    %2767 = vmatpush.msra.mxu0 %v2766
    %v2768 = vand.u32 %v133, 4294901760
    %v2769 = vsub.f32 %v133, %v2768
    %v2770 = vand.u32 %v2769, 4294901760
    %v2771 = vsub.f32 %v2769, %v2770
    %v2772 = vand.u32 %v2771, 4294901760
    %2773 = vmatpush.msra.mxu0 %v2772
    %v2774 = vand.u32 %v131, 4294901760
    %v2775 = vsub.f32 %v131, %v2774
    %v2776 = vand.u32 %v2775, 4294901760
    %v2777 = vsub.f32 %v2775, %v2776
    %v2778 = vand.u32 %v2777, 4294901760
    %2779 = vmatpush.msra.mxu0 %v2778
    %v2780 = vand.u32 %v129, 4294901760
    %v2781 = vsub.f32 %v129, %v2780
    %v2782 = vand.u32 %v2781, 4294901760
    %v2783 = vsub.f32 %v2781, %v2782
    %v2784 = vand.u32 %v2783, 4294901760
    %2785 = vmatpush.msra.mxu0 %v2784
    %v2786 = vand.u32 %v127, 4294901760
    %v2787 = vsub.f32 %v127, %v2786
    %v2788 = vand.u32 %v2787, 4294901760
    %v2789 = vsub.f32 %v2787, %v2788
    %v2790 = vand.u32 %v2789, 4294901760
    %2791 = vmatpush.msra.mxu0 %v2790
    %v2792 = vand.u32 %v125, 4294901760
    %v2793 = vsub.f32 %v125, %v2792
    %v2794 = vand.u32 %v2793, 4294901760
    %v2795 = vsub.f32 %v2793, %v2794
    %v2796 = vand.u32 %v2795, 4294901760
    %2797 = vmatpush.msra.mxu0 %v2796
    %v2798 = vand.u32 %v123, 4294901760
    %v2799 = vsub.f32 %v123, %v2798
    %v2800 = vand.u32 %v2799, 4294901760
    %v2801 = vsub.f32 %v2799, %v2800
    %v2802 = vand.u32 %v2801, 4294901760
    %2803 = vmatpush.msra.mxu0 %v2802
    %v2804 = vand.u32 %v121, 4294901760
    %v2805 = vsub.f32 %v121, %v2804
    %v2806 = vand.u32 %v2805, 4294901760
    %v2807 = vsub.f32 %v2805, %v2806
    %v2808 = vand.u32 %v2807, 4294901760
    %2809 = vmatpush.msra.mxu0 %v2808
    %v2810 = vand.u32 %v119, 4294901760
    %v2811 = vsub.f32 %v119, %v2810
    %v2812 = vand.u32 %v2811, 4294901760
    %v2813 = vsub.f32 %v2811, %v2812
    %v2814 = vand.u32 %v2813, 4294901760
    %2815 = vmatpush.msra.mxu0 %v2814
    %v2816 = vand.u32 %v117, 4294901760
    %v2817 = vsub.f32 %v117, %v2816
    %v2818 = vand.u32 %v2817, 4294901760
    %v2819 = vsub.f32 %v2817, %v2818
    %v2820 = vand.u32 %v2819, 4294901760
    %2821 = vmatpush.msra.mxu0 %v2820
    %v2822 = vand.u32 %v115, 4294901760
    %v2823 = vsub.f32 %v115, %v2822
    %v2824 = vand.u32 %v2823, 4294901760
    %v2825 = vsub.f32 %v2823, %v2824
    %v2826 = vand.u32 %v2825, 4294901760
    %2827 = vmatpush.msra.mxu0 %v2826
    %v2828 = vand.u32 %v113, 4294901760
    %v2829 = vsub.f32 %v113, %v2828
    %v2830 = vand.u32 %v2829, 4294901760
    %v2831 = vsub.f32 %v2829, %v2830
    %v2832 = vand.u32 %v2831, 4294901760
    %2833 = vmatpush.msra.mxu0 %v2832
    %v2834 = vand.u32 %v111, 4294901760
    %v2835 = vsub.f32 %v111, %v2834
    %v2836 = vand.u32 %v2835, 4294901760
    %v2837 = vsub.f32 %v2835, %v2836
    %v2838 = vand.u32 %v2837, 4294901760
    %2839 = vmatpush.msra.mxu0 %v2838
    %v2840 = vand.u32 %v109, 4294901760
    %v2841 = vsub.f32 %v109, %v2840
    %v2842 = vand.u32 %v2841, 4294901760
    %v2843 = vsub.f32 %v2841, %v2842
    %v2844 = vand.u32 %v2843, 4294901760
    %2845 = vmatpush.msra.mxu0 %v2844
    %v2846 = vand.u32 %v107, 4294901760
    %v2847 = vsub.f32 %v107, %v2846
    %v2848 = vand.u32 %v2847, 4294901760
    %v2849 = vsub.f32 %v2847, %v2848
    %v2850 = vand.u32 %v2849, 4294901760
    %2851 = vmatpush.msra.mxu0 %v2850
    %v2852 = vand.u32 %v2031, 4294901760
    %2853 = vmatmul.f32.gmra.mxu0 %v2852
    %v2854 = vpop.f32.mrf.mxu0
    %v2855 = vadd.f32 %v2754, %v2854
    %2856 = vdwg.mxu0
    %v2857 = vand.u32 %v137, 4294901760
    %v2858 = vsub.f32 %v137, %v2857
    %2859 = vmatpush.msra.mxu0 %v2858
    %v2860 = vand.u32 %v135, 4294901760
    %v2861 = vsub.f32 %v135, %v2860
    %2862 = vmatpush.msra.mxu0 %v2861
    %v2863 = vand.u32 %v133, 4294901760
    %v2864 = vsub.f32 %v133, %v2863
    %2865 = vmatpush.msra.mxu0 %v2864
    %v2866 = vand.u32 %v131, 4294901760
    %v2867 = vsub.f32 %v131, %v2866
    %2868 = vmatpush.msra.mxu0 %v2867
    %v2869 = vand.u32 %v129, 4294901760
    %v2870 = vsub.f32 %v129, %v2869
    %2871 = vmatpush.msra.mxu0 %v2870
    %v2872 = vand.u32 %v127, 4294901760
    %v2873 = vsub.f32 %v127, %v2872
    %2874 = vmatpush.msra.mxu0 %v2873
    %v2875 = vand.u32 %v125, 4294901760
    %v2876 = vsub.f32 %v125, %v2875
    %2877 = vmatpush.msra.mxu0 %v2876
    %v2878 = vand.u32 %v123, 4294901760
    %v2879 = vsub.f32 %v123, %v2878
    %2880 = vmatpush.msra.mxu0 %v2879
    %v2881 = vand.u32 %v121, 4294901760
    %v2882 = vsub.f32 %v121, %v2881
    %2883 = vmatpush.msra.mxu0 %v2882
    %v2884 = vand.u32 %v119, 4294901760
    %v2885 = vsub.f32 %v119, %v2884
    %2886 = vmatpush.msra.mxu0 %v2885
    %v2887 = vand.u32 %v117, 4294901760
    %v2888 = vsub.f32 %v117, %v2887
    %2889 = vmatpush.msra.mxu0 %v2888
    %v2890 = vand.u32 %v115, 4294901760
    %v2891 = vsub.f32 %v115, %v2890
    %2892 = vmatpush.msra.mxu0 %v2891
    %v2893 = vand.u32 %v113, 4294901760
    %v2894 = vsub.f32 %v113, %v2893
    %2895 = vmatpush.msra.mxu0 %v2894
    %v2896 = vand.u32 %v111, 4294901760
    %v2897 = vsub.f32 %v111, %v2896
    %2898 = vmatpush.msra.mxu0 %v2897
    %v2899 = vand.u32 %v109, 4294901760
    %v2900 = vsub.f32 %v109, %v2899
    %2901 = vmatpush.msra.mxu0 %v2900
    %v2902 = vand.u32 %v107, 4294901760
    %v2903 = vsub.f32 %v107, %v2902
    %2904 = vmatpush.msra.mxu0 %v2903
    %v2905 = vand.u32 %v2031, 4294901760
    %v2906 = vsub.f32 %v2031, %v2905
    %2907 = vmatmul.f32.gmra.mxu0 %v2906
    %v2908 = vpop.f32.mrf.mxu0
    %v2909 = vadd.f32 %v2855, %v2908
    %2910 = vdwg.mxu0
    %v2911 = vand.u32 %v137, 4294901760
    %2912 = vmatpush.msra.mxu0 %v2911
    %v2913 = vand.u32 %v135, 4294901760
    %2914 = vmatpush.msra.mxu0 %v2913
    %v2915 = vand.u32 %v133, 4294901760
    %2916 = vmatpush.msra.mxu0 %v2915
    %v2917 = vand.u32 %v131, 4294901760
    %2918 = vmatpush.msra.mxu0 %v2917
    %v2919 = vand.u32 %v129, 4294901760
    %2920 = vmatpush.msra.mxu0 %v2919
    %v2921 = vand.u32 %v127, 4294901760
    %2922 = vmatpush.msra.mxu0 %v2921
    %v2923 = vand.u32 %v125, 4294901760
    %2924 = vmatpush.msra.mxu0 %v2923
    %v2925 = vand.u32 %v123, 4294901760
    %2926 = vmatpush.msra.mxu0 %v2925
    %v2927 = vand.u32 %v121, 4294901760
    %2928 = vmatpush.msra.mxu0 %v2927
    %v2929 = vand.u32 %v119, 4294901760
    %2930 = vmatpush.msra.mxu0 %v2929
    %v2931 = vand.u32 %v117, 4294901760
    %2932 = vmatpush.msra.mxu0 %v2931
    %v2933 = vand.u32 %v115, 4294901760
    %2934 = vmatpush.msra.mxu0 %v2933
    %v2935 = vand.u32 %v113, 4294901760
    %2936 = vmatpush.msra.mxu0 %v2935
    %v2937 = vand.u32 %v111, 4294901760
    %2938 = vmatpush.msra.mxu0 %v2937
    %v2939 = vand.u32 %v109, 4294901760
    %2940 = vmatpush.msra.mxu0 %v2939
    %v2941 = vand.u32 %v107, 4294901760
    %2942 = vmatpush.msra.mxu0 %v2941
    %v2943 = vand.u32 %v2031, 4294901760
    %v2944 = vsub.f32 %v2031, %v2943
    %v2945 = vand.u32 %v2944, 4294901760
    %2946 = vmatmul.f32.gmra.mxu0 %v2945
    %v2947 = vpop.f32.mrf.mxu0
    %v2948 = vadd.f32 %v2909, %v2947
    %2949 = vdwg.mxu0
    %v2950 = vand.u32 %v137, 4294901760
    %v2951 = vsub.f32 %v137, %v2950
    %v2952 = vand.u32 %v2951, 4294901760
    %2953 = vmatpush.msra.mxu0 %v2952
    %v2954 = vand.u32 %v135, 4294901760
    %v2955 = vsub.f32 %v135, %v2954
    %v2956 = vand.u32 %v2955, 4294901760
    %2957 = vmatpush.msra.mxu0 %v2956
    %v2958 = vand.u32 %v133, 4294901760
    %v2959 = vsub.f32 %v133, %v2958
    %v2960 = vand.u32 %v2959, 4294901760
    %2961 = vmatpush.msra.mxu0 %v2960
    %v2962 = vand.u32 %v131, 4294901760
    %v2963 = vsub.f32 %v131, %v2962
    %v2964 = vand.u32 %v2963, 4294901760
    %2965 = vmatpush.msra.mxu0 %v2964
    %v2966 = vand.u32 %v129, 4294901760
    %v2967 = vsub.f32 %v129, %v2966
    %v2968 = vand.u32 %v2967, 4294901760
    %2969 = vmatpush.msra.mxu0 %v2968
    %v2970 = vand.u32 %v127, 4294901760
    %v2971 = vsub.f32 %v127, %v2970
    %v2972 = vand.u32 %v2971, 4294901760
    %2973 = vmatpush.msra.mxu0 %v2972
    %v2974 = vand.u32 %v125, 4294901760
    %v2975 = vsub.f32 %v125, %v2974
    %v2976 = vand.u32 %v2975, 4294901760
    %2977 = vmatpush.msra.mxu0 %v2976
    %v2978 = vand.u32 %v123, 4294901760
    %v2979 = vsub.f32 %v123, %v2978
    %v2980 = vand.u32 %v2979, 4294901760
    %2981 = vmatpush.msra.mxu0 %v2980
    %v2982 = vand.u32 %v121, 4294901760
    %v2983 = vsub.f32 %v121, %v2982
    %v2984 = vand.u32 %v2983, 4294901760
    %2985 = vmatpush.msra.mxu0 %v2984
    %v2986 = vand.u32 %v119, 4294901760
    %v2987 = vsub.f32 %v119, %v2986
    %v2988 = vand.u32 %v2987, 4294901760
    %2989 = vmatpush.msra.mxu0 %v2988
    %v2990 = vand.u32 %v117, 4294901760
    %v2991 = vsub.f32 %v117, %v2990
    %v2992 = vand.u32 %v2991, 4294901760
    %2993 = vmatpush.msra.mxu0 %v2992
    %v2994 = vand.u32 %v115, 4294901760
    %v2995 = vsub.f32 %v115, %v2994
    %v2996 = vand.u32 %v2995, 4294901760
    %2997 = vmatpush.msra.mxu0 %v2996
    %v2998 = vand.u32 %v113, 4294901760
    %v2999 = vsub.f32 %v113, %v2998
    %v3000 = vand.u32 %v2999, 4294901760
    %3001 = vmatpush.msra.mxu0 %v3000
    %v3002 = vand.u32 %v111, 4294901760
    %v3003 = vsub.f32 %v111, %v3002
    %v3004 = vand.u32 %v3003, 4294901760
    %3005 = vmatpush.msra.mxu0 %v3004
    %v3006 = vand.u32 %v109, 4294901760
    %v3007 = vsub.f32 %v109, %v3006
    %v3008 = vand.u32 %v3007, 4294901760
    %3009 = vmatpush.msra.mxu0 %v3008
    %v3010 = vand.u32 %v107, 4294901760
    %v3011 = vsub.f32 %v107, %v3010
    %v3012 = vand.u32 %v3011, 4294901760
    %3013 = vmatpush.msra.mxu0 %v3012
    %v3014 = vand.u32 %v2031, 4294901760
    %3015 = vmatmul.f32.gmra.mxu0 %v3014
    %v3016 = vpop.f32.mrf.mxu0
    %v3017 = vadd.f32 %v2948, %v3016
    %3018 = vdwg.mxu0
    %v3019 = vand.u32 %v137, 4294901760
    %3020 = vmatpush.msra.mxu0 %v3019
    %v3021 = vand.u32 %v135, 4294901760
    %3022 = vmatpush.msra.mxu0 %v3021
    %v3023 = vand.u32 %v133, 4294901760
    %3024 = vmatpush.msra.mxu0 %v3023
    %v3025 = vand.u32 %v131, 4294901760
    %3026 = vmatpush.msra.mxu0 %v3025
    %v3027 = vand.u32 %v129, 4294901760
    %3028 = vmatpush.msra.mxu0 %v3027
    %v3029 = vand.u32 %v127, 4294901760
    %3030 = vmatpush.msra.mxu0 %v3029
    %v3031 = vand.u32 %v125, 4294901760
    %3032 = vmatpush.msra.mxu0 %v3031
    %v3033 = vand.u32 %v123, 4294901760
    %3034 = vmatpush.msra.mxu0 %v3033
    %v3035 = vand.u32 %v121, 4294901760
    %3036 = vmatpush.msra.mxu0 %v3035
    %v3037 = vand.u32 %v119, 4294901760
    %3038 = vmatpush.msra.mxu0 %v3037
    %v3039 = vand.u32 %v117, 4294901760
    %3040 = vmatpush.msra.mxu0 %v3039
    %v3041 = vand.u32 %v115, 4294901760
    %3042 = vmatpush.msra.mxu0 %v3041
    %v3043 = vand.u32 %v113, 4294901760
    %3044 = vmatpush.msra.mxu0 %v3043
    %v3045 = vand.u32 %v111, 4294901760
    %3046 = vmatpush.msra.mxu0 %v3045
    %v3047 = vand.u32 %v109, 4294901760
    %3048 = vmatpush.msra.mxu0 %v3047
    %v3049 = vand.u32 %v107, 4294901760
    %3050 = vmatpush.msra.mxu0 %v3049
    %v3051 = vand.u32 %v2031, 4294901760
    %3052 = vmatmul.f32.gmra.mxu0 %v3051
    %v3053 = vpop.f32.mrf.mxu0
    %v3054 = vadd.f32 %v3017, %v3053
    %3055 = vdwg.mxu0
    %v3056 = vand.u32 %v169, 4294901760
    %3057 = vmatpush.msra.mxu0 %v3056
    %v3058 = vand.u32 %v167, 4294901760
    %3059 = vmatpush.msra.mxu0 %v3058
    %v3060 = vand.u32 %v165, 4294901760
    %3061 = vmatpush.msra.mxu0 %v3060
    %v3062 = vand.u32 %v163, 4294901760
    %3063 = vmatpush.msra.mxu0 %v3062
    %v3064 = vand.u32 %v161, 4294901760
    %3065 = vmatpush.msra.mxu0 %v3064
    %v3066 = vand.u32 %v159, 4294901760
    %3067 = vmatpush.msra.mxu0 %v3066
    %v3068 = vand.u32 %v157, 4294901760
    %3069 = vmatpush.msra.mxu0 %v3068
    %v3070 = vand.u32 %v155, 4294901760
    %3071 = vmatpush.msra.mxu0 %v3070
    %v3072 = vand.u32 %v153, 4294901760
    %3073 = vmatpush.msra.mxu0 %v3072
    %v3074 = vand.u32 %v151, 4294901760
    %3075 = vmatpush.msra.mxu0 %v3074
    %v3076 = vand.u32 %v149, 4294901760
    %3077 = vmatpush.msra.mxu0 %v3076
    %v3078 = vand.u32 %v147, 4294901760
    %3079 = vmatpush.msra.mxu0 %v3078
    %v3080 = vand.u32 %v145, 4294901760
    %3081 = vmatpush.msra.mxu0 %v3080
    %v3082 = vand.u32 %v143, 4294901760
    %3083 = vmatpush.msra.mxu0 %v3082
    %v3084 = vand.u32 %v141, 4294901760
    %3085 = vmatpush.msra.mxu0 %v3084
    %v3086 = vand.u32 %v139, 4294901760
    %3087 = vmatpush.msra.mxu0 %v3086
    %v3088 = vand.u32 %v2032, 4294901760
    %v3089 = vsub.f32 %v2032, %v3088
    %v3090 = vand.u32 %v3089, 4294901760
    %v3091 = vsub.f32 %v3089, %v3090
    %v3092 = vand.u32 %v3091, 4294901760
    %3093 = vmatmul.f32.gmra.mxu0 %v3092
    %v3094 = vpop.f32.mrf.mxu0
    %v3095 = vadd.f32 %v3054, %v3094
    %3096 = vdwg.mxu0
    %v3097 = vand.u32 %v169, 4294901760
    %v3098 = vsub.f32 %v169, %v3097
    %v3099 = vand.u32 %v3098, 4294901760
    %v3100 = vsub.f32 %v3098, %v3099
    %v3101 = vand.u32 %v3100, 4294901760
    %3102 = vmatpush.msra.mxu0 %v3101
    %v3103 = vand.u32 %v167, 4294901760
    %v3104 = vsub.f32 %v167, %v3103
    %v3105 = vand.u32 %v3104, 4294901760
    %v3106 = vsub.f32 %v3104, %v3105
    %v3107 = vand.u32 %v3106, 4294901760
    %3108 = vmatpush.msra.mxu0 %v3107
    %v3109 = vand.u32 %v165, 4294901760
    %v3110 = vsub.f32 %v165, %v3109
    %v3111 = vand.u32 %v3110, 4294901760
    %v3112 = vsub.f32 %v3110, %v3111
    %v3113 = vand.u32 %v3112, 4294901760
    %3114 = vmatpush.msra.mxu0 %v3113
    %v3115 = vand.u32 %v163, 4294901760
    %v3116 = vsub.f32 %v163, %v3115
    %v3117 = vand.u32 %v3116, 4294901760
    %v3118 = vsub.f32 %v3116, %v3117
    %v3119 = vand.u32 %v3118, 4294901760
    %3120 = vmatpush.msra.mxu0 %v3119
    %v3121 = vand.u32 %v161, 4294901760
    %v3122 = vsub.f32 %v161, %v3121
    %v3123 = vand.u32 %v3122, 4294901760
    %v3124 = vsub.f32 %v3122, %v3123
    %v3125 = vand.u32 %v3124, 4294901760
    %3126 = vmatpush.msra.mxu0 %v3125
    %v3127 = vand.u32 %v159, 4294901760
    %v3128 = vsub.f32 %v159, %v3127
    %v3129 = vand.u32 %v3128, 4294901760
    %v3130 = vsub.f32 %v3128, %v3129
    %v3131 = vand.u32 %v3130, 4294901760
    %3132 = vmatpush.msra.mxu0 %v3131
    %v3133 = vand.u32 %v157, 4294901760
    %v3134 = vsub.f32 %v157, %v3133
    %v3135 = vand.u32 %v3134, 4294901760
    %v3136 = vsub.f32 %v3134, %v3135
    %v3137 = vand.u32 %v3136, 4294901760
    %3138 = vmatpush.msra.mxu0 %v3137
    %v3139 = vand.u32 %v155, 4294901760
    %v3140 = vsub.f32 %v155, %v3139
    %v3141 = vand.u32 %v3140, 4294901760
    %v3142 = vsub.f32 %v3140, %v3141
    %v3143 = vand.u32 %v3142, 4294901760
    %3144 = vmatpush.msra.mxu0 %v3143
    %v3145 = vand.u32 %v153, 4294901760
    %v3146 = vsub.f32 %v153, %v3145
    %v3147 = vand.u32 %v3146, 4294901760
    %v3148 = vsub.f32 %v3146, %v3147
    %v3149 = vand.u32 %v3148, 4294901760
    %3150 = vmatpush.msra.mxu0 %v3149
    %v3151 = vand.u32 %v151, 4294901760
    %v3152 = vsub.f32 %v151, %v3151
    %v3153 = vand.u32 %v3152, 4294901760
    %v3154 = vsub.f32 %v3152, %v3153
    %v3155 = vand.u32 %v3154, 4294901760
    %3156 = vmatpush.msra.mxu0 %v3155
    %v3157 = vand.u32 %v149, 4294901760
    %v3158 = vsub.f32 %v149, %v3157
    %v3159 = vand.u32 %v3158, 4294901760
    %v3160 = vsub.f32 %v3158, %v3159
    %v3161 = vand.u32 %v3160, 4294901760
    %3162 = vmatpush.msra.mxu0 %v3161
    %v3163 = vand.u32 %v147, 4294901760
    %v3164 = vsub.f32 %v147, %v3163
    %v3165 = vand.u32 %v3164, 4294901760
    %v3166 = vsub.f32 %v3164, %v3165
    %v3167 = vand.u32 %v3166, 4294901760
    %3168 = vmatpush.msra.mxu0 %v3167
    %v3169 = vand.u32 %v145, 4294901760
    %v3170 = vsub.f32 %v145, %v3169
    %v3171 = vand.u32 %v3170, 4294901760
    %v3172 = vsub.f32 %v3170, %v3171
    %v3173 = vand.u32 %v3172, 4294901760
    %3174 = vmatpush.msra.mxu0 %v3173
    %v3175 = vand.u32 %v143, 4294901760
    %v3176 = vsub.f32 %v143, %v3175
    %v3177 = vand.u32 %v3176, 4294901760
    %v3178 = vsub.f32 %v3176, %v3177
    %v3179 = vand.u32 %v3178, 4294901760
    %3180 = vmatpush.msra.mxu0 %v3179
    %v3181 = vand.u32 %v141, 4294901760
    %v3182 = vsub.f32 %v141, %v3181
    %v3183 = vand.u32 %v3182, 4294901760
    %v3184 = vsub.f32 %v3182, %v3183
    %v3185 = vand.u32 %v3184, 4294901760
    %3186 = vmatpush.msra.mxu0 %v3185
    %v3187 = vand.u32 %v139, 4294901760
    %v3188 = vsub.f32 %v139, %v3187
    %v3189 = vand.u32 %v3188, 4294901760
    %v3190 = vsub.f32 %v3188, %v3189
    %v3191 = vand.u32 %v3190, 4294901760
    %3192 = vmatpush.msra.mxu0 %v3191
    %v3193 = vand.u32 %v2032, 4294901760
    %3194 = vmatmul.f32.gmra.mxu0 %v3193
    %v3195 = vpop.f32.mrf.mxu0
    %v3196 = vadd.f32 %v3095, %v3195
    %3197 = vdwg.mxu0
    %v3198 = vand.u32 %v169, 4294901760
    %v3199 = vsub.f32 %v169, %v3198
    %3200 = vmatpush.msra.mxu0 %v3199
    %v3201 = vand.u32 %v167, 4294901760
    %v3202 = vsub.f32 %v167, %v3201
    %3203 = vmatpush.msra.mxu0 %v3202
    %v3204 = vand.u32 %v165, 4294901760
    %v3205 = vsub.f32 %v165, %v3204
    %3206 = vmatpush.msra.mxu0 %v3205
    %v3207 = vand.u32 %v163, 4294901760
    %v3208 = vsub.f32 %v163, %v3207
    %3209 = vmatpush.msra.mxu0 %v3208
    %v3210 = vand.u32 %v161, 4294901760
    %v3211 = vsub.f32 %v161, %v3210
    %3212 = vmatpush.msra.mxu0 %v3211
    %v3213 = vand.u32 %v159, 4294901760
    %v3214 = vsub.f32 %v159, %v3213
    %3215 = vmatpush.msra.mxu0 %v3214
    %v3216 = vand.u32 %v157, 4294901760
    %v3217 = vsub.f32 %v157, %v3216
    %3218 = vmatpush.msra.mxu0 %v3217
    %v3219 = vand.u32 %v155, 4294901760
    %v3220 = vsub.f32 %v155, %v3219
    %3221 = vmatpush.msra.mxu0 %v3220
    %v3222 = vand.u32 %v153, 4294901760
    %v3223 = vsub.f32 %v153, %v3222
    %3224 = vmatpush.msra.mxu0 %v3223
    %v3225 = vand.u32 %v151, 4294901760
    %v3226 = vsub.f32 %v151, %v3225
    %3227 = vmatpush.msra.mxu0 %v3226
    %v3228 = vand.u32 %v149, 4294901760
    %v3229 = vsub.f32 %v149, %v3228
    %3230 = vmatpush.msra.mxu0 %v3229
    %v3231 = vand.u32 %v147, 4294901760
    %v3232 = vsub.f32 %v147, %v3231
    %3233 = vmatpush.msra.mxu0 %v3232
    %v3234 = vand.u32 %v145, 4294901760
    %v3235 = vsub.f32 %v145, %v3234
    %3236 = vmatpush.msra.mxu0 %v3235
    %v3237 = vand.u32 %v143, 4294901760
    %v3238 = vsub.f32 %v143, %v3237
    %3239 = vmatpush.msra.mxu0 %v3238
    %v3240 = vand.u32 %v141, 4294901760
    %v3241 = vsub.f32 %v141, %v3240
    %3242 = vmatpush.msra.mxu0 %v3241
    %v3243 = vand.u32 %v139, 4294901760
    %v3244 = vsub.f32 %v139, %v3243
    %3245 = vmatpush.msra.mxu0 %v3244
    %v3246 = vand.u32 %v2032, 4294901760
    %v3247 = vsub.f32 %v2032, %v3246
    %3248 = vmatmul.f32.gmra.mxu0 %v3247
    %v3249 = vpop.f32.mrf.mxu0
    %v3250 = vadd.f32 %v3196, %v3249
    %3251 = vdwg.mxu0
    %v3252 = vand.u32 %v169, 4294901760
    %3253 = vmatpush.msra.mxu0 %v3252
    %v3254 = vand.u32 %v167, 4294901760
    %3255 = vmatpush.msra.mxu0 %v3254
    %v3256 = vand.u32 %v165, 4294901760
    %3257 = vmatpush.msra.mxu0 %v3256
    %v3258 = vand.u32 %v163, 4294901760
    %3259 = vmatpush.msra.mxu0 %v3258
    %v3260 = vand.u32 %v161, 4294901760
    %3261 = vmatpush.msra.mxu0 %v3260
    %v3262 = vand.u32 %v159, 4294901760
    %3263 = vmatpush.msra.mxu0 %v3262
    %v3264 = vand.u32 %v157, 4294901760
    %3265 = vmatpush.msra.mxu0 %v3264
    %v3266 = vand.u32 %v155, 4294901760
    %3267 = vmatpush.msra.mxu0 %v3266
    %v3268 = vand.u32 %v153, 4294901760
    %3269 = vmatpush.msra.mxu0 %v3268
    %v3270 = vand.u32 %v151, 4294901760
    %3271 = vmatpush.msra.mxu0 %v3270
    %v3272 = vand.u32 %v149, 4294901760
    %3273 = vmatpush.msra.mxu0 %v3272
    %v3274 = vand.u32 %v147, 4294901760
    %3275 = vmatpush.msra.mxu0 %v3274
    %v3276 = vand.u32 %v145, 4294901760
    %3277 = vmatpush.msra.mxu0 %v3276
    %v3278 = vand.u32 %v143, 4294901760
    %3279 = vmatpush.msra.mxu0 %v3278
    %v3280 = vand.u32 %v141, 4294901760
    %3281 = vmatpush.msra.mxu0 %v3280
    %v3282 = vand.u32 %v139, 4294901760
    %3283 = vmatpush.msra.mxu0 %v3282
    %v3284 = vand.u32 %v2032, 4294901760
    %v3285 = vsub.f32 %v2032, %v3284
    %v3286 = vand.u32 %v3285, 4294901760
    %3287 = vmatmul.f32.gmra.mxu0 %v3286
    %v3288 = vpop.f32.mrf.mxu0
    %v3289 = vadd.f32 %v3250, %v3288
    %3290 = vdwg.mxu0
    %v3291 = vand.u32 %v169, 4294901760
    %v3292 = vsub.f32 %v169, %v3291
    %v3293 = vand.u32 %v3292, 4294901760
    %3294 = vmatpush.msra.mxu0 %v3293
    %v3295 = vand.u32 %v167, 4294901760
    %v3296 = vsub.f32 %v167, %v3295
    %v3297 = vand.u32 %v3296, 4294901760
    %3298 = vmatpush.msra.mxu0 %v3297
    %v3299 = vand.u32 %v165, 4294901760
    %v3300 = vsub.f32 %v165, %v3299
    %v3301 = vand.u32 %v3300, 4294901760
    %3302 = vmatpush.msra.mxu0 %v3301
    %v3303 = vand.u32 %v163, 4294901760
    %v3304 = vsub.f32 %v163, %v3303
    %v3305 = vand.u32 %v3304, 4294901760
    %3306 = vmatpush.msra.mxu0 %v3305
    %v3307 = vand.u32 %v161, 4294901760
    %v3308 = vsub.f32 %v161, %v3307
    %v3309 = vand.u32 %v3308, 4294901760
    %3310 = vmatpush.msra.mxu0 %v3309
    %v3311 = vand.u32 %v159, 4294901760
    %v3312 = vsub.f32 %v159, %v3311
    %v3313 = vand.u32 %v3312, 4294901760
    %3314 = vmatpush.msra.mxu0 %v3313
    %v3315 = vand.u32 %v157, 4294901760
    %v3316 = vsub.f32 %v157, %v3315
    %v3317 = vand.u32 %v3316, 4294901760
    %3318 = vmatpush.msra.mxu0 %v3317
    %v3319 = vand.u32 %v155, 4294901760
    %v3320 = vsub.f32 %v155, %v3319
    %v3321 = vand.u32 %v3320, 4294901760
    %3322 = vmatpush.msra.mxu0 %v3321
    %v3323 = vand.u32 %v153, 4294901760
    %v3324 = vsub.f32 %v153, %v3323
    %v3325 = vand.u32 %v3324, 4294901760
    %3326 = vmatpush.msra.mxu0 %v3325
    %v3327 = vand.u32 %v151, 4294901760
    %v3328 = vsub.f32 %v151, %v3327
    %v3329 = vand.u32 %v3328, 4294901760
    %3330 = vmatpush.msra.mxu0 %v3329
    %v3331 = vand.u32 %v149, 4294901760
    %v3332 = vsub.f32 %v149, %v3331
    %v3333 = vand.u32 %v3332, 4294901760
    %3334 = vmatpush.msra.mxu0 %v3333
    %v3335 = vand.u32 %v147, 4294901760
    %v3336 = vsub.f32 %v147, %v3335
    %v3337 = vand.u32 %v3336, 4294901760
    %3338 = vmatpush.msra.mxu0 %v3337
    %v3339 = vand.u32 %v145, 4294901760
    %v3340 = vsub.f32 %v145, %v3339
    %v3341 = vand.u32 %v3340, 4294901760
    %3342 = vmatpush.msra.mxu0 %v3341
    %v3343 = vand.u32 %v143, 4294901760
    %v3344 = vsub.f32 %v143, %v3343
    %v3345 = vand.u32 %v3344, 4294901760
    %3346 = vmatpush.msra.mxu0 %v3345
    %v3347 = vand.u32 %v141, 4294901760
    %v3348 = vsub.f32 %v141, %v3347
    %v3349 = vand.u32 %v3348, 4294901760
    %3350 = vmatpush.msra.mxu0 %v3349
    %v3351 = vand.u32 %v139, 4294901760
    %v3352 = vsub.f32 %v139, %v3351
    %v3353 = vand.u32 %v3352, 4294901760
    %3354 = vmatpush.msra.mxu0 %v3353
    %v3355 = vand.u32 %v2032, 4294901760
    %3356 = vmatmul.f32.gmra.mxu0 %v3355
    %v3357 = vpop.f32.mrf.mxu0
    %v3358 = vadd.f32 %v3289, %v3357
    %3359 = vdwg.mxu0
    %v3360 = vand.u32 %v169, 4294901760
    %3361 = vmatpush.msra.mxu0 %v3360
    %v3362 = vand.u32 %v167, 4294901760
    %3363 = vmatpush.msra.mxu0 %v3362
    %v3364 = vand.u32 %v165, 4294901760
    %3365 = vmatpush.msra.mxu0 %v3364
    %v3366 = vand.u32 %v163, 4294901760
    %3367 = vmatpush.msra.mxu0 %v3366
    %v3368 = vand.u32 %v161, 4294901760
    %3369 = vmatpush.msra.mxu0 %v3368
    %v3370 = vand.u32 %v159, 4294901760
    %3371 = vmatpush.msra.mxu0 %v3370
    %v3372 = vand.u32 %v157, 4294901760
    %3373 = vmatpush.msra.mxu0 %v3372
    %v3374 = vand.u32 %v155, 4294901760
    %3375 = vmatpush.msra.mxu0 %v3374
    %v3376 = vand.u32 %v153, 4294901760
    %3377 = vmatpush.msra.mxu0 %v3376
    %v3378 = vand.u32 %v151, 4294901760
    %3379 = vmatpush.msra.mxu0 %v3378
    %v3380 = vand.u32 %v149, 4294901760
    %3381 = vmatpush.msra.mxu0 %v3380
    %v3382 = vand.u32 %v147, 4294901760
    %3383 = vmatpush.msra.mxu0 %v3382
    %v3384 = vand.u32 %v145, 4294901760
    %3385 = vmatpush.msra.mxu0 %v3384
    %v3386 = vand.u32 %v143, 4294901760
    %3387 = vmatpush.msra.mxu0 %v3386
    %v3388 = vand.u32 %v141, 4294901760
    %3389 = vmatpush.msra.mxu0 %v3388
    %v3390 = vand.u32 %v139, 4294901760
    %3391 = vmatpush.msra.mxu0 %v3390
    %v3392 = vand.u32 %v2032, 4294901760
    %3393 = vmatmul.f32.gmra.mxu0 %v3392
    %v3394 = vpop.f32.mrf.mxu0
    %v3395 = vadd.f32 %v3358, %v3394
    %3396 = vdwg.mxu0
    %v3397 = vmul.f32 %v1347, %v1347
    %v3398 = vmul.f32 %v2029, %v2029
    %v3399 = vsub.f32 %v2713, %v3397
    %v3400 = vsub.f32 %v3395, %v3398
    %v3401 = vmax.f32 %v3399, 0.0
    %v3402 = vmax.f32 %v3400, 0.0
    %v3403 = vsub.f32 %v665, %v1347
    %v3404 = vsub.f32 %v666, %v2029
    %v3405 = vadd.f32 %v3401, 1e-05
    %v3406 = vadd.f32 %v3402, 1e-05
    %v3407 = vrsqrt.pop %v3405
    %v3408 = vmul.f32 %v3407, %v3405
    %v3409 = vmul.f32 %v3408, %v3407
    %v3410 = vmul.f32 0.5, %v3409
    %v3411 = vsub.f32 1.5, %v3410
    %v3412 = vmul.f32 %v3407, %v3411
    %vm3413 = vweird.f32 %v3405
    %vm3414 = vweird.f32 %v3407
    %vm3415 = vmor %vm3413, %vm3414
    %v3416 = vsel %vm3415, %v3407, %v3412
    %v3417 = vrsqrt.pop %v3406
    %v3418 = vmul.f32 %v3417, %v3406
    %v3419 = vmul.f32 %v3418, %v3417
    %v3420 = vmul.f32 0.5, %v3419
    %v3421 = vsub.f32 1.5, %v3420
    %v3422 = vmul.f32 %v3417, %v3421
    %vm3423 = vweird.f32 %v3406
    %vm3424 = vweird.f32 %v3417
    %vm3425 = vmor %vm3423, %vm3424
    %v3426 = vsel %vm3425, %v3417, %v3422
    %v3427 = vmul.f32 %v3403, %v3416
    %v3428 = vmul.f32 %v3404, %v3426
    %v3430 = vperm.slane %v171, 0
    %v3431 = vperm.slane %v171, 1
    %v3434 = vmul.f32 %v3427, %v3430
    %v3435 = vmul.f32 %v3428, %v3431
    %v3437 = vperm.slane %v172, 0
    %v3438 = vperm.slane %v172, 1
    %v3441 = vadd.f32 %v3434, %v3437
    %v3442 = vadd.f32 %v3435, %v3438
    %3443 = vst [vmem:[#allocation11] sm:$0xff] %v3441
    %3444 = vst [vmem:[#allocation11 + $0x8] sm:$0xff] %v3442
    // Predicated region
    $region46: #{tpu_custom_call.1} parent=1 // pred_check
      _
    $region47: #{tpu_custom_call.1} parent=1 // pred_check_branch
      %3446 = sbr.rel (0) target = $region49
    $region48: #{tpu_custom_call.1} parent=1 // pred_region
      %3448 = vsyncadd [#allocation4], 0
      %s3450 = sshll.u32 [#allocation11], 4
      %s3451 = int_to_ptr.vmem [resolvable:$true] %s3450
      %s3452 = sshll.u32 %s6, 4
      %s3453 = int_to_ptr.hbm [resolvable:$true] %s3452
      %3455 = dma.vmem_to_hbm [thread:$0]  %s3451, 256, %s3453, [#allocation4]
    $region49: #{tpu_custom_call.1} parent=1 // pred_fallthru
      _
    // Predicated region
    $region50: #{tpu_custom_call.1} parent=1 // pred_check
      _
    $region51: #{tpu_custom_call.1} parent=1 // pred_check_branch
      %3457 = sbr.rel (0) target = $region53
    $region52: #{tpu_custom_call.1} parent=1 // pred_region
      %3459 = dma.done [#allocation4], 256
    $region53: #{tpu_custom_call.1} parent=1 // pred_fallthru
      _
    %3460 = vsyncpa [#allocation3], 1
    %3461 = vsyncpa [#allocation6], 1
    %3462 = vsyncpa [#allocation9], 1
    %3463 = vsyncpa [#allocation4], 1

</llo_original>
